<compile_context>
chip_gen: v7x
topology: tpu7x:2x2x1
jax: 0.10.0
libtpu: 0.0.40
codegen_flags: <defaults>
</compile_context>

<pallas_src>
import functools
import math

import jax
import jax.numpy as jnp
from jax import lax
from jax.experimental import pallas as pl
from jax.experimental.pallas import tpu as pltpu

SELU_ALPHA = 1.6732632423543772
SELU_SCALE = 1.0507009873554805


def _round_up(v, m):
    return (v + m - 1) // m * m


# ----------------------------- fused Pallas kernel ---------------------------

def _fused_residual_block_kernel(
    x_ref, mask_ref,
    rin_ref, bin_ref, g1_ref, b1g_ref, w1_ref, b1_ref,
    rout_ref, bout_ref, g2_ref, b2g_ref, w2_ref, b2_ref,
    *rest, H, W, Wp, off, eps, has_proj):
    if has_proj:
        wr_ref, br_ref, o_ref, pad1_ref, pad2_ref = rest
    else:
        o_ref, pad1_ref, pad2_ref = rest

    f32 = jnp.float32
    bf16 = jnp.bfloat16
    HW = H * W
    HWp = H * Wp
    inv_hw = 1.0 / HW
    cin = x_ref.shape[-1]
    cout = w1_ref.shape[-1]

    def group_avg(row_c, r_ref, b_ref):
        # (1, C) -> per-group average broadcast back to (1, C) via skinny matmuls.
        return jnp.dot(jnp.dot(row_c, r_ref[...], preferred_element_type=f32),
                       b_ref[...], preferred_element_type=f32)

    def stage(pad_ref, interior_bf16, cdim):
        # Zero ONLY the small halo regions (not the whole scratch), every grid
        # step (megacore-safe: each core owns its own scratch and may never see
        # program_id == 0), then store the full-width interior rows.  The gap
        # columns inside the interior are zero in `interior_bf16` itself.
        tot = pad_ref.shape[0]
        pad_ref[0:off, :] = jnp.zeros((off, cdim), bf16)
        pad_ref[off + HWp:tot, :] = jnp.zeros((tot - off - HWp, cdim), bf16)
        pad_ref[off:off + HWp, :] = interior_bf16

    def conv3x3(pad_ref, w_ref, bias_row):
        # 9 shifted matmuls against the width-padded scratch (row stride Wp):
        # every tap is a pure contiguous slice -> no per-tap column masks.
        # TODO(synk): group taps into one big-K matmul (K=3*C or 9*C im2col in
        # VMEM) to fill the 256-deep v6e/v7x MXU and drop the fp32 adds.
        acc = None
        for k in range(9):
            dy, dx = k // 3 - 1, k % 3 - 1
            start = off + dy * Wp + dx
            tap = pad_ref[start:start + HWp, :]
            d = jnp.dot(tap, w_ref[k], preferred_element_type=f32)
            acc = d if acc is None else acc + d
        return acc + bias_row                                     # (HWp, Cout) f32

    # ------------------- GroupNorm1 + SELU (dense NHWC layout) ---------------
    x3 = x_ref[0].astype(f32)                                     # (H, W, Cin)
    s1 = jnp.sum(jnp.sum(x3, axis=0), axis=0, keepdims=True)      # (1, Cin)
    gmean1 = group_avg(s1 * inv_hw, rin_ref, bin_ref)
    xc = x3 - gmean1.reshape(1, 1, cin)
    v1 = jnp.sum(jnp.sum(xc * xc, axis=0), axis=0, keepdims=True) * inv_hw
    gvar1 = group_avg(v1, rin_ref, bin_ref)
    inv1 = lax.rsqrt(gvar1 + eps)
    y1 = xc * (inv1 * g1_ref[...]).reshape(1, 1, cin) + b1g_ref[...].reshape(1, 1, cin)
    y1 = SELU_SCALE * jnp.where(y1 > 0, y1, SELU_ALPHA * (jnp.exp(y1) - 1.0))
    # TODO(synk): on v6e/v7x do the post-stats elementwise work in bf16 (not v5e).

    # ------------------- Conv1 3x3 (pad=1) -----------------------------------
    y1p = jnp.concatenate([y1, jnp.zeros((H, Wp - W, cin), f32)], axis=1)  # (H, Wp, Cin)
    stage(pad1_ref, y1p.reshape(HWp, cin).astype(bf16), cin)
    h1 = conv3x3(pad1_ref, w1_ref, b1_ref[...])                   # (HWp, Cout)

    # ------------------- GroupNorm2 (masked stats over valid columns) --------
    m = mask_ref[...]                                             # (HWp, 1) f32
    s2 = jnp.sum(h1 * m, axis=0, keepdims=True) * inv_hw          # (1, Cout)
    gmean2 = group_avg(s2, rout_ref, bout_ref)
    hc2 = h1 - gmean2
    hcm = hc2 * m
    v2 = jnp.sum(hcm * hcm, axis=0, keepdims=True) * inv_hw
    gvar2 = group_avg(v2, rout_ref, bout_ref)
    inv2 = lax.rsqrt(gvar2 + eps)
    y2 = hc2 * (inv2 * g2_ref[...]) + b2g_ref[...]                # (HWp, Cout)

    # ------------------- Conv2 3x3 (pad=1) -----------------------------------
    stage(pad2_ref, (y2 * m).astype(bf16), cout)                  # mask zeroes gap cols
    h2 = conv3x3(pad2_ref, w2_ref, b2_ref[...])                   # (HWp, Cout)

    # ------------------- Residual + epilogue ----------------------------------
    h2_3 = h2.reshape(H, Wp, cout)[:, :W, :]                      # (H, W, Cout)
    xr = x_ref[0].astype(f32)                                     # re-read: shorter live range
    if has_proj:
        xrp = jnp.concatenate([xr, jnp.zeros((H, Wp - W, cin), f32)], axis=1)
        resp = jnp.dot(xrp.reshape(HWp, cin), wr_ref[...],
                       preferred_element_type=f32) + br_ref[...]
        res3 = resp.reshape(H, Wp, cout)[:, :W, :]
    else:
        res3 = xr
    o_ref[0] = (h2_3 + res3).astype(o_ref.dtype)


# ----------------------------- wrapper ---------------------------------------

def _group_matrices(C, num_groups):
    cpg = C // num_groups
    gid = jnp.arange(C) // cpg
    reduce_m = (gid[:, None] == jnp.arange(num_groups)[None, :]).astype(jnp.float32) / cpg  # (C, G)
    bcast_m = (jnp.arange(num_groups)[:, None] == gid[None, :]).astype(jnp.float32)         # (G, C)
    return reduce_m, bcast_m


def _vmem_estimate(H, W, Wp, tot, Cin, Cout, G):
    blocks = 2 * (H * W * Cin * 4 + H * W * Cout * 4)           # double-buffered in/out
    weights = 2 * (9 * Cin * Cout + 9 * Cout * Cout) * 2 + 2 * Cin * Cout * 4
    small = 4 * (Cin + Cout) * (G + 4) * 4
    scratch = tot * (Cin + Cout) * 2
    live = 8 * H * Wp * max(Cin, Cout) * 4                      # fp32 intermediates
    return blocks + weights + small + scratch + live


def residual_block_forward(x_nchw, params, num_groups=32, eps=1e-5):
    N, Cin, H, W = x_nchw.shape
    Cout = params["w1"].shape[-1]
    has_proj = params.get("wr", None) is not None

    Wp = _round_up(W + 2, 8)          # padded row stride (>= W+2, sublane aligned)
    off = Wp + 8                      # interior start (>= Wp+1, sublane aligned)
    HWp = H * Wp
    tot = off + (H + 1) * Wp + 8      # scratch rows (covers all 9 tap windows)

    x_nhwc = jnp.transpose(x_nchw, (0, 2, 3, 1))                 # NCHW -> NHWC

    # Column-validity mask over the padded flattened layout (1 at real pixels).
    mask = ((jnp.arange(HWp) % Wp) < W).astype(jnp.float32).reshape(HWp, 1)

    rin, bin_ = _group_matrices(Cin, num_groups)
    rout, bout = _group_matrices(Cout, num_groups)

    bf16 = jnp.bfloat16
    w1 = params["w1"].reshape(9, Cin, Cout).astype(bf16)   # bf16 MXU operands,
    w2 = params["w2"].reshape(9, Cout, Cout).astype(bf16)  # fp32 accumulation in-kernel

    def full2(r, c):
        return pl.BlockSpec((r, c), lambda n: (0, 0))

    inputs = [x_nhwc, mask,
              rin, bin_, params["g1"].reshape(1, Cin), params["b1g"].reshape(1, Cin),
              w1, params["b1"].reshape(1, Cout),
              rout, bout, params["g2"].reshape(1, Cout), params["b2g"].reshape(1, Cout),
              w2, params["b2"].reshape(1, Cout)]
    in_specs = [pl.BlockSpec((1, H, W, Cin), lambda n: (n, 0, 0, 0)),
                full2(HWp, 1),
                full2(Cin, num_groups), full2(num_groups, Cin),
                full2(1, Cin), full2(1, Cin),
                pl.BlockSpec((9, Cin, Cout), lambda n: (0, 0, 0)), full2(1, Cout),
                full2(Cout, num_groups), full2(num_groups, Cout),
                full2(1, Cout), full2(1, Cout),
                pl.BlockSpec((9, Cout, Cout), lambda n: (0, 0, 0)), full2(1, Cout)]
    if has_proj:
        inputs += [params["wr"].astype(jnp.float32), params["br"].reshape(1, Cout)]
        in_specs += [full2(Cin, Cout), full2(1, Cout)]

    kern = functools.partial(_fused_residual_block_kernel,
                             H=H, W=W, Wp=Wp, off=off, eps=eps, has_proj=has_proj)

    est = _vmem_estimate(H, W, Wp, tot, Cin, Cout, num_groups)
    vmem_limit = int(max(32 * 1024 * 1024, min(int(1.5 * est), 96 * 1024 * 1024)))

    out = pl.pallas_call(
        kern,
        out_shape=jax.ShapeDtypeStruct((N, H, W, Cout), jnp.float32),
        grid=(N,),
        in_specs=in_specs,
        out_specs=pl.BlockSpec((1, H, W, Cout), lambda n: (n, 0, 0, 0)),
        scratch_shapes=[pltpu.VMEM((tot, Cin), bf16),
                        pltpu.VMEM((tot, Cout), bf16)],
        compiler_params=pltpu.CompilerParams(
            dimension_semantics=("parallel",),
            vmem_limit_bytes=vmem_limit),
    )(*inputs)

    return out.transpose(0, 3, 1, 2)  # NHWC -> NCHW


# ----------------------------- pure-JAX reference ----------------------------

def reference_forward(x, params, num_groups=32, eps=1e-5):
    def groupnorm(h, gamma, beta):
        N, C, H, W = h.shape
        hg = h.reshape(N, num_groups, -1)
        mean = hg.mean(axis=-1, keepdims=True)
        var = hg.var(axis=-1, keepdims=True)
        hn = ((hg - mean) / jnp.sqrt(var + eps)).reshape(N, C, H, W)
        return hn * gamma[None, :, None, None] + beta[None, :, None, None]

    def selu(h):
        return SELU_SCALE * jnp.where(h > 0, h, SELU_ALPHA * (jnp.exp(h) - 1.0))

    def conv3x3(h, w, b):
        return lax.conv_general_dilated(
            h, w, window_strides=(1, 1), padding=((1, 1), (1, 1)),
            dimension_numbers=("NCHW", "HWIO", "NCHW"),
            precision=lax.Precision.HIGHEST) + b[None, :, None, None]

    residue = x
    h = groupnorm(x, params["g1"], params["b1g"])
    h = selu(h)
    h = conv3x3(h, params["w1"], params["b1"])
    h = groupnorm(h, params["g2"], params["b2g"])
    h = conv3x3(h, params["w2"], params["b2"])
    if params.get("wr", None) is None:
        res = residue
    else:
        res = jnp.einsum("nchw,co->nohw", residue, params["wr"],
                         precision=lax.Precision.HIGHEST) + params["br"][None, :, None, None]
    return h + res


# ----------------------------- main -------------------------------------------

if __name__ == "__main__":
    def make_params(key, cin, cout, proj):
        ks = jax.random.split(key, 11)
        p = {
            "g1":  1.0 + 0.1 * jax.random.normal(ks[0], (cin,), jnp.float32),
            "b1g": 0.1 * jax.random.normal(ks[1], (cin,), jnp.float32),
            "w1":  jax.random.normal(ks[2], (3, 3, cin, cout), jnp.float32) / math.sqrt(9 * cin),
            "b1":  0.1 * jax.random.normal(ks[3], (cout,), jnp.float32),
            "g2":  1.0 + 0.1 * jax.random.normal(ks[4], (cout,), jnp.float32),
            "b2g": 0.1 * jax.random.normal(ks[5], (cout,), jnp.float32),
            "w2":  jax.random.normal(ks[6], (3, 3, cout, cout), jnp.float32) / math.sqrt(9 * cout),
            "b2":  0.1 * jax.random.normal(ks[7], (cout,), jnp.float32),
            "wr":  (jax.random.normal(ks[8], (cin, cout), jnp.float32) / math.sqrt(cin)) if proj else None,
            "br":  (0.1 * jax.random.normal(ks[9], (cout,), jnp.float32)) if proj else None,
        }
        return p, ks[10]

    root = jax.random.PRNGKey(0)
    k_a, k_b = jax.random.split(root)

    # Case 1: Cin != Cout -> 1x1-conv residual projection.  (GroupNorm(32, .) needs C % 32 == 0.)
    p1, kx1 = make_params(k_a, 32, 64, True)
    x1 = jax.random.normal(kx1, (2, 32, 8, 8), jnp.float32)
    out1 = jax.block_until_ready(residual_block_forward(x1, p1))
    ref1 = jax.block_until_ready(reference_forward(x1, p1))
    assert out1.shape == (2, 64, 8, 8)
    err1 = float(jnp.max(jnp.abs(out1 - ref1)))
    # bf16 conv operands (fp32 accumulation) vs fp32 HIGHEST reference -> bf16-level tolerance.
    assert err1 < 5e-2, f"projection path max abs error {err1}"

    # Case 2: Cin == Cout -> identity residual.
    p2, kx2 = make_params(k_b, 64, 64, False)
    x2 = jax.random.normal(kx2, (1, 64, 8, 8), jnp.float32)
    out2 = jax.block_until_ready(residual_block_forward(x2, p2))
    ref2 = jax.block_until_ready(reference_forward(x2, p2))
    assert out2.shape == (1, 64, 8, 8)
    err2 = float(jnp.max(jnp.abs(out2 - ref2)))
    assert err2 < 5e-2, f"identity path max abs error {err2}"

    print("KERNEL_OK")
</pallas_src>

<mosaic_0001>
module attributes {stable_mosaic.version = 11 : i64} {
  func.func @_fused_residual_block_kernel(%arg0: i32, %arg1: memref<1x8x8x32xf32, #tpu.memory_space<vmem>>, %arg2: memref<128x1xf32, #tpu.memory_space<vmem>>, %arg3: memref<32x32xf32, #tpu.memory_space<vmem>>, %arg4: memref<32x32xf32, #tpu.memory_space<vmem>>, %arg5: memref<1x32xf32, #tpu.memory_space<vmem>>, %arg6: memref<1x32xf32, #tpu.memory_space<vmem>>, %arg7: memref<9x32x64xbf16, #tpu.memory_space<vmem>>, %arg8: memref<1x64xf32, #tpu.memory_space<vmem>>, %arg9: memref<64x32xf32, #tpu.memory_space<vmem>>, %arg10: memref<32x64xf32, #tpu.memory_space<vmem>>, %arg11: memref<1x64xf32, #tpu.memory_space<vmem>>, %arg12: memref<1x64xf32, #tpu.memory_space<vmem>>, %arg13: memref<9x64x64xbf16, #tpu.memory_space<vmem>>, %arg14: memref<1x64xf32, #tpu.memory_space<vmem>>, %arg15: memref<32x64xf32, #tpu.memory_space<vmem>>, %arg16: memref<1x64xf32, #tpu.memory_space<vmem>>, %arg17: memref<1x8x8x64xf32, #tpu.memory_space<vmem>>, %arg18: memref<176x32xbf16, #tpu.memory_space<vmem>>, %arg19: memref<176x64xbf16, #tpu.memory_space<vmem>>) attributes {dimension_semantics = [#tpu.dimension_semantics<parallel>], iteration_bounds = array<i64: 2>, scalar_prefetch = 0 : i64, scratch_operands = 2 : i64, tpu.core_type = #tpu.core_type<tc>, window_params = [{transform_indices = @transform_0, window_bounds = array<i64: 1, 8, 8, 32>}, {pipeline_mode = #tpu.pipeline_mode<synchronous>, transform_indices = @transform_1, window_bounds = array<i64: 128, 1>}, {pipeline_mode = #tpu.pipeline_mode<synchronous>, transform_indices = @transform_2, window_bounds = array<i64: 32, 32>}, {pipeline_mode = #tpu.pipeline_mode<synchronous>, transform_indices = @transform_3, window_bounds = array<i64: 32, 32>}, {pipeline_mode = #tpu.pipeline_mode<synchronous>, transform_indices = @transform_4, window_bounds = array<i64: 1, 32>}, {pipeline_mode = #tpu.pipeline_mode<synchronous>, transform_indices = @transform_5, window_bounds = array<i64: 1, 32>}, {pipeline_mode = #tpu.pipeline_mode<synchronous>, transform_indices = @transform_6, window_bounds = array<i64: 9, 32, 64>}, {pipeline_mode = #tpu.pipeline_mode<synchronous>, transform_indices = @transform_7, window_bounds = array<i64: 1, 64>}, {pipeline_mode = #tpu.pipeline_mode<synchronous>, transform_indices = @transform_8, window_bounds = array<i64: 64, 32>}, {pipeline_mode = #tpu.pipeline_mode<synchronous>, transform_indices = @transform_9, window_bounds = array<i64: 32, 64>}, {pipeline_mode = #tpu.pipeline_mode<synchronous>, transform_indices = @transform_10, window_bounds = array<i64: 1, 64>}, {pipeline_mode = #tpu.pipeline_mode<synchronous>, transform_indices = @transform_11, window_bounds = array<i64: 1, 64>}, {pipeline_mode = #tpu.pipeline_mode<synchronous>, transform_indices = @transform_12, window_bounds = array<i64: 9, 64, 64>}, {pipeline_mode = #tpu.pipeline_mode<synchronous>, transform_indices = @transform_13, window_bounds = array<i64: 1, 64>}, {pipeline_mode = #tpu.pipeline_mode<synchronous>, transform_indices = @transform_14, window_bounds = array<i64: 32, 64>}, {pipeline_mode = #tpu.pipeline_mode<synchronous>, transform_indices = @transform_15, window_bounds = array<i64: 1, 64>}, {transform_indices = @transform_16, window_bounds = array<i64: 1, 8, 8, 64>}]} {
    %c0 = arith.constant 0 : index
    %c0_0 = arith.constant 0 : index
    %c0_1 = arith.constant 0 : index
    %c0_2 = arith.constant 0 : index
    %0 = vector.load %arg1[%c0, %c0_0, %c0_1, %c0_2] : memref<1x8x8x32xf32, #tpu.memory_space<vmem>>, vector<1x8x8x32xf32>
    %1 = vector.shape_cast %0 : vector<1x8x8x32xf32> to vector<8x8x32xf32>
    %cst = arith.constant dense<0.000000e+00> : vector<8x32xf32>
    %2 = vector.multi_reduction <add>, %1, %cst [0] : vector<8x8x32xf32> to vector<8x32xf32>
    %cst_3 = arith.constant dense<0.000000e+00> : vector<32xf32>
    %3 = vector.multi_reduction <add>, %2, %cst_3 [0] : vector<8x32xf32> to vector<32xf32>
    %4 = vector.shape_cast %3 : vector<32xf32> to vector<1x32xf32>
    %cst_4 = arith.constant 1.562500e-02 : f32
    %5 = vector.broadcast %cst_4 : f32 to vector<1x32xf32>
    %6 = arith.mulf %4, %5 : vector<1x32xf32>
    %c0_5 = arith.constant 0 : index
    %c0_6 = arith.constant 0 : index
    %7 = vector.load %arg3[%c0_5, %c0_6] : memref<32x32xf32, #tpu.memory_space<vmem>>, vector<32x32xf32>
    %cst_7 = arith.constant dense<0.000000e+00> : vector<1x32xf32>
    %8 = tpu.matmul %6, %7, %cst_7 {dimension_numbers = #tpu.dot_dimension_numbers<[1], [0], [0], [1], [0, 0, 1, 1], [], []>} : vector<1x32xf32>, vector<32x32xf32>, vector<1x32xf32> -> vector<1x32xf32>
    %c0_8 = arith.constant 0 : index
    %c0_9 = arith.constant 0 : index
    %9 = vector.load %arg4[%c0_8, %c0_9] : memref<32x32xf32, #tpu.memory_space<vmem>>, vector<32x32xf32>
    %cst_10 = arith.constant dense<0.000000e+00> : vector<1x32xf32>
    %10 = tpu.matmul %8, %9, %cst_10 {dimension_numbers = #tpu.dot_dimension_numbers<[1], [0], [0], [1], [0, 0, 1, 1], [], []>} : vector<1x32xf32>, vector<32x32xf32>, vector<1x32xf32> -> vector<1x32xf32>
    %11 = vector.shape_cast %10 : vector<1x32xf32> to vector<1x1x32xf32>
    %12 = vector.broadcast %11 : vector<1x1x32xf32> to vector<8x8x32xf32>
    %13 = arith.subf %1, %12 : vector<8x8x32xf32>
    %14 = arith.mulf %13, %13 : vector<8x8x32xf32>
    %cst_11 = arith.constant dense<0.000000e+00> : vector<8x32xf32>
    %15 = vector.multi_reduction <add>, %14, %cst_11 [0] : vector<8x8x32xf32> to vector<8x32xf32>
    %cst_12 = arith.constant dense<0.000000e+00> : vector<32xf32>
    %16 = vector.multi_reduction <add>, %15, %cst_12 [0] : vector<8x32xf32> to vector<32xf32>
    %17 = vector.shape_cast %16 : vector<32xf32> to vector<1x32xf32>
    %cst_13 = arith.constant 1.562500e-02 : f32
    %18 = vector.broadcast %cst_13 : f32 to vector<1x32xf32>
    %19 = arith.mulf %17, %18 : vector<1x32xf32>
    %c0_14 = arith.constant 0 : index
    %c0_15 = arith.constant 0 : index
    %20 = vector.load %arg3[%c0_14, %c0_15] : memref<32x32xf32, #tpu.memory_space<vmem>>, vector<32x32xf32>
    %cst_16 = arith.constant dense<0.000000e+00> : vector<1x32xf32>
    %21 = tpu.matmul %19, %20, %cst_16 {dimension_numbers = #tpu.dot_dimension_numbers<[1], [0], [0], [1], [0, 0, 1, 1], [], []>} : vector<1x32xf32>, vector<32x32xf32>, vector<1x32xf32> -> vector<1x32xf32>
    %c0_17 = arith.constant 0 : index
    %c0_18 = arith.constant 0 : index
    %22 = vector.load %arg4[%c0_17, %c0_18] : memref<32x32xf32, #tpu.memory_space<vmem>>, vector<32x32xf32>
    %cst_19 = arith.constant dense<0.000000e+00> : vector<1x32xf32>
    %23 = tpu.matmul %21, %22, %cst_19 {dimension_numbers = #tpu.dot_dimension_numbers<[1], [0], [0], [1], [0, 0, 1, 1], [], []>} : vector<1x32xf32>, vector<32x32xf32>, vector<1x32xf32> -> vector<1x32xf32>
    %cst_20 = arith.constant 9.99999974E-6 : f32
    %24 = vector.broadcast %cst_20 : f32 to vector<1x32xf32>
    %25 = arith.addf %23, %24 : vector<1x32xf32>
    %26 = math.rsqrt %25 : vector<1x32xf32>
    %c0_21 = arith.constant 0 : index
    %c0_22 = arith.constant 0 : index
    %27 = vector.load %arg5[%c0_21, %c0_22] : memref<1x32xf32, #tpu.memory_space<vmem>>, vector<1x32xf32>
    %28 = arith.mulf %26, %27 : vector<1x32xf32>
    %29 = vector.shape_cast %28 : vector<1x32xf32> to vector<1x1x32xf32>
    %30 = vector.broadcast %29 : vector<1x1x32xf32> to vector<8x8x32xf32>
    %31 = arith.mulf %13, %30 : vector<8x8x32xf32>
    %c0_23 = arith.constant 0 : index
    %c0_24 = arith.constant 0 : index
    %32 = vector.load %arg6[%c0_23, %c0_24] : memref<1x32xf32, #tpu.memory_space<vmem>>, vector<1x32xf32>
    %33 = vector.shape_cast %32 : vector<1x32xf32> to vector<1x1x32xf32>
    %34 = vector.broadcast %33 : vector<1x1x32xf32> to vector<8x8x32xf32>
    %35 = arith.addf %31, %34 : vector<8x8x32xf32>
    %cst_25 = arith.constant 0.000000e+00 : f32
    %36 = vector.broadcast %cst_25 : f32 to vector<8x8x32xf32>
    %37 = arith.cmpf ogt, %35, %36 : vector<8x8x32xf32>
    %38 = math.exp %35 : vector<8x8x32xf32>
    %cst_26 = arith.constant 1.000000e+00 : f32
    %39 = vector.broadcast %cst_26 : f32 to vector<8x8x32xf32>
    %40 = arith.subf %38, %39 : vector<8x8x32xf32>
    %cst_27 = arith.constant 1.67326319 : f32
    %41 = vector.broadcast %cst_27 : f32 to vector<8x8x32xf32>
    %42 = arith.mulf %41, %40 : vector<8x8x32xf32>
    %43 = arith.select %37, %35, %42 : vector<8x8x32xi1>, vector<8x8x32xf32>
    %cst_28 = arith.constant 1.05070102 : f32
    %44 = vector.broadcast %cst_28 : f32 to vector<8x8x32xf32>
    %45 = arith.mulf %44, %43 : vector<8x8x32xf32>
    %cst_29 = arith.constant 0.000000e+00 : f32
    %46 = vector.broadcast %cst_29 : f32 to vector<8x8x32xf32>
    %47 = tpu.concatenate %45, %46 in 1 : vector<8x8x32xf32>, vector<8x8x32xf32> -> vector<8x16x32xf32>
    %48 = vector.shape_cast %47 : vector<8x16x32xf32> to vector<128x32xf32>
    %49 = arith.truncf %48 : vector<128x32xf32> to vector<128x32xbf16>
    %cst_30 = arith.constant 0.000000e+00 : bf16
    %50 = vector.broadcast %cst_30 : bf16 to vector<24x32xbf16>
    %c0_31 = arith.constant 0 : index
    %c0_32 = arith.constant 0 : index
    %51 = vector.load %arg18[%c0_31, %c0_32] : memref<176x32xbf16, #tpu.memory_space<vmem>>, vector<24x32xbf16>
    tpu.vector_store %arg18[%c0_31, %c0_32], %50 {strides = array<i32>} : memref<176x32xbf16, #tpu.memory_space<vmem>>, vector<24x32xbf16>,
    %cst_33 = arith.constant 0.000000e+00 : bf16
    %52 = vector.broadcast %cst_33 : bf16 to vector<24x32xbf16>
    %c152 = arith.constant 152 : index
    %c0_34 = arith.constant 0 : index
    %53 = vector.load %arg18[%c152, %c0_34] : memref<176x32xbf16, #tpu.memory_space<vmem>>, vector<24x32xbf16>
    tpu.vector_store %arg18[%c152, %c0_34], %52 {strides = array<i32>} : memref<176x32xbf16, #tpu.memory_space<vmem>>, vector<24x32xbf16>,
    %c24 = arith.constant 24 : index
    %c0_35 = arith.constant 0 : index
    %54 = vector.load %arg18[%c24, %c0_35] : memref<176x32xbf16, #tpu.memory_space<vmem>>, vector<128x32xbf16>
    tpu.vector_store %arg18[%c24, %c0_35], %49 {strides = array<i32>} : memref<176x32xbf16, #tpu.memory_space<vmem>>, vector<128x32xbf16>,
    %c0_36 = arith.constant 0 : index
    %c0_37 = arith.constant 0 : index
    %55 = vector.load %arg8[%c0_36, %c0_37] : memref<1x64xf32, #tpu.memory_space<vmem>>, vector<1x64xf32>
    %c7 = arith.constant 7 : index
    %c0_38 = arith.constant 0 : index
    %56 = vector.load %arg18[%c7, %c0_38] : memref<176x32xbf16, #tpu.memory_space<vmem>>, vector<128x32xbf16>
    %c0_39 = arith.constant 0 : index
    %c0_40 = arith.constant 0 : index
    %c0_41 = arith.constant 0 : index
    %57 = vector.load %arg7[%c0_39, %c0_40, %c0_41] : memref<9x32x64xbf16, #tpu.memory_space<vmem>>, vector<1x32x64xbf16>
    %58 = vector.shape_cast %57 : vector<1x32x64xbf16> to vector<32x64xbf16>
    %cst_42 = arith.constant dense<0.000000e+00> : vector<128x64xf32>
    %59 = tpu.matmul %56, %58, %cst_42 {dimension_numbers = #tpu.dot_dimension_numbers<[1], [0], [0], [1], [0, 0, 1, 1], [], []>} : vector<128x32xbf16>, vector<32x64xbf16>, vector<128x64xf32> -> vector<128x64xf32>
    %c8 = arith.constant 8 : index
    %c0_43 = arith.constant 0 : index
    %60 = vector.load %arg18[%c8, %c0_43] : memref<176x32xbf16, #tpu.memory_space<vmem>>, vector<128x32xbf16>
    %c1 = arith.constant 1 : index
    %c0_44 = arith.constant 0 : index
    %c0_45 = arith.constant 0 : index
    %61 = vector.load %arg7[%c1, %c0_44, %c0_45] : memref<9x32x64xbf16, #tpu.memory_space<vmem>>, vector<1x32x64xbf16>
    %62 = vector.shape_cast %61 : vector<1x32x64xbf16> to vector<32x64xbf16>
    %cst_46 = arith.constant dense<0.000000e+00> : vector<128x64xf32>
    %63 = tpu.matmul %60, %62, %cst_46 {dimension_numbers = #tpu.dot_dimension_numbers<[1], [0], [0], [1], [0, 0, 1, 1], [], []>} : vector<128x32xbf16>, vector<32x64xbf16>, vector<128x64xf32> -> vector<128x64xf32>
    %64 = arith.addf %59, %63 : vector<128x64xf32>
    %c9 = arith.constant 9 : index
    %c0_47 = arith.constant 0 : index
    %65 = vector.load %arg18[%c9, %c0_47] : memref<176x32xbf16, #tpu.memory_space<vmem>>, vector<128x32xbf16>
    %c2 = arith.constant 2 : index
    %c0_48 = arith.constant 0 : index
    %c0_49 = arith.constant 0 : index
    %66 = vector.load %arg7[%c2, %c0_48, %c0_49] : memref<9x32x64xbf16, #tpu.memory_space<vmem>>, vector<1x32x64xbf16>
    %67 = vector.shape_cast %66 : vector<1x32x64xbf16> to vector<32x64xbf16>
    %cst_50 = arith.constant dense<0.000000e+00> : vector<128x64xf32>
    %68 = tpu.matmul %65, %67, %cst_50 {dimension_numbers = #tpu.dot_dimension_numbers<[1], [0], [0], [1], [0, 0, 1, 1], [], []>} : vector<128x32xbf16>, vector<32x64xbf16>, vector<128x64xf32> -> vector<128x64xf32>
    %69 = arith.addf %64, %68 : vector<128x64xf32>
    %c23 = arith.constant 23 : index
    %c0_51 = arith.constant 0 : index
    %70 = vector.load %arg18[%c23, %c0_51] : memref<176x32xbf16, #tpu.memory_space<vmem>>, vector<128x32xbf16>
    %c3 = arith.constant 3 : index
    %c0_52 = arith.constant 0 : index
    %c0_53 = arith.constant 0 : index
    %71 = vector.load %arg7[%c3, %c0_52, %c0_53] : memref<9x32x64xbf16, #tpu.memory_space<vmem>>, vector<1x32x64xbf16>
    %72 = vector.shape_cast %71 : vector<1x32x64xbf16> to vector<32x64xbf16>
    %cst_54 = arith.constant dense<0.000000e+00> : vector<128x64xf32>
    %73 = tpu.matmul %70, %72, %cst_54 {dimension_numbers = #tpu.dot_dimension_numbers<[1], [0], [0], [1], [0, 0, 1, 1], [], []>} : vector<128x32xbf16>, vector<32x64xbf16>, vector<128x64xf32> -> vector<128x64xf32>
    %74 = arith.addf %69, %73 : vector<128x64xf32>
    %c24_55 = arith.constant 24 : index
    %c0_56 = arith.constant 0 : index
    %75 = vector.load %arg18[%c24_55, %c0_56] : memref<176x32xbf16, #tpu.memory_space<vmem>>, vector<128x32xbf16>
    %c4 = arith.constant 4 : index
    %c0_57 = arith.constant 0 : index
    %c0_58 = arith.constant 0 : index
    %76 = vector.load %arg7[%c4, %c0_57, %c0_58] : memref<9x32x64xbf16, #tpu.memory_space<vmem>>, vector<1x32x64xbf16>
    %77 = vector.shape_cast %76 : vector<1x32x64xbf16> to vector<32x64xbf16>
    %cst_59 = arith.constant dense<0.000000e+00> : vector<128x64xf32>
    %78 = tpu.matmul %75, %77, %cst_59 {dimension_numbers = #tpu.dot_dimension_numbers<[1], [0], [0], [1], [0, 0, 1, 1], [], []>} : vector<128x32xbf16>, vector<32x64xbf16>, vector<128x64xf32> -> vector<128x64xf32>
    %79 = arith.addf %74, %78 : vector<128x64xf32>
    %c25 = arith.constant 25 : index
    %c0_60 = arith.constant 0 : index
    %80 = vector.load %arg18[%c25, %c0_60] : memref<176x32xbf16, #tpu.memory_space<vmem>>, vector<128x32xbf16>
    %c5 = arith.constant 5 : index
    %c0_61 = arith.constant 0 : index
    %c0_62 = arith.constant 0 : index
    %81 = vector.load %arg7[%c5, %c0_61, %c0_62] : memref<9x32x64xbf16, #tpu.memory_space<vmem>>, vector<1x32x64xbf16>
    %82 = vector.shape_cast %81 : vector<1x32x64xbf16> to vector<32x64xbf16>
    %cst_63 = arith.constant dense<0.000000e+00> : vector<128x64xf32>
    %83 = tpu.matmul %80, %82, %cst_63 {dimension_numbers = #tpu.dot_dimension_numbers<[1], [0], [0], [1], [0, 0, 1, 1], [], []>} : vector<128x32xbf16>, vector<32x64xbf16>, vector<128x64xf32> -> vector<128x64xf32>
    %84 = arith.addf %79, %83 : vector<128x64xf32>
    %c39 = arith.constant 39 : index
    %c0_64 = arith.constant 0 : index
    %85 = vector.load %arg18[%c39, %c0_64] : memref<176x32xbf16, #tpu.memory_space<vmem>>, vector<128x32xbf16>
    %c6 = arith.constant 6 : index
    %c0_65 = arith.constant 0 : index
    %c0_66 = arith.constant 0 : index
    %86 = vector.load %arg7[%c6, %c0_65, %c0_66] : memref<9x32x64xbf16, #tpu.memory_space<vmem>>, vector<1x32x64xbf16>
    %87 = vector.shape_cast %86 : vector<1x32x64xbf16> to vector<32x64xbf16>
    %cst_67 = arith.constant dense<0.000000e+00> : vector<128x64xf32>
    %88 = tpu.matmul %85, %87, %cst_67 {dimension_numbers = #tpu.dot_dimension_numbers<[1], [0], [0], [1], [0, 0, 1, 1], [], []>} : vector<128x32xbf16>, vector<32x64xbf16>, vector<128x64xf32> -> vector<128x64xf32>
    %89 = arith.addf %84, %88 : vector<128x64xf32>
    %c40 = arith.constant 40 : index
    %c0_68 = arith.constant 0 : index
    %90 = vector.load %arg18[%c40, %c0_68] : memref<176x32xbf16, #tpu.memory_space<vmem>>, vector<128x32xbf16>
    %c7_69 = arith.constant 7 : index
    %c0_70 = arith.constant 0 : index
    %c0_71 = arith.constant 0 : index
    %91 = vector.load %arg7[%c7_69, %c0_70, %c0_71] : memref<9x32x64xbf16, #tpu.memory_space<vmem>>, vector<1x32x64xbf16>
    %92 = vector.shape_cast %91 : vector<1x32x64xbf16> to vector<32x64xbf16>
    %cst_72 = arith.constant dense<0.000000e+00> : vector<128x64xf32>
    %93 = tpu.matmul %90, %92, %cst_72 {dimension_numbers = #tpu.dot_dimension_numbers<[1], [0], [0], [1], [0, 0, 1, 1], [], []>} : vector<128x32xbf16>, vector<32x64xbf16>, vector<128x64xf32> -> vector<128x64xf32>
    %94 = arith.addf %89, %93 : vector<128x64xf32>
    %c41 = arith.constant 41 : index
    %c0_73 = arith.constant 0 : index
    %95 = vector.load %arg18[%c41, %c0_73] : memref<176x32xbf16, #tpu.memory_space<vmem>>, vector<128x32xbf16>
    %c8_74 = arith.constant 8 : index
    %c0_75 = arith.constant 0 : index
    %c0_76 = arith.constant 0 : index
    %96 = vector.load %arg7[%c8_74, %c0_75, %c0_76] : memref<9x32x64xbf16, #tpu.memory_space<vmem>>, vector<1x32x64xbf16>
    %97 = vector.shape_cast %96 : vector<1x32x64xbf16> to vector<32x64xbf16>
    %cst_77 = arith.constant dense<0.000000e+00> : vector<128x64xf32>
    %98 = tpu.matmul %95, %97, %cst_77 {dimension_numbers = #tpu.dot_dimension_numbers<[1], [0], [0], [1], [0, 0, 1, 1], [], []>} : vector<128x32xbf16>, vector<32x64xbf16>, vector<128x64xf32> -> vector<128x64xf32>
    %99 = arith.addf %94, %98 : vector<128x64xf32>
    %100 = vector.broadcast %55 : vector<1x64xf32> to vector<128x64xf32>
    %101 = arith.addf %99, %100 : vector<128x64xf32>
    %c0_78 = arith.constant 0 : index
    %c0_79 = arith.constant 0 : index
    %102 = vector.load %arg2[%c0_78, %c0_79] : memref<128x1xf32, #tpu.memory_space<vmem>>, vector<128x1xf32>
    %103 = vector.broadcast %102 : vector<128x1xf32> to vector<128x64xf32>
    %104 = arith.mulf %101, %103 : vector<128x64xf32>
    %cst_80 = arith.constant dense<0.000000e+00> : vector<64xf32>
    %105 = vector.multi_reduction <add>, %104, %cst_80 [0] : vector<128x64xf32> to vector<64xf32>
    %106 = vector.shape_cast %105 : vector<64xf32> to vector<1x64xf32>
    %cst_81 = arith.constant 1.562500e-02 : f32
    %107 = vector.broadcast %cst_81 : f32 to vector<1x64xf32>
    %108 = arith.mulf %106, %107 : vector<1x64xf32>
    %c0_82 = arith.constant 0 : index
    %c0_83 = arith.constant 0 : index
    %109 = vector.load %arg9[%c0_82, %c0_83] : memref<64x32xf32, #tpu.memory_space<vmem>>, vector<64x32xf32>
    %cst_84 = arith.constant dense<0.000000e+00> : vector<1x32xf32>
    %110 = tpu.matmul %108, %109, %cst_84 {dimension_numbers = #tpu.dot_dimension_numbers<[1], [0], [0], [1], [0, 0, 1, 1], [], []>} : vector<1x64xf32>, vector<64x32xf32>, vector<1x32xf32> -> vector<1x32xf32>
    %c0_85 = arith.constant 0 : index
    %c0_86 = arith.constant 0 : index
    %111 = vector.load %arg10[%c0_85, %c0_86] : memref<32x64xf32, #tpu.memory_space<vmem>>, vector<32x64xf32>
    %cst_87 = arith.constant dense<0.000000e+00> : vector<1x64xf32>
    %112 = tpu.matmul %110, %111, %cst_87 {dimension_numbers = #tpu.dot_dimension_numbers<[1], [0], [0], [1], [0, 0, 1, 1], [], []>} : vector<1x32xf32>, vector<32x64xf32>, vector<1x64xf32> -> vector<1x64xf32>
    %113 = vector.broadcast %112 : vector<1x64xf32> to vector<128x64xf32>
    %114 = arith.subf %101, %113 : vector<128x64xf32>
    %115 = vector.broadcast %102 : vector<128x1xf32> to vector<128x64xf32>
    %116 = arith.mulf %114, %115 : vector<128x64xf32>
    %117 = arith.mulf %116, %116 : vector<128x64xf32>
    %cst_88 = arith.constant dense<0.000000e+00> : vector<64xf32>
    %118 = vector.multi_reduction <add>, %117, %cst_88 [0] : vector<128x64xf32> to vector<64xf32>
    %119 = vector.shape_cast %118 : vector<64xf32> to vector<1x64xf32>
    %cst_89 = arith.constant 1.562500e-02 : f32
    %120 = vector.broadcast %cst_89 : f32 to vector<1x64xf32>
    %121 = arith.mulf %119, %120 : vector<1x64xf32>
    %c0_90 = arith.constant 0 : index
    %c0_91 = arith.constant 0 : index
    %122 = vector.load %arg9[%c0_90, %c0_91] : memref<64x32xf32, #tpu.memory_space<vmem>>, vector<64x32xf32>
    %cst_92 = arith.constant dense<0.000000e+00> : vector<1x32xf32>
    %123 = tpu.matmul %121, %122, %cst_92 {dimension_numbers = #tpu.dot_dimension_numbers<[1], [0], [0], [1], [0, 0, 1, 1], [], []>} : vector<1x64xf32>, vector<64x32xf32>, vector<1x32xf32> -> vector<1x32xf32>
    %c0_93 = arith.constant 0 : index
    %c0_94 = arith.constant 0 : index
    %124 = vector.load %arg10[%c0_93, %c0_94] : memref<32x64xf32, #tpu.memory_space<vmem>>, vector<32x64xf32>
    %cst_95 = arith.constant dense<0.000000e+00> : vector<1x64xf32>
    %125 = tpu.matmul %123, %124, %cst_95 {dimension_numbers = #tpu.dot_dimension_numbers<[1], [0], [0], [1], [0, 0, 1, 1], [], []>} : vector<1x32xf32>, vector<32x64xf32>, vector<1x64xf32> -> vector<1x64xf32>
    %cst_96 = arith.constant 9.99999974E-6 : f32
    %126 = vector.broadcast %cst_96 : f32 to vector<1x64xf32>
    %127 = arith.addf %125, %126 : vector<1x64xf32>
    %128 = math.rsqrt %127 : vector<1x64xf32>
    %c0_97 = arith.constant 0 : index
    %c0_98 = arith.constant 0 : index
    %129 = vector.load %arg11[%c0_97, %c0_98] : memref<1x64xf32, #tpu.memory_space<vmem>>, vector<1x64xf32>
    %130 = arith.mulf %128, %129 : vector<1x64xf32>
    %131 = vector.broadcast %130 : vector<1x64xf32> to vector<128x64xf32>
    %132 = arith.mulf %114, %131 : vector<128x64xf32>
    %c0_99 = arith.constant 0 : index
    %c0_100 = arith.constant 0 : index
    %133 = vector.load %arg12[%c0_99, %c0_100] : memref<1x64xf32, #tpu.memory_space<vmem>>, vector<1x64xf32>
    %134 = vector.broadcast %133 : vector<1x64xf32> to vector<128x64xf32>
    %135 = arith.addf %132, %134 : vector<128x64xf32>
    %136 = vector.broadcast %102 : vector<128x1xf32> to vector<128x64xf32>
    %137 = arith.mulf %135, %136 : vector<128x64xf32>
    %138 = arith.truncf %137 : vector<128x64xf32> to vector<128x64xbf16>
    %cst_101 = arith.constant 0.000000e+00 : bf16
    %139 = vector.broadcast %cst_101 : bf16 to vector<24x64xbf16>
    %c0_102 = arith.constant 0 : index
    %c0_103 = arith.constant 0 : index
    %140 = vector.load %arg19[%c0_102, %c0_103] : memref<176x64xbf16, #tpu.memory_space<vmem>>, vector<24x64xbf16>
    tpu.vector_store %arg19[%c0_102, %c0_103], %139 {strides = array<i32>} : memref<176x64xbf16, #tpu.memory_space<vmem>>, vector<24x64xbf16>,
    %cst_104 = arith.constant 0.000000e+00 : bf16
    %141 = vector.broadcast %cst_104 : bf16 to vector<24x64xbf16>
    %c152_105 = arith.constant 152 : index
    %c0_106 = arith.constant 0 : index
    %142 = vector.load %arg19[%c152_105, %c0_106] : memref<176x64xbf16, #tpu.memory_space<vmem>>, vector<24x64xbf16>
    tpu.vector_store %arg19[%c152_105, %c0_106], %141 {strides = array<i32>} : memref<176x64xbf16, #tpu.memory_space<vmem>>, vector<24x64xbf16>,
    %c24_107 = arith.constant 24 : index
    %c0_108 = arith.constant 0 : index
    %143 = vector.load %arg19[%c24_107, %c0_108] : memref<176x64xbf16, #tpu.memory_space<vmem>>, vector<128x64xbf16>
    tpu.vector_store %arg19[%c24_107, %c0_108], %138 {strides = array<i32>} : memref<176x64xbf16, #tpu.memory_space<vmem>>, vector<128x64xbf16>,
    %c0_109 = arith.constant 0 : index
    %c0_110 = arith.constant 0 : index
    %144 = vector.load %arg14[%c0_109, %c0_110] : memref<1x64xf32, #tpu.memory_space<vmem>>, vector<1x64xf32>
    %c7_111 = arith.constant 7 : index
    %c0_112 = arith.constant 0 : index
    %145 = vector.load %arg19[%c7_111, %c0_112] : memref<176x64xbf16, #tpu.memory_space<vmem>>, vector<128x64xbf16>
    %c0_113 = arith.constant 0 : index
    %c0_114 = arith.constant 0 : index
    %c0_115 = arith.constant 0 : index
    %146 = vector.load %arg13[%c0_113, %c0_114, %c0_115] : memref<9x64x64xbf16, #tpu.memory_space<vmem>>, vector<1x64x64xbf16>
    %147 = vector.shape_cast %146 : vector<1x64x64xbf16> to vector<64x64xbf16>
    %cst_116 = arith.constant dense<0.000000e+00> : vector<128x64xf32>
    %148 = tpu.matmul %145, %147, %cst_116 {dimension_numbers = #tpu.dot_dimension_numbers<[1], [0], [0], [1], [0, 0, 1, 1], [], []>} : vector<128x64xbf16>, vector<64x64xbf16>, vector<128x64xf32> -> vector<128x64xf32>
    %c8_117 = arith.constant 8 : index
    %c0_118 = arith.constant 0 : index
    %149 = vector.load %arg19[%c8_117, %c0_118] : memref<176x64xbf16, #tpu.memory_space<vmem>>, vector<128x64xbf16>
    %c1_119 = arith.constant 1 : index
    %c0_120 = arith.constant 0 : index
    %c0_121 = arith.constant 0 : index
    %150 = vector.load %arg13[%c1_119, %c0_120, %c0_121] : memref<9x64x64xbf16, #tpu.memory_space<vmem>>, vector<1x64x64xbf16>
    %151 = vector.shape_cast %150 : vector<1x64x64xbf16> to vector<64x64xbf16>
    %cst_122 = arith.constant dense<0.000000e+00> : vector<128x64xf32>
    %152 = tpu.matmul %149, %151, %cst_122 {dimension_numbers = #tpu.dot_dimension_numbers<[1], [0], [0], [1], [0, 0, 1, 1], [], []>} : vector<128x64xbf16>, vector<64x64xbf16>, vector<128x64xf32> -> vector<128x64xf32>
    %153 = arith.addf %148, %152 : vector<128x64xf32>
    %c9_123 = arith.constant 9 : index
    %c0_124 = arith.constant 0 : index
    %154 = vector.load %arg19[%c9_123, %c0_124] : memref<176x64xbf16, #tpu.memory_space<vmem>>, vector<128x64xbf16>
    %c2_125 = arith.constant 2 : index
    %c0_126 = arith.constant 0 : index
    %c0_127 = arith.constant 0 : index
    %155 = vector.load %arg13[%c2_125, %c0_126, %c0_127] : memref<9x64x64xbf16, #tpu.memory_space<vmem>>, vector<1x64x64xbf16>
    %156 = vector.shape_cast %155 : vector<1x64x64xbf16> to vector<64x64xbf16>
    %cst_128 = arith.constant dense<0.000000e+00> : vector<128x64xf32>
    %157 = tpu.matmul %154, %156, %cst_128 {dimension_numbers = #tpu.dot_dimension_numbers<[1], [0], [0], [1], [0, 0, 1, 1], [], []>} : vector<128x64xbf16>, vector<64x64xbf16>, vector<128x64xf32> -> vector<128x64xf32>
    %158 = arith.addf %153, %157 : vector<128x64xf32>
    %c23_129 = arith.constant 23 : index
    %c0_130 = arith.constant 0 : index
    %159 = vector.load %arg19[%c23_129, %c0_130] : memref<176x64xbf16, #tpu.memory_space<vmem>>, vector<128x64xbf16>
    %c3_131 = arith.constant 3 : index
    %c0_132 = arith.constant 0 : index
    %c0_133 = arith.constant 0 : index
    %160 = vector.load %arg13[%c3_131, %c0_132, %c0_133] : memref<9x64x64xbf16, #tpu.memory_space<vmem>>, vector<1x64x64xbf16>
    %161 = vector.shape_cast %160 : vector<1x64x64xbf16> to vector<64x64xbf16>
    %cst_134 = arith.constant dense<0.000000e+00> : vector<128x64xf32>
    %162 = tpu.matmul %159, %161, %cst_134 {dimension_numbers = #tpu.dot_dimension_numbers<[1], [0], [0], [1], [0, 0, 1, 1], [], []>} : vector<128x64xbf16>, vector<64x64xbf16>, vector<128x64xf32> -> vector<128x64xf32>
    %163 = arith.addf %158, %162 : vector<128x64xf32>
    %c24_135 = arith.constant 24 : index
    %c0_136 = arith.constant 0 : index
    %164 = vector.load %arg19[%c24_135, %c0_136] : memref<176x64xbf16, #tpu.memory_space<vmem>>, vector<128x64xbf16>
    %c4_137 = arith.constant 4 : index
    %c0_138 = arith.constant 0 : index
    %c0_139 = arith.constant 0 : index
    %165 = vector.load %arg13[%c4_137, %c0_138, %c0_139] : memref<9x64x64xbf16, #tpu.memory_space<vmem>>, vector<1x64x64xbf16>
    %166 = vector.shape_cast %165 : vector<1x64x64xbf16> to vector<64x64xbf16>
    %cst_140 = arith.constant dense<0.000000e+00> : vector<128x64xf32>
    %167 = tpu.matmul %164, %166, %cst_140 {dimension_numbers = #tpu.dot_dimension_numbers<[1], [0], [0], [1], [0, 0, 1, 1], [], []>} : vector<128x64xbf16>, vector<64x64xbf16>, vector<128x64xf32> -> vector<128x64xf32>
    %168 = arith.addf %163, %167 : vector<128x64xf32>
    %c25_141 = arith.constant 25 : index
    %c0_142 = arith.constant 0 : index
    %169 = vector.load %arg19[%c25_141, %c0_142] : memref<176x64xbf16, #tpu.memory_space<vmem>>, vector<128x64xbf16>
    %c5_143 = arith.constant 5 : index
    %c0_144 = arith.constant 0 : index
    %c0_145 = arith.constant 0 : index
    %170 = vector.load %arg13[%c5_143, %c0_144, %c0_145] : memref<9x64x64xbf16, #tpu.memory_space<vmem>>, vector<1x64x64xbf16>
    %171 = vector.shape_cast %170 : vector<1x64x64xbf16> to vector<64x64xbf16>
    %cst_146 = arith.constant dense<0.000000e+00> : vector<128x64xf32>
    %172 = tpu.matmul %169, %171, %cst_146 {dimension_numbers = #tpu.dot_dimension_numbers<[1], [0], [0], [1], [0, 0, 1, 1], [], []>} : vector<128x64xbf16>, vector<64x64xbf16>, vector<128x64xf32> -> vector<128x64xf32>
    %173 = arith.addf %168, %172 : vector<128x64xf32>
    %c39_147 = arith.constant 39 : index
    %c0_148 = arith.constant 0 : index
    %174 = vector.load %arg19[%c39_147, %c0_148] : memref<176x64xbf16, #tpu.memory_space<vmem>>, vector<128x64xbf16>
    %c6_149 = arith.constant 6 : index
    %c0_150 = arith.constant 0 : index
    %c0_151 = arith.constant 0 : index
    %175 = vector.load %arg13[%c6_149, %c0_150, %c0_151] : memref<9x64x64xbf16, #tpu.memory_space<vmem>>, vector<1x64x64xbf16>
    %176 = vector.shape_cast %175 : vector<1x64x64xbf16> to vector<64x64xbf16>
    %cst_152 = arith.constant dense<0.000000e+00> : vector<128x64xf32>
    %177 = tpu.matmul %174, %176, %cst_152 {dimension_numbers = #tpu.dot_dimension_numbers<[1], [0], [0], [1], [0, 0, 1, 1], [], []>} : vector<128x64xbf16>, vector<64x64xbf16>, vector<128x64xf32> -> vector<128x64xf32>
    %178 = arith.addf %173, %177 : vector<128x64xf32>
    %c40_153 = arith.constant 40 : index
    %c0_154 = arith.constant 0 : index
    %179 = vector.load %arg19[%c40_153, %c0_154] : memref<176x64xbf16, #tpu.memory_space<vmem>>, vector<128x64xbf16>
    %c7_155 = arith.constant 7 : index
    %c0_156 = arith.constant 0 : index
    %c0_157 = arith.constant 0 : index
    %180 = vector.load %arg13[%c7_155, %c0_156, %c0_157] : memref<9x64x64xbf16, #tpu.memory_space<vmem>>, vector<1x64x64xbf16>
    %181 = vector.shape_cast %180 : vector<1x64x64xbf16> to vector<64x64xbf16>
    %cst_158 = arith.constant dense<0.000000e+00> : vector<128x64xf32>
    %182 = tpu.matmul %179, %181, %cst_158 {dimension_numbers = #tpu.dot_dimension_numbers<[1], [0], [0], [1], [0, 0, 1, 1], [], []>} : vector<128x64xbf16>, vector<64x64xbf16>, vector<128x64xf32> -> vector<128x64xf32>
    %183 = arith.addf %178, %182 : vector<128x64xf32>
    %c41_159 = arith.constant 41 : index
    %c0_160 = arith.constant 0 : index
    %184 = vector.load %arg19[%c41_159, %c0_160] : memref<176x64xbf16, #tpu.memory_space<vmem>>, vector<128x64xbf16>
    %c8_161 = arith.constant 8 : index
    %c0_162 = arith.constant 0 : index
    %c0_163 = arith.constant 0 : index
    %185 = vector.load %arg13[%c8_161, %c0_162, %c0_163] : memref<9x64x64xbf16, #tpu.memory_space<vmem>>, vector<1x64x64xbf16>
    %186 = vector.shape_cast %185 : vector<1x64x64xbf16> to vector<64x64xbf16>
    %cst_164 = arith.constant dense<0.000000e+00> : vector<128x64xf32>
    %187 = tpu.matmul %184, %186, %cst_164 {dimension_numbers = #tpu.dot_dimension_numbers<[1], [0], [0], [1], [0, 0, 1, 1], [], []>} : vector<128x64xbf16>, vector<64x64xbf16>, vector<128x64xf32> -> vector<128x64xf32>
    %188 = arith.addf %183, %187 : vector<128x64xf32>
    %189 = vector.broadcast %144 : vector<1x64xf32> to vector<128x64xf32>
    %190 = arith.addf %188, %189 : vector<128x64xf32>
    %191 = vector.shape_cast %190 : vector<128x64xf32> to vector<8x16x64xf32>
    %192 = vector.extract_strided_slice %191 {offsets = [0, 0, 0], sizes = [8, 8, 64], strides = [1, 1, 1]} : vector<8x16x64xf32> to vector<8x8x64xf32>
    %c0_165 = arith.constant 0 : index
    %c0_166 = arith.constant 0 : index
    %c0_167 = arith.constant 0 : index
    %c0_168 = arith.constant 0 : index
    %193 = vector.load %arg1[%c0_165, %c0_166, %c0_167, %c0_168] : memref<1x8x8x32xf32, #tpu.memory_space<vmem>>, vector<1x8x8x32xf32>
    %194 = vector.shape_cast %193 : vector<1x8x8x32xf32> to vector<8x8x32xf32>
    %cst_169 = arith.constant 0.000000e+00 : f32
    %195 = vector.broadcast %cst_169 : f32 to vector<8x8x32xf32>
    %196 = tpu.concatenate %194, %195 in 1 : vector<8x8x32xf32>, vector<8x8x32xf32> -> vector<8x16x32xf32>
    %197 = vector.shape_cast %196 : vector<8x16x32xf32> to vector<128x32xf32>
    %c0_170 = arith.constant 0 : index
    %c0_171 = arith.constant 0 : index
    %198 = vector.load %arg15[%c0_170, %c0_171] : memref<32x64xf32, #tpu.memory_space<vmem>>, vector<32x64xf32>
    %cst_172 = arith.constant dense<0.000000e+00> : vector<128x64xf32>
    %199 = tpu.matmul %197, %198, %cst_172 {dimension_numbers = #tpu.dot_dimension_numbers<[1], [0], [0], [1], [0, 0, 1, 1], [], []>} : vector<128x32xf32>, vector<32x64xf32>, vector<128x64xf32> -> vector<128x64xf32>
    %c0_173 = arith.constant 0 : index
    %c0_174 = arith.constant 0 : index
    %200 = vector.load %arg16[%c0_173, %c0_174] : memref<1x64xf32, #tpu.memory_space<vmem>>, vector<1x64xf32>
    %201 = vector.broadcast %200 : vector<1x64xf32> to vector<128x64xf32>
    %202 = arith.addf %199, %201 : vector<128x64xf32>
    %203 = vector.shape_cast %202 : vector<128x64xf32> to vector<8x16x64xf32>
    %204 = vector.extract_strided_slice %203 {offsets = [0, 0, 0], sizes = [8, 8, 64], strides = [1, 1, 1]} : vector<8x16x64xf32> to vector<8x8x64xf32>
    %205 = arith.addf %192, %204 : vector<8x8x64xf32>
    %c0_175 = arith.constant 0 : index
    %c0_176 = arith.constant 0 : index
    %c0_177 = arith.constant 0 : index
    %c0_178 = arith.constant 0 : index
    %206 = vector.load %arg17[%c0_175, %c0_176, %c0_177, %c0_178] : memref<1x8x8x64xf32, #tpu.memory_space<vmem>>, vector<1x8x8x64xf32>
    %207 = vector.shape_cast %206 : vector<1x8x8x64xf32> to vector<8x8x64xf32>
    %208 = vector.shape_cast %205 : vector<8x8x64xf32> to vector<1x8x8x64xf32>
    tpu.vector_store %arg17[%c0_175, %c0_176, %c0_177, %c0_178], %208 {strides = array<i32>} : memref<1x8x8x64xf32, #tpu.memory_space<vmem>>, vector<1x8x8x64xf32>,
    return
  }
  func.func @transform_0(%arg0: i32) -> (i32, i32, i32, i32) {
    %c0_i32 = arith.constant 0 : i32
    %c0_i32_0 = arith.constant 0 : i32
    %c0_i32_1 = arith.constant 0 : i32
    %c0_i32_2 = arith.constant 0 : i32
    return %arg0, %c0_i32, %c0_i32_0, %c0_i32_1 : i32, i32, i32, i32
  }
  func.func @transform_1(%arg0: i32) -> (i32, i32) {
    %c0_i32 = arith.constant 0 : i32
    %c0_i32_0 = arith.constant 0 : i32
    %c0_i32_1 = arith.constant 0 : i32
    return %c0_i32, %c0_i32_0 : i32, i32
  }
  func.func @transform_2(%arg0: i32) -> (i32, i32) {
    %c0_i32 = arith.constant 0 : i32
    %c0_i32_0 = arith.constant 0 : i32
    %c0_i32_1 = arith.constant 0 : i32
    return %c0_i32, %c0_i32_0 : i32, i32
  }
  func.func @transform_3(%arg0: i32) -> (i32, i32) {
    %c0_i32 = arith.constant 0 : i32
    %c0_i32_0 = arith.constant 0 : i32
    %c0_i32_1 = arith.constant 0 : i32
    return %c0_i32, %c0_i32_0 : i32, i32
  }
  func.func @transform_4(%arg0: i32) -> (i32, i32) {
    %c0_i32 = arith.constant 0 : i32
    %c0_i32_0 = arith.constant 0 : i32
    %c0_i32_1 = arith.constant 0 : i32
    return %c0_i32, %c0_i32_0 : i32, i32
  }
  func.func @transform_5(%arg0: i32) -> (i32, i32) {
    %c0_i32 = arith.constant 0 : i32
    %c0_i32_0 = arith.constant 0 : i32
    %c0_i32_1 = arith.constant 0 : i32
    return %c0_i32, %c0_i32_0 : i32, i32
  }
  func.func @transform_6(%arg0: i32) -> (i32, i32, i32) {
    %c0_i32 = arith.constant 0 : i32
    %c0_i32_0 = arith.constant 0 : i32
    %c0_i32_1 = arith.constant 0 : i32
    %c0_i32_2 = arith.constant 0 : i32
    return %c0_i32, %c0_i32_0, %c0_i32_1 : i32, i32, i32
  }
  func.func @transform_7(%arg0: i32) -> (i32, i32) {
    %c0_i32 = arith.constant 0 : i32
    %c0_i32_0 = arith.constant 0 : i32
    %c0_i32_1 = arith.constant 0 : i32
    return %c0_i32, %c0_i32_0 : i32, i32
  }
  func.func @transform_8(%arg0: i32) -> (i32, i32) {
    %c0_i32 = arith.constant 0 : i32
    %c0_i32_0 = arith.constant 0 : i32
    %c0_i32_1 = arith.constant 0 : i32
    return %c0_i32, %c0_i32_0 : i32, i32
  }
  func.func @transform_9(%arg0: i32) -> (i32, i32) {
    %c0_i32 = arith.constant 0 : i32
    %c0_i32_0 = arith.constant 0 : i32
    %c0_i32_1 = arith.constant 0 : i32
    return %c0_i32, %c0_i32_0 : i32, i32
  }
  func.func @transform_10(%arg0: i32) -> (i32, i32) {
    %c0_i32 = arith.constant 0 : i32
    %c0_i32_0 = arith.constant 0 : i32
    %c0_i32_1 = arith.constant 0 : i32
    return %c0_i32, %c0_i32_0 : i32, i32
  }
  func.func @transform_11(%arg0: i32) -> (i32, i32) {
    %c0_i32 = arith.constant 0 : i32
    %c0_i32_0 = arith.constant 0 : i32
    %c0_i32_1 = arith.constant 0 : i32
    return %c0_i32, %c0_i32_0 : i32, i32
  }
  func.func @transform_12(%arg0: i32) -> (i32, i32, i32) {
    %c0_i32 = arith.constant 0 : i32
    %c0_i32_0 = arith.constant 0 : i32
    %c0_i32_1 = arith.constant 0 : i32
    %c0_i32_2 = arith.constant 0 : i32
    return %c0_i32, %c0_i32_0, %c0_i32_1 : i32, i32, i32
  }
  func.func @transform_13(%arg0: i32) -> (i32, i32) {
    %c0_i32 = arith.constant 0 : i32
    %c0_i32_0 = arith.constant 0 : i32
    %c0_i32_1 = arith.constant 0 : i32
    return %c0_i32, %c0_i32_0 : i32, i32
  }
  func.func @transform_14(%arg0: i32) -> (i32, i32) {
    %c0_i32 = arith.constant 0 : i32
    %c0_i32_0 = arith.constant 0 : i32
    %c0_i32_1 = arith.constant 0 : i32
    return %c0_i32, %c0_i32_0 : i32, i32
  }
  func.func @transform_15(%arg0: i32) -> (i32, i32) {
    %c0_i32 = arith.constant 0 : i32
    %c0_i32_0 = arith.constant 0 : i32
    %c0_i32_1 = arith.constant 0 : i32
    return %c0_i32, %c0_i32_0 : i32, i32
  }
  func.func @transform_16(%arg0: i32) -> (i32, i32, i32, i32) {
    %c0_i32 = arith.constant 0 : i32
    %c0_i32_0 = arith.constant 0 : i32
    %c0_i32_1 = arith.constant 0 : i32
    %c0_i32_2 = arith.constant 0 : i32
    return %arg0, %c0_i32, %c0_i32_0, %c0_i32_1 : i32, i32, i32, i32
  }
}

</mosaic_0001>

<llo_original>
// kernel: tpu_custom_call.1
$region0: #{tpu_custom_call.1}
  #allocation0 [shape = 'u32[]', space=smem, size = 0x4, offset = 0x4, fixed_abs, tag = 'smem constant byte address 0x4 - core index']
  #allocation1 [shape = 'u32[144,128]{1,0:T(1,128)}', space=vmem, size = 0x12000, scoped, tag = 'internal scratch']
  #allocation2 [shape = 'bf16[176,32]{1,0:T(16,128)(2,1)}', space=vmem, size = 0xb000, scoped, tag = 'scratch operand']
  #allocation3 [shape = 'bf16[176,64]{1,0:T(16,128)(2,1)}', space=vmem, size = 0xb000, scoped, tag = 'scratch operand']
  %s0 = inlined_call_operand.hbm [shape: f32[2,8,8,32], index: 0, kind: input, shape index: {}]
  %s1 = inlined_call_operand.vmem [shape: f32[128,1], index: 1, kind: input, shape index: {}]
  %s2 = inlined_call_operand.vmem [shape: f32[32,32], index: 2, kind: input, shape index: {}]
  %s3 = inlined_call_operand.vmem [shape: f32[32,32], index: 3, kind: input, shape index: {}]
  %s4 = inlined_call_operand.vmem [shape: f32[1,32], index: 4, kind: input, shape index: {}]
  %s5 = inlined_call_operand.vmem [shape: f32[1,32], index: 5, kind: input, shape index: {}]
  %s6 = inlined_call_operand.vmem [shape: bf16[9,32,64], index: 6, kind: input, shape index: {}]
  %s7 = inlined_call_operand.hbm [shape: f32[1,64], index: 7, kind: input, shape index: {}]
  %s8 = inlined_call_operand.vmem [shape: f32[64,32], index: 8, kind: input, shape index: {}]
  %s9 = inlined_call_operand.vmem [shape: f32[32,64], index: 9, kind: input, shape index: {}]
  %s10 = inlined_call_operand.hbm [shape: f32[1,64], index: 10, kind: input, shape index: {}]
  %s11 = inlined_call_operand.hbm [shape: f32[1,64], index: 11, kind: input, shape index: {}]
  %s12 = inlined_call_operand.hbm [shape: bf16[9,64,64], index: 12, kind: input, shape index: {}]
  %s13 = inlined_call_operand.hbm [shape: f32[1,64], index: 13, kind: input, shape index: {}]
  %s14 = inlined_call_operand.vmem [shape: f32[32,64], index: 14, kind: input, shape index: {}]
  %s15 = inlined_call_operand.vmem [shape: f32[1,64], index: 15, kind: input, shape index: {}]
  %s16 = inlined_call_operand.hbm [shape: f32[2,8,8,64], index: 16, kind: output, shape index: {}]
  %s17 = sld [smem:[#allocation0]]
  $region121: #{tpu_custom_call.1} parent=0
    _
  %s19 = ssub.s32 1, %s17
  %s20 = scalar_select 0, %s19, %s17
  $region1: #{tpu_custom_call.1} parent=0
    #allocation4 [shape = 'u8[65536]{0}', space=vmem, size = 0x10000, scoped, tag = 'input window, operand 0']
    #allocation5 [shape = 's32[2]{0}', space=sflag, size = 0x8, scoped, tag = 'scoped memory for tpu_custom_call.1']
    #allocation6 [shape = 's32[2]{0}', space=sflag, size = 0x8, scoped, tag = 'scoped memory for tpu_custom_call.1']
    #allocation7 [shape = 'u8[512]{0}', space=vmem, size = 0x400, scoped, tag = 'input window, operand 7, single buffered']
    #allocation8 [shape = 's32[1]{0}', space=sflag, size = 0x4, scoped, tag = 'scoped memory for tpu_custom_call.1']
    #allocation9 [shape = 'u8[512]{0}', space=vmem, size = 0x400, scoped, tag = 'input window, operand 10, single buffered']
    #allocation10 [shape = 'u8[512]{0}', space=vmem, size = 0x400, scoped, tag = 'input window, operand 11, single buffered']
    #allocation11 [shape = 's32[1]{0}', space=sflag, size = 0x4, scoped, tag = 'scoped memory for tpu_custom_call.1']
    #allocation12 [shape = 'u8[147456]{0}', space=vmem, size = 0x24000, scoped, tag = 'input window, operand 12, single buffered']
    #allocation13 [shape = 'u8[512]{0}', space=vmem, size = 0x400, scoped, tag = 'input window, operand 13, single buffered']
    #allocation14 [shape = 's32[1]{0}', space=sflag, size = 0x4, scoped, tag = 'scoped memory for tpu_custom_call.1']
    #allocation15 [shape = 'u8[65536]{0}', space=vmem, size = 0x10000, scoped, tag = 'output window, operand 0']
    %21 = vsyncpa [#allocation5], 0
    %s22 = scalar_lea.sflag [#allocation5], 1
    %23 = vsyncpa %s22, 0
    %24 = vsyncpa [#allocation8], 0
    %25 = vsyncpa [#allocation11], 0
    %26 = vsyncpa [#allocation14], 0
    %27 = vsyncpa [#allocation6], 0
    %s28 = scalar_lea.sflag [#allocation6], 1
    %29 = vsyncpa %s28, 0
    loop: start=0, step=1, limit=4
    $region2: #{tpu_custom_call.1} parent=1 // loop_pre_header
      _
    $region3: #{tpu_custom_call.1} parent=1 // loop_header
      %s31 = sphi 0, %s35
      %p32 = scmp.ge.s32.totalorder %s31, 4
      %s41 = sphi 0, %s43
      %s44 = sphi 0, %s41
      %s45 = sphi 0, %s44
      %s61 = sphi 0, %s45
      %s65 = sphi 0, %s65
      %s67 = sphi 0, %s65
      %s68 = sphi 0, %s67
      %s82 = sphi 0, %s68
      %s86 = sphi 0, %s86
      %s88 = sphi 0, %s86
      %s89 = sphi 0, %s88
      %s103 = sphi 0, %s89
      %s107 = sphi 0, %s107
      %s109 = sphi 0, %s107
      %s110 = sphi 0, %s109
      %s124 = sphi 0, %s110
      %s128 = sphi 0, %s128
      %s130 = sphi 0, %s128
      %s131 = sphi 0, %s130
      %s145 = sphi 0, %s131
      %s149 = sphi 0, %s149
      %s151 = sphi 0, %s149
      %s152 = sphi 0, %s151
      %s166 = sphi 0, %s152
      %s170 = sphi 0, %s170
      %s172 = sphi 0, %s170
      %s173 = sphi 0, %s172
      %s187 = sphi 0, %s173
      %s191 = sphi 0, %s191
      %s193 = sphi 0, %s191
      %s194 = sphi 0, %s193
      %s208 = sphi 0, %s194
      %s212 = sphi 0, %s212
      %s214 = sphi 0, %s212
      %s215 = sphi 0, %s214
      %s229 = sphi 0, %s215
      %s233 = sphi 0, %s233
      %s235 = sphi 0, %s233
      %s236 = sphi 0, %s235
      %s250 = sphi 0, %s236
      %s254 = sphi 0, %s254
      %s256 = sphi 0, %s254
      %s257 = sphi 0, %s256
      %s271 = sphi 0, %s257
      %s275 = sphi 0, %s275
      %s277 = sphi 0, %s275
      %s278 = sphi 0, %s277
      %s292 = sphi 0, %s278
      %s296 = sphi 0, %s296
      %s298 = sphi 0, %s296
      %s299 = sphi 0, %s298
      %s313 = sphi 0, %s299
      %s317 = sphi 0, %s317
      %s319 = sphi 0, %s317
      %s320 = sphi 0, %s319
      %s334 = sphi 0, %s320
      %s338 = sphi 0, %s338
      %s340 = sphi 0, %s338
      %s341 = sphi 0, %s340
      %s355 = sphi 0, %s341
      %s359 = sphi 0, %s359
      %s361 = sphi 0, %s359
      %s362 = sphi 0, %s361
      %s376 = sphi 0, %s362
      %s382 = sphi 0, %s384
      %s385 = sphi 0, %s382
      %s386 = sphi 0, %s385
      %s402 = sphi 0, %s386
    $region4: #{tpu_custom_call.1} parent=1 // loop_header_branch
      %34 = sbr.rel (%p32) target = $region8
    $region5: #{tpu_custom_call.1} parent=1 // loop_body
      %s36 = ssub.s32 %s31, 1
      %s37 = ssub.s32 %s31, 2
      %s38 = sadd.s32 %s31, 1
      %s39 = ssub.s32 %s31, %s38
      %p40 = scmp.eq.s32.totalorder %s39, 0
      %s42 = sadd.s32 %s41, 1
      %s43 = scalar_select %p40, %s41, %s42
      %p46 = pneg %p40
      %p47 = scmp.eq.s32.totalorder %s31, 1
      %p48 = por %p46, %p47
      %p49 = scmp.ne.s32.totalorder %s41, %s44
      %p50 = scmp.eq.s32.totalorder %s31, 0
      %p51 = por %p49, %p50
      %p52 = scmp.ne.s32.totalorder %s41, %s44
      %p53 = scmp.eq.s32.totalorder %s36, 1
      %p54 = por %p52, %p53
      %p55 = scmp.ne.s32.totalorder %s44, %s45
      %p56 = scmp.eq.s32.totalorder %s36, 0
      %p57 = por %p55, %p56
      %p58 = scmp.ne.s32.totalorder %s44, %s45
      %p59 = scmp.eq.s32.totalorder %s37, 1
      %p60 = por %p58, %p59
      %p62 = scmp.ne.s32.totalorder %s45, %s61
      %p63 = scmp.eq.s32.totalorder %s37, 0
      %p64 = por %p62, %p63
      %s66 = sadd.s32 %s65, 1
      %p69 = scmp.eq.s32.totalorder %s31, 1
      %p70 = scmp.ne.s32.totalorder %s65, %s67
      %p71 = scmp.eq.s32.totalorder %s31, 0
      %p72 = por %p70, %p71
      %p73 = scmp.ne.s32.totalorder %s65, %s67
      %p74 = scmp.eq.s32.totalorder %s36, 1
      %p75 = por %p73, %p74
      %p76 = scmp.ne.s32.totalorder %s67, %s68
      %p77 = scmp.eq.s32.totalorder %s36, 0
      %p78 = por %p76, %p77
      %p79 = scmp.ne.s32.totalorder %s67, %s68
      %p80 = scmp.eq.s32.totalorder %s37, 1
      %p81 = por %p79, %p80
      %p83 = scmp.ne.s32.totalorder %s68, %s82
      %p84 = scmp.eq.s32.totalorder %s37, 0
      %p85 = por %p83, %p84
      %s87 = sadd.s32 %s86, 1
      %p90 = scmp.eq.s32.totalorder %s31, 1
      %p91 = scmp.ne.s32.totalorder %s86, %s88
      %p92 = scmp.eq.s32.totalorder %s31, 0
      %p93 = por %p91, %p92
      %p94 = scmp.ne.s32.totalorder %s86, %s88
      %p95 = scmp.eq.s32.totalorder %s36, 1
      %p96 = por %p94, %p95
      %p97 = scmp.ne.s32.totalorder %s88, %s89
      %p98 = scmp.eq.s32.totalorder %s36, 0
      %p99 = por %p97, %p98
      %p100 = scmp.ne.s32.totalorder %s88, %s89
      %p101 = scmp.eq.s32.totalorder %s37, 1
      %p102 = por %p100, %p101
      %p104 = scmp.ne.s32.totalorder %s89, %s103
      %p105 = scmp.eq.s32.totalorder %s37, 0
      %p106 = por %p104, %p105
      %s108 = sadd.s32 %s107, 1
      %p111 = scmp.eq.s32.totalorder %s31, 1
      %p112 = scmp.ne.s32.totalorder %s107, %s109
      %p113 = scmp.eq.s32.totalorder %s31, 0
      %p114 = por %p112, %p113
      %p115 = scmp.ne.s32.totalorder %s107, %s109
      %p116 = scmp.eq.s32.totalorder %s36, 1
      %p117 = por %p115, %p116
      %p118 = scmp.ne.s32.totalorder %s109, %s110
      %p119 = scmp.eq.s32.totalorder %s36, 0
      %p120 = por %p118, %p119
      %p121 = scmp.ne.s32.totalorder %s109, %s110
      %p122 = scmp.eq.s32.totalorder %s37, 1
      %p123 = por %p121, %p122
      %p125 = scmp.ne.s32.totalorder %s110, %s124
      %p126 = scmp.eq.s32.totalorder %s37, 0
      %p127 = por %p125, %p126
      %s129 = sadd.s32 %s128, 1
      %p132 = scmp.eq.s32.totalorder %s31, 1
      %p133 = scmp.ne.s32.totalorder %s128, %s130
      %p134 = scmp.eq.s32.totalorder %s31, 0
      %p135 = por %p133, %p134
      %p136 = scmp.ne.s32.totalorder %s128, %s130
      %p137 = scmp.eq.s32.totalorder %s36, 1
      %p138 = por %p136, %p137
      %p139 = scmp.ne.s32.totalorder %s130, %s131
      %p140 = scmp.eq.s32.totalorder %s36, 0
      %p141 = por %p139, %p140
      %p142 = scmp.ne.s32.totalorder %s130, %s131
      %p143 = scmp.eq.s32.totalorder %s37, 1
      %p144 = por %p142, %p143
      %p146 = scmp.ne.s32.totalorder %s131, %s145
      %p147 = scmp.eq.s32.totalorder %s37, 0
      %p148 = por %p146, %p147
      %s150 = sadd.s32 %s149, 1
      %p153 = scmp.eq.s32.totalorder %s31, 1
      %p154 = scmp.ne.s32.totalorder %s149, %s151
      %p155 = scmp.eq.s32.totalorder %s31, 0
      %p156 = por %p154, %p155
      %p157 = scmp.ne.s32.totalorder %s149, %s151
      %p158 = scmp.eq.s32.totalorder %s36, 1
      %p159 = por %p157, %p158
      %p160 = scmp.ne.s32.totalorder %s151, %s152
      %p161 = scmp.eq.s32.totalorder %s36, 0
      %p162 = por %p160, %p161
      %p163 = scmp.ne.s32.totalorder %s151, %s152
      %p164 = scmp.eq.s32.totalorder %s37, 1
      %p165 = por %p163, %p164
      %p167 = scmp.ne.s32.totalorder %s152, %s166
      %p168 = scmp.eq.s32.totalorder %s37, 0
      %p169 = por %p167, %p168
      %s171 = sadd.s32 %s170, 1
      %p174 = scmp.eq.s32.totalorder %s31, 1
      %p175 = scmp.ne.s32.totalorder %s170, %s172
      %p176 = scmp.eq.s32.totalorder %s31, 0
      %p177 = por %p175, %p176
      %p178 = scmp.ne.s32.totalorder %s170, %s172
      %p179 = scmp.eq.s32.totalorder %s36, 1
      %p180 = por %p178, %p179
      %p181 = scmp.ne.s32.totalorder %s172, %s173
      %p182 = scmp.eq.s32.totalorder %s36, 0
      %p183 = por %p181, %p182
      %p184 = scmp.ne.s32.totalorder %s172, %s173
      %p185 = scmp.eq.s32.totalorder %s37, 1
      %p186 = por %p184, %p185
      %p188 = scmp.ne.s32.totalorder %s173, %s187
      %p189 = scmp.eq.s32.totalorder %s37, 0
      %p190 = por %p188, %p189
      %s192 = sadd.s32 %s191, 1
      %p195 = scmp.eq.s32.totalorder %s31, 1
      %p196 = scmp.ne.s32.totalorder %s191, %s193
      %p197 = scmp.eq.s32.totalorder %s31, 0
      %p198 = por %p196, %p197
      %p199 = scmp.ne.s32.totalorder %s191, %s193
      %p200 = scmp.eq.s32.totalorder %s36, 1
      %p201 = por %p199, %p200
      %p202 = scmp.ne.s32.totalorder %s193, %s194
      %p203 = scmp.eq.s32.totalorder %s36, 0
      %p204 = por %p202, %p203
      %p205 = scmp.ne.s32.totalorder %s193, %s194
      %p206 = scmp.eq.s32.totalorder %s37, 1
      %p207 = por %p205, %p206
      %p209 = scmp.ne.s32.totalorder %s194, %s208
      %p210 = scmp.eq.s32.totalorder %s37, 0
      %p211 = por %p209, %p210
      %s213 = sadd.s32 %s212, 1
      %p216 = scmp.eq.s32.totalorder %s31, 1
      %p217 = scmp.ne.s32.totalorder %s212, %s214
      %p218 = scmp.eq.s32.totalorder %s31, 0
      %p219 = por %p217, %p218
      %p220 = scmp.ne.s32.totalorder %s212, %s214
      %p221 = scmp.eq.s32.totalorder %s36, 1
      %p222 = por %p220, %p221
      %p223 = scmp.ne.s32.totalorder %s214, %s215
      %p224 = scmp.eq.s32.totalorder %s36, 0
      %p225 = por %p223, %p224
      %p226 = scmp.ne.s32.totalorder %s214, %s215
      %p227 = scmp.eq.s32.totalorder %s37, 1
      %p228 = por %p226, %p227
      %p230 = scmp.ne.s32.totalorder %s215, %s229
      %p231 = scmp.eq.s32.totalorder %s37, 0
      %p232 = por %p230, %p231
      %s234 = sadd.s32 %s233, 1
      %p237 = scmp.eq.s32.totalorder %s31, 1
      %p238 = scmp.ne.s32.totalorder %s233, %s235
      %p239 = scmp.eq.s32.totalorder %s31, 0
      %p240 = por %p238, %p239
      %p241 = scmp.ne.s32.totalorder %s233, %s235
      %p242 = scmp.eq.s32.totalorder %s36, 1
      %p243 = por %p241, %p242
      %p244 = scmp.ne.s32.totalorder %s235, %s236
      %p245 = scmp.eq.s32.totalorder %s36, 0
      %p246 = por %p244, %p245
      %p247 = scmp.ne.s32.totalorder %s235, %s236
      %p248 = scmp.eq.s32.totalorder %s37, 1
      %p249 = por %p247, %p248
      %p251 = scmp.ne.s32.totalorder %s236, %s250
      %p252 = scmp.eq.s32.totalorder %s37, 0
      %p253 = por %p251, %p252
      %s255 = sadd.s32 %s254, 1
      %p258 = scmp.eq.s32.totalorder %s31, 1
      %p259 = scmp.ne.s32.totalorder %s254, %s256
      %p260 = scmp.eq.s32.totalorder %s31, 0
      %p261 = por %p259, %p260
      %p262 = scmp.ne.s32.totalorder %s254, %s256
      %p263 = scmp.eq.s32.totalorder %s36, 1
      %p264 = por %p262, %p263
      %p265 = scmp.ne.s32.totalorder %s256, %s257
      %p266 = scmp.eq.s32.totalorder %s36, 0
      %p267 = por %p265, %p266
      %p268 = scmp.ne.s32.totalorder %s256, %s257
      %p269 = scmp.eq.s32.totalorder %s37, 1
      %p270 = por %p268, %p269
      %p272 = scmp.ne.s32.totalorder %s257, %s271
      %p273 = scmp.eq.s32.totalorder %s37, 0
      %p274 = por %p272, %p273
      %s276 = sadd.s32 %s275, 1
      %p279 = scmp.eq.s32.totalorder %s31, 1
      %p280 = scmp.ne.s32.totalorder %s275, %s277
      %p281 = scmp.eq.s32.totalorder %s31, 0
      %p282 = por %p280, %p281
      %p283 = scmp.ne.s32.totalorder %s275, %s277
      %p284 = scmp.eq.s32.totalorder %s36, 1
      %p285 = por %p283, %p284
      %p286 = scmp.ne.s32.totalorder %s277, %s278
      %p287 = scmp.eq.s32.totalorder %s36, 0
      %p288 = por %p286, %p287
      %p289 = scmp.ne.s32.totalorder %s277, %s278
      %p290 = scmp.eq.s32.totalorder %s37, 1
      %p291 = por %p289, %p290
      %p293 = scmp.ne.s32.totalorder %s278, %s292
      %p294 = scmp.eq.s32.totalorder %s37, 0
      %p295 = por %p293, %p294
      %s297 = sadd.s32 %s296, 1
      %p300 = scmp.eq.s32.totalorder %s31, 1
      %p301 = scmp.ne.s32.totalorder %s296, %s298
      %p302 = scmp.eq.s32.totalorder %s31, 0
      %p303 = por %p301, %p302
      %p304 = scmp.ne.s32.totalorder %s296, %s298
      %p305 = scmp.eq.s32.totalorder %s36, 1
      %p306 = por %p304, %p305
      %p307 = scmp.ne.s32.totalorder %s298, %s299
      %p308 = scmp.eq.s32.totalorder %s36, 0
      %p309 = por %p307, %p308
      %p310 = scmp.ne.s32.totalorder %s298, %s299
      %p311 = scmp.eq.s32.totalorder %s37, 1
      %p312 = por %p310, %p311
      %p314 = scmp.ne.s32.totalorder %s299, %s313
      %p315 = scmp.eq.s32.totalorder %s37, 0
      %p316 = por %p314, %p315
      %s318 = sadd.s32 %s317, 1
      %p321 = scmp.eq.s32.totalorder %s31, 1
      %p322 = scmp.ne.s32.totalorder %s317, %s319
      %p323 = scmp.eq.s32.totalorder %s31, 0
      %p324 = por %p322, %p323
      %p325 = scmp.ne.s32.totalorder %s317, %s319
      %p326 = scmp.eq.s32.totalorder %s36, 1
      %p327 = por %p325, %p326
      %p328 = scmp.ne.s32.totalorder %s319, %s320
      %p329 = scmp.eq.s32.totalorder %s36, 0
      %p330 = por %p328, %p329
      %p331 = scmp.ne.s32.totalorder %s319, %s320
      %p332 = scmp.eq.s32.totalorder %s37, 1
      %p333 = por %p331, %p332
      %p335 = scmp.ne.s32.totalorder %s320, %s334
      %p336 = scmp.eq.s32.totalorder %s37, 0
      %p337 = por %p335, %p336
      %s339 = sadd.s32 %s338, 1
      %p342 = scmp.eq.s32.totalorder %s31, 1
      %p343 = scmp.ne.s32.totalorder %s338, %s340
      %p344 = scmp.eq.s32.totalorder %s31, 0
      %p345 = por %p343, %p344
      %p346 = scmp.ne.s32.totalorder %s338, %s340
      %p347 = scmp.eq.s32.totalorder %s36, 1
      %p348 = por %p346, %p347
      %p349 = scmp.ne.s32.totalorder %s340, %s341
      %p350 = scmp.eq.s32.totalorder %s36, 0
      %p351 = por %p349, %p350
      %p352 = scmp.ne.s32.totalorder %s340, %s341
      %p353 = scmp.eq.s32.totalorder %s37, 1
      %p354 = por %p352, %p353
      %p356 = scmp.ne.s32.totalorder %s341, %s355
      %p357 = scmp.eq.s32.totalorder %s37, 0
      %p358 = por %p356, %p357
      %s360 = sadd.s32 %s359, 1
      %p363 = scmp.eq.s32.totalorder %s31, 1
      %p364 = scmp.ne.s32.totalorder %s359, %s361
      %p365 = scmp.eq.s32.totalorder %s31, 0
      %p366 = por %p364, %p365
      %p367 = scmp.ne.s32.totalorder %s359, %s361
      %p368 = scmp.eq.s32.totalorder %s36, 1
      %p369 = por %p367, %p368
      %p370 = scmp.ne.s32.totalorder %s361, %s362
      %p371 = scmp.eq.s32.totalorder %s36, 0
      %p372 = por %p370, %p371
      %p373 = scmp.ne.s32.totalorder %s361, %s362
      %p374 = scmp.eq.s32.totalorder %s37, 1
      %p375 = por %p373, %p374
      %p377 = scmp.ne.s32.totalorder %s362, %s376
      %p378 = scmp.eq.s32.totalorder %s37, 0
      %p379 = por %p377, %p378
      %s380 = ssub.s32 %s31, %s38
      %p381 = scmp.eq.s32.totalorder %s380, 0
      %s383 = sadd.s32 %s382, 1
      %s384 = scalar_select %p381, %s382, %s383
      %p387 = pneg %p381
      %p388 = scmp.eq.s32.totalorder %s31, 1
      %p389 = por %p387, %p388
      %p390 = scmp.ne.s32.totalorder %s382, %s385
      %p391 = scmp.eq.s32.totalorder %s31, 0
      %p392 = por %p390, %p391
      %p393 = scmp.ne.s32.totalorder %s382, %s385
      %p394 = scmp.eq.s32.totalorder %s36, 1
      %p395 = por %p393, %p394
      %p396 = scmp.ne.s32.totalorder %s385, %s386
      %p397 = scmp.eq.s32.totalorder %s36, 0
      %p398 = por %p396, %p397
      %p399 = scmp.ne.s32.totalorder %s385, %s386
      %p400 = scmp.eq.s32.totalorder %s37, 1
      %p401 = por %p399, %p400
      %p403 = scmp.ne.s32.totalorder %s386, %s402
      %p404 = scmp.eq.s32.totalorder %s37, 0
      %p405 = por %p403, %p404
      %p406 = scmp.le.s32.totalorder 1, %s31
      %p407 = scmp.lt.s32.totalorder %s31, 3
      %p408 = pnand %p406, %p407
      %p409 = pneg %p408
      // Predicated region
      $region9: #{tpu_custom_call.1} parent=5 // pred_check
        _
      $region10: #{tpu_custom_call.1} parent=5 // pred_check_branch
        %411 = sbr.rel (%p408) target = $region12
      $region11: #{tpu_custom_call.1} parent=5 // pred_region
        %s412 = ssub.s32 %s31, 1
        // Predicated region
        $region13: #{tpu_custom_call.1} parent=11 // pred_check
          %p413 = pneg %p78
        $region14: #{tpu_custom_call.1} parent=11 // pred_check_branch
          %415 = sbr.rel (%p413) target = $region16
        $region15: #{tpu_custom_call.1} parent=11 // pred_region
          _
        $region16: #{tpu_custom_call.1} parent=11 // pred_fallthru
          _
        // Predicated region
        $region17: #{tpu_custom_call.1} parent=11 // pred_check
          %p416 = pneg %p99
        $region18: #{tpu_custom_call.1} parent=11 // pred_check_branch
          %418 = sbr.rel (%p416) target = $region20
        $region19: #{tpu_custom_call.1} parent=11 // pred_region
          _
        $region20: #{tpu_custom_call.1} parent=11 // pred_fallthru
          _
        // Predicated region
        $region21: #{tpu_custom_call.1} parent=11 // pred_check
          %p419 = pneg %p120
        $region22: #{tpu_custom_call.1} parent=11 // pred_check_branch
          %421 = sbr.rel (%p419) target = $region24
        $region23: #{tpu_custom_call.1} parent=11 // pred_region
          _
        $region24: #{tpu_custom_call.1} parent=11 // pred_fallthru
          _
        // Predicated region
        $region25: #{tpu_custom_call.1} parent=11 // pred_check
          %p422 = pneg %p141
        $region26: #{tpu_custom_call.1} parent=11 // pred_check_branch
          %424 = sbr.rel (%p422) target = $region28
        $region27: #{tpu_custom_call.1} parent=11 // pred_region
          _
        $region28: #{tpu_custom_call.1} parent=11 // pred_fallthru
          _
        // Predicated region
        $region29: #{tpu_custom_call.1} parent=11 // pred_check
          %p425 = pneg %p162
        $region30: #{tpu_custom_call.1} parent=11 // pred_check_branch
          %427 = sbr.rel (%p425) target = $region32
        $region31: #{tpu_custom_call.1} parent=11 // pred_region
          _
        $region32: #{tpu_custom_call.1} parent=11 // pred_fallthru
          _
        // Predicated region
        $region33: #{tpu_custom_call.1} parent=11 // pred_check
          %p428 = pneg %p183
        $region34: #{tpu_custom_call.1} parent=11 // pred_check_branch
          %430 = sbr.rel (%p428) target = $region36
        $region35: #{tpu_custom_call.1} parent=11 // pred_region
          _
        $region36: #{tpu_custom_call.1} parent=11 // pred_fallthru
          _
        // Predicated region
        $region37: #{tpu_custom_call.1} parent=11 // pred_check
          %p431 = pneg %p204
        $region38: #{tpu_custom_call.1} parent=11 // pred_check_branch
          %433 = sbr.rel (%p431) target = $region40
        $region39: #{tpu_custom_call.1} parent=11 // pred_region
          %s435 = ssub.s32 16, 16
          %436 = vsyncadd [#allocation8], %s435
          %s438 = sshll.u32 [#allocation7], 4
          %s439 = int_to_ptr.vmem [resolvable:$true] %s438
          %441 = dma.hbm_to_vmem [thread:$0]  %s7, 16, %s439, [#allocation8]
        $region40: #{tpu_custom_call.1} parent=11 // pred_fallthru
          _
        // Predicated region
        $region41: #{tpu_custom_call.1} parent=11 // pred_check
          %p442 = pneg %p225
        $region42: #{tpu_custom_call.1} parent=11 // pred_check_branch
          %444 = sbr.rel (%p442) target = $region44
        $region43: #{tpu_custom_call.1} parent=11 // pred_region
          _
        $region44: #{tpu_custom_call.1} parent=11 // pred_fallthru
          _
        // Predicated region
        $region45: #{tpu_custom_call.1} parent=11 // pred_check
          %p445 = pneg %p246
        $region46: #{tpu_custom_call.1} parent=11 // pred_check_branch
          %447 = sbr.rel (%p445) target = $region48
        $region47: #{tpu_custom_call.1} parent=11 // pred_region
          _
        $region48: #{tpu_custom_call.1} parent=11 // pred_fallthru
          _
        // Predicated region
        $region49: #{tpu_custom_call.1} parent=11 // pred_check
          %p448 = pneg %p267
        $region50: #{tpu_custom_call.1} parent=11 // pred_check_branch
          %450 = sbr.rel (%p448) target = $region52
        $region51: #{tpu_custom_call.1} parent=11 // pred_region
          %s452 = ssub.s32 16, 16
          %453 = vsyncadd [#allocation8], %s452
          %s455 = sshll.u32 [#allocation9], 4
          %s456 = int_to_ptr.vmem [resolvable:$true] %s455
          %458 = dma.hbm_to_vmem [thread:$0]  %s10, 16, %s456, [#allocation8]
        $region52: #{tpu_custom_call.1} parent=11 // pred_fallthru
          _
        // Predicated region
        $region53: #{tpu_custom_call.1} parent=11 // pred_check
          %p459 = pneg %p288
        $region54: #{tpu_custom_call.1} parent=11 // pred_check_branch
          %461 = sbr.rel (%p459) target = $region56
        $region55: #{tpu_custom_call.1} parent=11 // pred_region
          %s463 = ssub.s32 16, 16
          %464 = vsyncadd [#allocation11], %s463
          %s466 = sshll.u32 [#allocation10], 4
          %s467 = int_to_ptr.vmem [resolvable:$true] %s466
          %469 = dma.hbm_to_vmem [thread:$0]  %s11, 16, %s467, [#allocation11]
        $region56: #{tpu_custom_call.1} parent=11 // pred_fallthru
          _
        // Predicated region
        $region57: #{tpu_custom_call.1} parent=11 // pred_check
          %p470 = pneg %p309
        $region58: #{tpu_custom_call.1} parent=11 // pred_check_branch
          %472 = sbr.rel (%p470) target = $region60
        $region59: #{tpu_custom_call.1} parent=11 // pred_region
          %s474 = ssub.s32 4608, 4608
          %475 = vsyncadd [#allocation11], %s474
          %s476 = sshll.u32 [#allocation12], 4
          %s477 = int_to_ptr.vmem [resolvable:$true] %s476
          %482 = dma.hbm_to_vmem [thread:$0]  %s12, 4608, %s477, [#allocation11], 64, 64, 4
        $region60: #{tpu_custom_call.1} parent=11 // pred_fallthru
          _
        // Predicated region
        $region61: #{tpu_custom_call.1} parent=11 // pred_check
          %p483 = pneg %p330
        $region62: #{tpu_custom_call.1} parent=11 // pred_check_branch
          %485 = sbr.rel (%p483) target = $region64
        $region63: #{tpu_custom_call.1} parent=11 // pred_region
          %s487 = ssub.s32 16, 16
          %488 = vsyncadd [#allocation14], %s487
          %s490 = sshll.u32 [#allocation13], 4
          %s491 = int_to_ptr.vmem [resolvable:$true] %s490
          %493 = dma.hbm_to_vmem [thread:$0]  %s13, 16, %s491, [#allocation14]
        $region64: #{tpu_custom_call.1} parent=11 // pred_fallthru
          _
        // Predicated region
        $region65: #{tpu_custom_call.1} parent=11 // pred_check
          %p494 = pneg %p351
        $region66: #{tpu_custom_call.1} parent=11 // pred_check_branch
          %496 = sbr.rel (%p494) target = $region68
        $region67: #{tpu_custom_call.1} parent=11 // pred_region
          _
        $region68: #{tpu_custom_call.1} parent=11 // pred_fallthru
          _
        // Predicated region
        $region69: #{tpu_custom_call.1} parent=11 // pred_check
          %p497 = pneg %p372
        $region70: #{tpu_custom_call.1} parent=11 // pred_check_branch
          %499 = sbr.rel (%p497) target = $region72
        $region71: #{tpu_custom_call.1} parent=11 // pred_region
          _
        $region72: #{tpu_custom_call.1} parent=11 // pred_fallthru
          _
      $region12: #{tpu_custom_call.1} parent=5 // pred_fallthru
        _
      %p500 = scmp.lt.s32.totalorder %s31, 2
      // Predicated region
      $region73: #{tpu_custom_call.1} parent=5 // pred_check
        %p501 = pneg %p500
      $region74: #{tpu_custom_call.1} parent=5 // pred_check_branch
        %503 = sbr.rel (%p501) target = $region76
      $region75: #{tpu_custom_call.1} parent=5 // pred_region
        // Predicated region
        $region77: #{tpu_custom_call.1} parent=75 // pred_check
          %p504 = pneg %p51
        $region78: #{tpu_custom_call.1} parent=75 // pred_check_branch
          %506 = sbr.rel (%p504) target = $region80
        $region79: #{tpu_custom_call.1} parent=75 // pred_region
          %s507 = sand.u32 %s41, 1
          %s508 = scalar_lea.sflag [#allocation5], %s507
          %s509 = sand.u32 %s41, 1
          %s510 = smul.addr %s509, 64
          %s511 = scalar_lea.vmem [#allocation4], %s510
          %s513 = ssub.s32 1024, 1024
          %514 = vsyncadd %s508, %s513
          %s515 = smul.addr %s31, 8
          %s516 = smul.addr %s515, 128
          %s517 = scalar_lea.hbm %s0, %s516
          %s518 = sshll.u32 %s511, 4
          %s519 = int_to_ptr.vmem [resolvable:$true] %s518
          %524 = dma.hbm_to_vmem [thread:$0]  %s517, 1024, %s519, %s508, 128, 128, 8
        $region80: #{tpu_custom_call.1} parent=75 // pred_fallthru
          _
      $region76: #{tpu_custom_call.1} parent=5 // pred_fallthru
        _
      %p525 = scmp.le.s32.totalorder 1, %s31
      %p526 = scmp.lt.s32.totalorder %s31, 3
      %p527 = pnand %p525, %p526
      %p528 = pneg %p527
      // Predicated region
      $region81: #{tpu_custom_call.1} parent=5 // pred_check
        _
      $region82: #{tpu_custom_call.1} parent=5 // pred_check_branch
        %530 = sbr.rel (%p527) target = $region84
      $region83: #{tpu_custom_call.1} parent=5 // pred_region
        %s531 = ssub.s32 %s31, 1
        %s532 = sand.u32 %s44, 1
        %s533 = scalar_lea.sflag [#allocation5], %s532
        %s534 = sand.u32 %s44, 1
        %s535 = smul.addr %s534, 64
        %s536 = scalar_lea.vmem [#allocation4], %s535
        // Predicated region
        $region85: #{tpu_custom_call.1} parent=83 // pred_check
          %p537 = pneg %p57
        $region86: #{tpu_custom_call.1} parent=83 // pred_check_branch
          %539 = sbr.rel (%p537) target = $region88
        $region87: #{tpu_custom_call.1} parent=83 // pred_region
          %540 = dma.done %s533, 1024
        $region88: #{tpu_custom_call.1} parent=83 // pred_fallthru
          _
        // Predicated region
        $region89: #{tpu_custom_call.1} parent=83 // pred_check
          %p541 = pneg %p204
        $region90: #{tpu_custom_call.1} parent=83 // pred_check_branch
          %543 = sbr.rel (%p541) target = $region92
        $region91: #{tpu_custom_call.1} parent=83 // pred_region
          %544 = dma.done [#allocation8], 16
        $region92: #{tpu_custom_call.1} parent=83 // pred_fallthru
          _
        // Predicated region
        $region93: #{tpu_custom_call.1} parent=83 // pred_check
          %p545 = pneg %p267
        $region94: #{tpu_custom_call.1} parent=83 // pred_check_branch
          %547 = sbr.rel (%p545) target = $region96
        $region95: #{tpu_custom_call.1} parent=83 // pred_region
          %548 = dma.done [#allocation8], 16
        $region96: #{tpu_custom_call.1} parent=83 // pred_fallthru
          _
        // Predicated region
        $region97: #{tpu_custom_call.1} parent=83 // pred_check
          %p549 = pneg %p288
        $region98: #{tpu_custom_call.1} parent=83 // pred_check_branch
          %551 = sbr.rel (%p549) target = $region100
        $region99: #{tpu_custom_call.1} parent=83 // pred_region
          %552 = dma.done [#allocation11], 16
        $region100: #{tpu_custom_call.1} parent=83 // pred_fallthru
          _
        // Predicated region
        $region101: #{tpu_custom_call.1} parent=83 // pred_check
          %p553 = pneg %p309
        $region102: #{tpu_custom_call.1} parent=83 // pred_check_branch
          %555 = sbr.rel (%p553) target = $region104
        $region103: #{tpu_custom_call.1} parent=83 // pred_region
          %556 = dma.done [#allocation11], 4608
        $region104: #{tpu_custom_call.1} parent=83 // pred_fallthru
          _
        // Predicated region
        $region105: #{tpu_custom_call.1} parent=83 // pred_check
          %p557 = pneg %p330
        $region106: #{tpu_custom_call.1} parent=83 // pred_check_branch
          %559 = sbr.rel (%p557) target = $region108
        $region107: #{tpu_custom_call.1} parent=83 // pred_region
          %560 = dma.done [#allocation14], 16
        $region108: #{tpu_custom_call.1} parent=83 // pred_fallthru
          _
        %s561 = sand.u32 %s44, 1
        %s562 = scalar_lea.sflag [#allocation5], %s561
        %s563 = sand.u32 %s44, 1
        %s564 = smul.addr %s563, 64
        %s565 = scalar_lea.vmem [#allocation4], %s564
        %p566 = pneg %p57
        %p567 = pneg %p54
        %p568 = pneg %p78
        %p569 = pneg %p75
        %p570 = pneg %p99
        %p571 = pneg %p96
        %p572 = pneg %p120
        %p573 = pneg %p117
        %p574 = pneg %p141
        %p575 = pneg %p138
        %p576 = pneg %p162
        %p577 = pneg %p159
        %p578 = pneg %p183
        %p579 = pneg %p180
        %p580 = pneg %p204
        %p581 = pneg %p201
        %p582 = pneg %p225
        %p583 = pneg %p222
        %p584 = pneg %p246
        %p585 = pneg %p243
        %p586 = pneg %p267
        %p587 = pneg %p264
        %p588 = pneg %p288
        %p589 = pneg %p285
        %p590 = pneg %p309
        %p591 = pneg %p306
        %p592 = pneg %p330
        %p593 = pneg %p327
        %p594 = pneg %p351
        %p595 = pneg %p348
        %p596 = pneg %p372
        %p597 = pneg %p369
        %p598 = pneg %p398
        %p599 = pneg %p395
        %s600 = sand.u32 %s385, 1
        %s601 = scalar_lea.sflag [#allocation6], %s600
        %s602 = sand.u32 %s385, 1
        %s603 = smul.addr %s602, 64
        %s604 = scalar_lea.vmem [#allocation15], %s603
        %v606 = vld [vmem:[%s536] sm:$0xff]
        %v607 = vld [vmem:[%s536 + $0x8] sm:$0xff]
        %v608 = vld [vmem:[%s536 + $0x10] sm:$0xff]
        %v609 = vld [vmem:[%s536 + $0x18] sm:$0xff]
        %v610 = vld [vmem:[%s536 + $0x20] sm:$0xff]
        %v611 = vld [vmem:[%s536 + $0x28] sm:$0xff]
        %v612 = vld [vmem:[%s536 + $0x30] sm:$0xff]
        %v613 = vld [vmem:[%s536 + $0x38] sm:$0xff]
        %vm614 = vcmask 261120
        %v615 = vsel %vm614, %v606, 0.0
        %v616 = vsel %vm614, %v607, 0.0
        %v617 = vadd.f32 %v615, %v616
        %v618 = vsel %vm614, %v608, 0.0
        %v619 = vadd.f32 %v617, %v618
        %v620 = vsel %vm614, %v609, 0.0
        %v621 = vadd.f32 %v619, %v620
        %v622 = vsel %vm614, %v610, 0.0
        %v623 = vadd.f32 %v621, %v622
        %v624 = vsel %vm614, %v611, 0.0
        %v625 = vadd.f32 %v623, %v624
        %v626 = vsel %vm614, %v612, 0.0
        %v627 = vadd.f32 %v625, %v626
        %v628 = vsel %vm614, %v613, 0.0
        %v629 = vadd.f32 %v627, %v628
        %v630 = vsel %vm614, %v629, 0.0
        %v631 = vrot.slane %v630, 4
        %v632 = vadd.f32 %v630, %v631
        %v633 = vrot.slane %v632, 2
        %v634 = vadd.f32 %v632, %v633
        %v635 = vrot.slane %v634, 1
        %v636 = vadd.f32 %v634, %v635
        %v637 = vmul.f32 %v636, 0.015625
        %v638 = vld [vmem:[%s2] sm:$0xff]
        %v639 = vld [vmem:[%s2 + $0x8] sm:$0xff]
        %v640 = vld [vmem:[%s2 + $0x10] sm:$0xff]
        %v641 = vld [vmem:[%s2 + $0x18] sm:$0xff]
        %v643 = vsel %vm614, %v637, 0
        %645 = vmatprep.subr.mxu0 0.0
        %646 = vmatpush1.msra.mxu0 %v638
        %647 = vmatprep.subr.mxu0 0.0
        %648 = vmatpush1.msra.mxu0 %v639
        %649 = vmatprep.subr.mxu0 0.0
        %650 = vmatpush1.msra.mxu0 %v640
        %651 = vmatprep.subr.mxu0 0.0
        %652 = vmatpush1.msra.mxu0 %v641
        %653 = vmatprep.subr.mxu0 0.0
        %654 = vmatpush1.msra.mxu0 0.0
        %655 = vmatprep.subr.mxu0 0.0
        %656 = vmatpush1.msra.mxu0 0.0
        %657 = vmatprep.subr.mxu0 0.0
        %658 = vmatpush1.msra.mxu0 0.0
        %659 = vmatprep.subr.mxu0 0.0
        %660 = vmatpush1.msra.mxu0 0.0
        %661 = vmatprep.subr.mxu0 0.0
        %662 = vmatpush1.msra.mxu0 0.0
        %663 = vmatprep.subr.mxu0 0.0
        %664 = vmatpush1.msra.mxu0 0.0
        %665 = vmatprep.subr.mxu0 0.0
        %666 = vmatpush1.msra.mxu0 0.0
        %667 = vmatprep.subr.mxu0 0.0
        %668 = vmatpush1.msra.mxu0 0.0
        %669 = vmatprep.subr.mxu0 0.0
        %670 = vmatpush1.msra.mxu0 0.0
        %671 = vmatprep.subr.mxu0 0.0
        %672 = vmatpush1.msra.mxu0 0.0
        %673 = vmatprep.subr.mxu0 0.0
        %674 = vmatpush1.msra.mxu0 0.0
        %675 = vmatprep.subr.mxu0 0.0
        %676 = vmatpush1.msra.mxu0 0.0
        %677 = vmatprep.subr.mxu0 0.0
        %678 = vmatpush1.msra.mxu0 0.0
        %679 = vmatprep.subr.mxu0 0.0
        %680 = vmatpush1.msra.mxu0 0.0
        %681 = vmatprep.subr.mxu0 0.0
        %682 = vmatpush1.msra.mxu0 0.0
        %683 = vmatprep.subr.mxu0 0.0
        %684 = vmatpush1.msra.mxu0 0.0
        %685 = vmatprep.subr.mxu0 0.0
        %686 = vmatpush1.msra.mxu0 0.0
        %687 = vmatprep.subr.mxu0 0.0
        %688 = vmatpush1.msra.mxu0 0.0
        %689 = vmatprep.subr.mxu0 0.0
        %690 = vmatpush1.msra.mxu0 0.0
        %691 = vmatprep.subr.mxu0 0.0
        %692 = vmatpush1.msra.mxu0 0.0
        %693 = vmatprep.subr.mxu0 0.0
        %694 = vmatpush1.msra.mxu0 0.0
        %695 = vmatprep.subr.mxu0 0.0
        %696 = vmatpush1.msra.mxu0 0.0
        %697 = vmatprep.subr.mxu0 0.0
        %698 = vmatpush1.msra.mxu0 0.0
        %699 = vmatprep.subr.mxu0 0.0
        %700 = vmatpush1.msra.mxu0 0.0
        %701 = vmatprep.subr.mxu0 0.0
        %702 = vmatpush1.msra.mxu0 0.0
        %703 = vmatprep.subr.mxu0 0.0
        %704 = vmatpush1.msra.mxu0 0.0
        %705 = vmatprep.subr.mxu0 0.0
        %706 = vmatpush1.msra.mxu0 0.0
        %707 = vmatprep.subr.mxu0 0.0
        %708 = vmatpush1.msra.mxu0 0.0
        %709 = vmatprep.mubr.f32.mxu0 0.0
        %710 = vmatmul.mubr.f32.gmra.mrb[0].mxu0 %v643
        %v711 = vpop.f32.mrb[0].mxu0
        %v712 = vadd.f32 0.0, %v711
        %v713 = vpop.f32.mrb[0].mxu0
        %714 = vdwg.mxu0
        %v715 = vld [vmem:[%s3] sm:$0xff]
        %v716 = vld [vmem:[%s3 + $0x8] sm:$0xff]
        %v717 = vld [vmem:[%s3 + $0x10] sm:$0xff]
        %v718 = vld [vmem:[%s3 + $0x18] sm:$0xff]
        %v720 = vsel %vm614, %v712, 0
        %722 = vmatprep.subr.mxu0 0.0
        %723 = vmatpush1.msra.mxu0 %v715
        %724 = vmatprep.subr.mxu0 0.0
        %725 = vmatpush1.msra.mxu0 %v716
        %726 = vmatprep.subr.mxu0 0.0
        %727 = vmatpush1.msra.mxu0 %v717
        %728 = vmatprep.subr.mxu0 0.0
        %729 = vmatpush1.msra.mxu0 %v718
        %730 = vmatprep.subr.mxu0 0.0
        %731 = vmatpush1.msra.mxu0 0.0
        %732 = vmatprep.subr.mxu0 0.0
        %733 = vmatpush1.msra.mxu0 0.0
        %734 = vmatprep.subr.mxu0 0.0
        %735 = vmatpush1.msra.mxu0 0.0
        %736 = vmatprep.subr.mxu0 0.0
        %737 = vmatpush1.msra.mxu0 0.0
        %738 = vmatprep.subr.mxu0 0.0
        %739 = vmatpush1.msra.mxu0 0.0
        %740 = vmatprep.subr.mxu0 0.0
        %741 = vmatpush1.msra.mxu0 0.0
        %742 = vmatprep.subr.mxu0 0.0
        %743 = vmatpush1.msra.mxu0 0.0
        %744 = vmatprep.subr.mxu0 0.0
        %745 = vmatpush1.msra.mxu0 0.0
        %746 = vmatprep.subr.mxu0 0.0
        %747 = vmatpush1.msra.mxu0 0.0
        %748 = vmatprep.subr.mxu0 0.0
        %749 = vmatpush1.msra.mxu0 0.0
        %750 = vmatprep.subr.mxu0 0.0
        %751 = vmatpush1.msra.mxu0 0.0
        %752 = vmatprep.subr.mxu0 0.0
        %753 = vmatpush1.msra.mxu0 0.0
        %754 = vmatprep.subr.mxu0 0.0
        %755 = vmatpush1.msra.mxu0 0.0
        %756 = vmatprep.subr.mxu0 0.0
        %757 = vmatpush1.msra.mxu0 0.0
        %758 = vmatprep.subr.mxu0 0.0
        %759 = vmatpush1.msra.mxu0 0.0
        %760 = vmatprep.subr.mxu0 0.0
        %761 = vmatpush1.msra.mxu0 0.0
        %762 = vmatprep.subr.mxu0 0.0
        %763 = vmatpush1.msra.mxu0 0.0
        %764 = vmatprep.subr.mxu0 0.0
        %765 = vmatpush1.msra.mxu0 0.0
        %766 = vmatprep.subr.mxu0 0.0
        %767 = vmatpush1.msra.mxu0 0.0
        %768 = vmatprep.subr.mxu0 0.0
        %769 = vmatpush1.msra.mxu0 0.0
        %770 = vmatprep.subr.mxu0 0.0
        %771 = vmatpush1.msra.mxu0 0.0
        %772 = vmatprep.subr.mxu0 0.0
        %773 = vmatpush1.msra.mxu0 0.0
        %774 = vmatprep.subr.mxu0 0.0
        %775 = vmatpush1.msra.mxu0 0.0
        %776 = vmatprep.subr.mxu0 0.0
        %777 = vmatpush1.msra.mxu0 0.0
        %778 = vmatprep.subr.mxu0 0.0
        %779 = vmatpush1.msra.mxu0 0.0
        %780 = vmatprep.subr.mxu0 0.0
        %781 = vmatpush1.msra.mxu0 0.0
        %782 = vmatprep.subr.mxu0 0.0
        %783 = vmatpush1.msra.mxu0 0.0
        %784 = vmatprep.subr.mxu0 0.0
        %785 = vmatpush1.msra.mxu0 0.0
        %786 = vmatprep.mubr.f32.mxu0 0.0
        %787 = vmatmul.mubr.f32.gmra.mrb[0].mxu0 %v720
        %v788 = vpop.f32.mrb[0].mxu0
        %v789 = vadd.f32 0.0, %v788
        %v790 = vpop.f32.mrb[0].mxu0
        %791 = vdwg.mxu0
        %v792 = vlaneseq
        %v793 = vshrl.u32 %v792, 7
        %v794 = vsub.s32 0, %v793
        %v795 = vrot.slane %v789, %v794
        %v796 = vsub.f32 %v606, %v795
        %v797 = vsub.f32 %v607, %v795
        %v798 = vsub.f32 %v608, %v795
        %v799 = vsub.f32 %v609, %v795
        %v800 = vsub.f32 %v610, %v795
        %v801 = vsub.f32 %v611, %v795
        %v802 = vsub.f32 %v612, %v795
        %v803 = vsub.f32 %v613, %v795
        %v804 = vmul.f32 %v796, %v796
        %v805 = vmul.f32 %v797, %v797
        %v806 = vmul.f32 %v798, %v798
        %v807 = vmul.f32 %v799, %v799
        %v808 = vmul.f32 %v800, %v800
        %v809 = vmul.f32 %v801, %v801
        %v810 = vmul.f32 %v802, %v802
        %v811 = vmul.f32 %v803, %v803
        %v812 = vsel %vm614, %v804, 0.0
        %v813 = vsel %vm614, %v805, 0.0
        %v814 = vadd.f32 %v812, %v813
        %v815 = vsel %vm614, %v806, 0.0
        %v816 = vadd.f32 %v814, %v815
        %v817 = vsel %vm614, %v807, 0.0
        %v818 = vadd.f32 %v816, %v817
        %v819 = vsel %vm614, %v808, 0.0
        %v820 = vadd.f32 %v818, %v819
        %v821 = vsel %vm614, %v809, 0.0
        %v822 = vadd.f32 %v820, %v821
        %v823 = vsel %vm614, %v810, 0.0
        %v824 = vadd.f32 %v822, %v823
        %v825 = vsel %vm614, %v811, 0.0
        %v826 = vadd.f32 %v824, %v825
        %v827 = vsel %vm614, %v826, 0.0
        %v828 = vrot.slane %v827, 4
        %v829 = vadd.f32 %v827, %v828
        %v830 = vrot.slane %v829, 2
        %v831 = vadd.f32 %v829, %v830
        %v832 = vrot.slane %v831, 1
        %v833 = vadd.f32 %v831, %v832
        %v834 = vmul.f32 %v833, 0.015625
        %v836 = vsel %vm614, %v834, 0
        %838 = vmatprep.subr.mxu0 0.0
        %839 = vmatpush1.msra.mxu0 %v638
        %840 = vmatprep.subr.mxu0 0.0
        %841 = vmatpush1.msra.mxu0 %v639
        %842 = vmatprep.subr.mxu0 0.0
        %843 = vmatpush1.msra.mxu0 %v640
        %844 = vmatprep.subr.mxu0 0.0
        %845 = vmatpush1.msra.mxu0 %v641
        %846 = vmatprep.subr.mxu0 0.0
        %847 = vmatpush1.msra.mxu0 0.0
        %848 = vmatprep.subr.mxu0 0.0
        %849 = vmatpush1.msra.mxu0 0.0
        %850 = vmatprep.subr.mxu0 0.0
        %851 = vmatpush1.msra.mxu0 0.0
        %852 = vmatprep.subr.mxu0 0.0
        %853 = vmatpush1.msra.mxu0 0.0
        %854 = vmatprep.subr.mxu0 0.0
        %855 = vmatpush1.msra.mxu0 0.0
        %856 = vmatprep.subr.mxu0 0.0
        %857 = vmatpush1.msra.mxu0 0.0
        %858 = vmatprep.subr.mxu0 0.0
        %859 = vmatpush1.msra.mxu0 0.0
        %860 = vmatprep.subr.mxu0 0.0
        %861 = vmatpush1.msra.mxu0 0.0
        %862 = vmatprep.subr.mxu0 0.0
        %863 = vmatpush1.msra.mxu0 0.0
        %864 = vmatprep.subr.mxu0 0.0
        %865 = vmatpush1.msra.mxu0 0.0
        %866 = vmatprep.subr.mxu0 0.0
        %867 = vmatpush1.msra.mxu0 0.0
        %868 = vmatprep.subr.mxu0 0.0
        %869 = vmatpush1.msra.mxu0 0.0
        %870 = vmatprep.subr.mxu0 0.0
        %871 = vmatpush1.msra.mxu0 0.0
        %872 = vmatprep.subr.mxu0 0.0
        %873 = vmatpush1.msra.mxu0 0.0
        %874 = vmatprep.subr.mxu0 0.0
        %875 = vmatpush1.msra.mxu0 0.0
        %876 = vmatprep.subr.mxu0 0.0
        %877 = vmatpush1.msra.mxu0 0.0
        %878 = vmatprep.subr.mxu0 0.0
        %879 = vmatpush1.msra.mxu0 0.0
        %880 = vmatprep.subr.mxu0 0.0
        %881 = vmatpush1.msra.mxu0 0.0
        %882 = vmatprep.subr.mxu0 0.0
        %883 = vmatpush1.msra.mxu0 0.0
        %884 = vmatprep.subr.mxu0 0.0
        %885 = vmatpush1.msra.mxu0 0.0
        %886 = vmatprep.subr.mxu0 0.0
        %887 = vmatpush1.msra.mxu0 0.0
        %888 = vmatprep.subr.mxu0 0.0
        %889 = vmatpush1.msra.mxu0 0.0
        %890 = vmatprep.subr.mxu0 0.0
        %891 = vmatpush1.msra.mxu0 0.0
        %892 = vmatprep.subr.mxu0 0.0
        %893 = vmatpush1.msra.mxu0 0.0
        %894 = vmatprep.subr.mxu0 0.0
        %895 = vmatpush1.msra.mxu0 0.0
        %896 = vmatprep.subr.mxu0 0.0
        %897 = vmatpush1.msra.mxu0 0.0
        %898 = vmatprep.subr.mxu0 0.0
        %899 = vmatpush1.msra.mxu0 0.0
        %900 = vmatprep.subr.mxu0 0.0
        %901 = vmatpush1.msra.mxu0 0.0
        %902 = vmatprep.mubr.f32.mxu0 0.0
        %903 = vmatmul.mubr.f32.gmra.mrb[0].mxu0 %v836
        %v904 = vpop.f32.mrb[0].mxu0
        %v905 = vadd.f32 0.0, %v904
        %v906 = vpop.f32.mrb[0].mxu0
        %907 = vdwg.mxu0
        %v909 = vsel %vm614, %v905, 0
        %911 = vmatprep.subr.mxu0 0.0
        %912 = vmatpush1.msra.mxu0 %v715
        %913 = vmatprep.subr.mxu0 0.0
        %914 = vmatpush1.msra.mxu0 %v716
        %915 = vmatprep.subr.mxu0 0.0
        %916 = vmatpush1.msra.mxu0 %v717
        %917 = vmatprep.subr.mxu0 0.0
        %918 = vmatpush1.msra.mxu0 %v718
        %919 = vmatprep.subr.mxu0 0.0
        %920 = vmatpush1.msra.mxu0 0.0
        %921 = vmatprep.subr.mxu0 0.0
        %922 = vmatpush1.msra.mxu0 0.0
        %923 = vmatprep.subr.mxu0 0.0
        %924 = vmatpush1.msra.mxu0 0.0
        %925 = vmatprep.subr.mxu0 0.0
        %926 = vmatpush1.msra.mxu0 0.0
        %927 = vmatprep.subr.mxu0 0.0
        %928 = vmatpush1.msra.mxu0 0.0
        %929 = vmatprep.subr.mxu0 0.0
        %930 = vmatpush1.msra.mxu0 0.0
        %931 = vmatprep.subr.mxu0 0.0
        %932 = vmatpush1.msra.mxu0 0.0
        %933 = vmatprep.subr.mxu0 0.0
        %934 = vmatpush1.msra.mxu0 0.0
        %935 = vmatprep.subr.mxu0 0.0
        %936 = vmatpush1.msra.mxu0 0.0
        %937 = vmatprep.subr.mxu0 0.0
        %938 = vmatpush1.msra.mxu0 0.0
        %939 = vmatprep.subr.mxu0 0.0
        %940 = vmatpush1.msra.mxu0 0.0
        %941 = vmatprep.subr.mxu0 0.0
        %942 = vmatpush1.msra.mxu0 0.0
        %943 = vmatprep.subr.mxu0 0.0
        %944 = vmatpush1.msra.mxu0 0.0
        %945 = vmatprep.subr.mxu0 0.0
        %946 = vmatpush1.msra.mxu0 0.0
        %947 = vmatprep.subr.mxu0 0.0
        %948 = vmatpush1.msra.mxu0 0.0
        %949 = vmatprep.subr.mxu0 0.0
        %950 = vmatpush1.msra.mxu0 0.0
        %951 = vmatprep.subr.mxu0 0.0
        %952 = vmatpush1.msra.mxu0 0.0
        %953 = vmatprep.subr.mxu0 0.0
        %954 = vmatpush1.msra.mxu0 0.0
        %955 = vmatprep.subr.mxu0 0.0
        %956 = vmatpush1.msra.mxu0 0.0
        %957 = vmatprep.subr.mxu0 0.0
        %958 = vmatpush1.msra.mxu0 0.0
        %959 = vmatprep.subr.mxu0 0.0
        %960 = vmatpush1.msra.mxu0 0.0
        %961 = vmatprep.subr.mxu0 0.0
        %962 = vmatpush1.msra.mxu0 0.0
        %963 = vmatprep.subr.mxu0 0.0
        %964 = vmatpush1.msra.mxu0 0.0
        %965 = vmatprep.subr.mxu0 0.0
        %966 = vmatpush1.msra.mxu0 0.0
        %967 = vmatprep.subr.mxu0 0.0
        %968 = vmatpush1.msra.mxu0 0.0
        %969 = vmatprep.subr.mxu0 0.0
        %970 = vmatpush1.msra.mxu0 0.0
        %971 = vmatprep.subr.mxu0 0.0
        %972 = vmatpush1.msra.mxu0 0.0
        %973 = vmatprep.subr.mxu0 0.0
        %974 = vmatpush1.msra.mxu0 0.0
        %975 = vmatprep.mubr.f32.mxu0 0.0
        %976 = vmatmul.mubr.f32.gmra.mrb[0].mxu0 %v909
        %v977 = vpop.f32.mrb[0].mxu0
        %v978 = vadd.f32 1e-05, %v977
        %v979 = vpop.f32.mrb[0].mxu0
        %980 = vdwg.mxu0
        %v981 = vrsqrt.pop %v978
        %v982 = vld [vmem:[%s4] sm:$0x1]
        %v983 = vmul.f32 %v981, %v982
        %v984 = vlaneseq
        %v985 = vshrl.u32 %v984, 7
        %v986 = vsub.s32 0, %v985
        %v987 = vrot.slane %v983, %v986
        %v988 = vmul.f32 %v796, %v987
        %v989 = vmul.f32 %v797, %v987
        %v990 = vmul.f32 %v798, %v987
        %v991 = vmul.f32 %v799, %v987
        %v992 = vmul.f32 %v800, %v987
        %v993 = vmul.f32 %v801, %v987
        %v994 = vmul.f32 %v802, %v987
        %v995 = vmul.f32 %v803, %v987
        %v996 = vld [vmem:[%s5] sm:$0x1]
        %v998 = vlaneseq
        %v999 = vshrl.u32 %v998, 7
        %v1000 = vsub.s32 0, %v999
        %v1001 = vrot.slane %v996, %v1000
        %v1003 = vadd.f32 %v988, %v1001
        %v1004 = vadd.f32 %v989, %v1001
        %v1005 = vadd.f32 %v990, %v1001
        %v1006 = vadd.f32 %v991, %v1001
        %v1007 = vadd.f32 %v992, %v1001
        %v1008 = vadd.f32 %v993, %v1001
        %v1009 = vadd.f32 %v994, %v1001
        %v1010 = vadd.f32 %v995, %v1001
        %vm1011 = vcmp.gt.f32.partialorder %v1003, 0.0
        %vm1012 = vcmp.gt.f32.partialorder %v1004, 0.0
        %vm1013 = vcmp.gt.f32.partialorder %v1005, 0.0
        %vm1014 = vcmp.gt.f32.partialorder %v1006, 0.0
        %vm1015 = vcmp.gt.f32.partialorder %v1007, 0.0
        %vm1016 = vcmp.gt.f32.partialorder %v1008, 0.0
        %vm1017 = vcmp.gt.f32.partialorder %v1009, 0.0
        %vm1018 = vcmp.gt.f32.partialorder %v1010, 0.0
        %v1019 = vmul.f32 %v1003, 1.442695
        %v1020 = vpow.pop %v1019
        %v1021 = vmul.f32 %v1004, 1.442695
        %v1022 = vpow.pop %v1021
        %v1023 = vmul.f32 %v1005, 1.442695
        %v1024 = vpow.pop %v1023
        %v1025 = vmul.f32 %v1006, 1.442695
        %v1026 = vpow.pop %v1025
        %v1027 = vmul.f32 %v1007, 1.442695
        %v1028 = vpow.pop %v1027
        %v1029 = vmul.f32 %v1008, 1.442695
        %v1030 = vpow.pop %v1029
        %v1031 = vmul.f32 %v1009, 1.442695
        %v1032 = vpow.pop %v1031
        %v1033 = vmul.f32 %v1010, 1.442695
        %v1034 = vpow.pop %v1033
        %v1035 = vsub.f32 %v1020, 1.0
        %v1036 = vsub.f32 %v1022, 1.0
        %v1037 = vsub.f32 %v1024, 1.0
        %v1038 = vsub.f32 %v1026, 1.0
        %v1039 = vsub.f32 %v1028, 1.0
        %v1040 = vsub.f32 %v1030, 1.0
        %v1041 = vsub.f32 %v1032, 1.0
        %v1042 = vsub.f32 %v1034, 1.0
        %v1043 = vmul.f32 %v1035, 1.6732632
        %v1044 = vmul.f32 %v1036, 1.6732632
        %v1045 = vmul.f32 %v1037, 1.6732632
        %v1046 = vmul.f32 %v1038, 1.6732632
        %v1047 = vmul.f32 %v1039, 1.6732632
        %v1048 = vmul.f32 %v1040, 1.6732632
        %v1049 = vmul.f32 %v1041, 1.6732632
        %v1050 = vmul.f32 %v1042, 1.6732632
        %v1051 = vsel %vm1011, %v1003, %v1043
        %v1052 = vsel %vm1012, %v1004, %v1044
        %v1053 = vsel %vm1013, %v1005, %v1045
        %v1054 = vsel %vm1014, %v1006, %v1046
        %v1055 = vsel %vm1015, %v1007, %v1047
        %v1056 = vsel %vm1016, %v1008, %v1048
        %v1057 = vsel %vm1017, %v1009, %v1049
        %v1058 = vsel %vm1018, %v1010, %v1050
        %v1059 = vmul.f32 %v1051, 1.050701
        %v1060 = vmul.f32 %v1052, 1.050701
        %v1061 = vmul.f32 %v1053, 1.050701
        %v1062 = vmul.f32 %v1054, 1.050701
        %v1063 = vmul.f32 %v1055, 1.050701
        %v1064 = vmul.f32 %v1056, 1.050701
        %v1065 = vmul.f32 %v1057, 1.050701
        %v1066 = vmul.f32 %v1058, 1.050701
        %v1067 = vpack.c.bf16 0.0, %v1059
        %v1068 = vpack.c.bf16 0.0, %v1060
        %v1069 = vpack.c.bf16 0.0, %v1061
        %v1070 = vpack.c.bf16 0.0, %v1062
        %v1071 = vpack.c.bf16 0.0, %v1063
        %v1072 = vpack.c.bf16 0.0, %v1064
        %v1073 = vpack.c.bf16 0.0, %v1065
        %v1074 = vpack.c.bf16 0.0, %v1066
        %1075 = vst.msk [vmem:[#allocation2] sm:$0xff] %vm614, 0
        %vm1076 = vcmask 257024
        %1077 = vst.msk [vmem:[#allocation2 + $0x8] sm:$0xf] %vm1076, 0
        %vm1078 = vcmask 261124
        %1079 = vst.msk [vmem:[#allocation2 + $0x48] sm:$0xf0] %vm1078, 0
        %1080 = vst.msk [vmem:[#allocation2 + $0x50] sm:$0xff] %vm614, 0
        %vm1089 = vcmask 1043456
        %v1090 = vrot.slane %v1067, 4
        %v1091 = vrot.slane %v1068, 4
        %v1092 = vsel %vm1089, %v1090, %v1091
        %v1093 = vrot.slane %v1069, 4
        %v1094 = vsel %vm1089, %v1091, %v1093
        %v1095 = vrot.slane %v1070, 4
        %v1096 = vsel %vm1089, %v1093, %v1095
        %v1097 = vrot.slane %v1071, 4
        %v1098 = vsel %vm1089, %v1095, %v1097
        %v1099 = vrot.slane %v1072, 4
        %v1100 = vsel %vm1089, %v1097, %v1099
        %v1101 = vrot.slane %v1073, 4
        %v1102 = vsel %vm1089, %v1099, %v1101
        %v1103 = vrot.slane %v1074, 4
        %v1104 = vsel %vm1089, %v1101, %v1103
        %1114 = vst.msk [vmem:[#allocation2 + $0x8] sm:$0xf0] %vm1078, %v1090
        %1115 = vst.msk [vmem:[#allocation2 + $0x10] sm:$0xff] %vm614, %v1092
        %1116 = vst.msk [vmem:[#allocation2 + $0x18] sm:$0xff] %vm614, %v1094
        %1117 = vst.msk [vmem:[#allocation2 + $0x20] sm:$0xff] %vm614, %v1096
        %1118 = vst.msk [vmem:[#allocation2 + $0x28] sm:$0xff] %vm614, %v1098
        %1119 = vst.msk [vmem:[#allocation2 + $0x30] sm:$0xff] %vm614, %v1100
        %1120 = vst.msk [vmem:[#allocation2 + $0x38] sm:$0xff] %vm614, %v1102
        %1121 = vst.msk [vmem:[#allocation2 + $0x40] sm:$0xff] %vm614, %v1104
        %1122 = vst.msk [vmem:[#allocation2 + $0x48] sm:$0xf] %vm1076, %v1103
        %v1123 = vld [vmem:[#allocation7] sm:$0x1]
        %v1124 = vld [vmem:[#allocation2] sm:$0xf8]
        %v1125 = vld [vmem:[#allocation2 + $0x8] sm:$0xff]
        %v1126 = vld [vmem:[#allocation2 + $0x10] sm:$0xff]
        %v1127 = vld [vmem:[#allocation2 + $0x18] sm:$0xff]
        %v1128 = vld [vmem:[#allocation2 + $0x20] sm:$0xff]
        %v1129 = vld [vmem:[#allocation2 + $0x28] sm:$0xff]
        %v1130 = vld [vmem:[#allocation2 + $0x30] sm:$0xff]
        %v1131 = vld [vmem:[#allocation2 + $0x38] sm:$0xff]
        %v1132 = vld [vmem:[#allocation2 + $0x40] sm:$0xf]
        %v1133 = vld [vmem:[%s6] sm:$0xf]
        %v1134 = vld [vmem:[%s6 + $0x4] sm:$0xf]
        %v1135 = vld [vmem:[%s6 + $0x8] sm:$0xf]
        %v1136 = vld [vmem:[%s6 + $0xc] sm:$0xf]
        %v1137 = vld [vmem:[#allocation2] sm:$0xf0]
        %s1138 = scalar_lea.vmem %s6, 16
        %v1139 = vld [vmem:[%s1138] sm:$0xf]
        %v1140 = vld [vmem:[%s1138 + $0x4] sm:$0xf]
        %v1141 = vld [vmem:[%s1138 + $0x8] sm:$0xf]
        %v1142 = vld [vmem:[%s1138 + $0xc] sm:$0xf]
        %v1152 = vrot.slane %v1137, 4
        %v1153 = vrot.slane %v1125, 4
        %v1154 = vsel %vm1089, %v1152, %v1153
        %v1155 = vrot.slane %v1126, 4
        %v1156 = vsel %vm1089, %v1153, %v1155
        %v1157 = vrot.slane %v1127, 4
        %v1158 = vsel %vm1089, %v1155, %v1157
        %v1159 = vrot.slane %v1128, 4
        %v1160 = vsel %vm1089, %v1157, %v1159
        %v1161 = vrot.slane %v1129, 4
        %v1162 = vsel %vm1089, %v1159, %v1161
        %v1163 = vrot.slane %v1130, 4
        %v1164 = vsel %vm1089, %v1161, %v1163
        %v1165 = vrot.slane %v1131, 4
        %v1166 = vsel %vm1089, %v1163, %v1165
        %v1167 = vrot.slane %v1132, 4
        %v1168 = vsel %vm1089, %v1165, %v1167
        %v1173 = vunpack.c.l.b16 %v1139
        %v1174 = vunpack.c.l.b16 %v1140
        %v1175 = vunpack.c.l.b16 %v1141
        %v1176 = vunpack.c.l.b16 %v1142
        %v1177 = vpack.c.b16 %v1174, %v1173
        %v1178 = vpack.c.b16 %v1176, %v1175
        %v1182 = vsel %vm614, %v1154, 0
        %v1185 = vsel %vm614, %v1156, 0
        %v1188 = vsel %vm614, %v1158, 0
        %v1191 = vsel %vm614, %v1160, 0
        %v1194 = vsel %vm614, %v1162, 0
        %v1197 = vsel %vm614, %v1164, 0
        %v1200 = vsel %vm614, %v1166, 0
        %v1203 = vsel %vm614, %v1168, 0
        %1205 = vmatprep.subr.bf16.mxu0 0
        %1206 = vmatpush1.bf16.msra.mxu0 %v1177
        %1207 = vmatprep.subr.bf16.mxu0 0
        %1208 = vmatpush1.bf16.msra.mxu0 %v1178
        %1209 = vmatprep.subr.bf16.mxu0 0
        %1210 = vmatpush1.bf16.msra.mxu0 0
        %1211 = vmatprep.subr.bf16.mxu0 0
        %1212 = vmatpush1.bf16.msra.mxu0 0
        %1213 = vmatprep.subr.bf16.mxu0 0
        %1214 = vmatpush1.bf16.msra.mxu0 0
        %1215 = vmatprep.subr.bf16.mxu0 0
        %1216 = vmatpush1.bf16.msra.mxu0 0
        %1217 = vmatprep.subr.bf16.mxu0 0
        %1218 = vmatpush1.bf16.msra.mxu0 0
        %1219 = vmatprep.subr.bf16.mxu0 0
        %1220 = vmatpush1.bf16.msra.mxu0 0
        %1221 = vmatprep.subr.bf16.mxu0 0
        %1222 = vmatpush1.bf16.msra.mxu0 0
        %1223 = vmatprep.subr.bf16.mxu0 0
        %1224 = vmatpush1.bf16.msra.mxu0 0
        %1225 = vmatprep.subr.bf16.mxu0 0
        %1226 = vmatpush1.bf16.msra.mxu0 0
        %1227 = vmatprep.subr.bf16.mxu0 0
        %1228 = vmatpush1.bf16.msra.mxu0 0
        %1229 = vmatprep.subr.bf16.mxu0 0
        %1230 = vmatpush1.bf16.msra.mxu0 0
        %1231 = vmatprep.subr.bf16.mxu0 0
        %1232 = vmatpush1.bf16.msra.mxu0 0
        %1233 = vmatprep.subr.bf16.mxu0 0
        %1234 = vmatpush1.bf16.msra.mxu0 0
        %1235 = vmatprep.subr.bf16.mxu0 0
        %1236 = vmatpush1.bf16.msra.mxu0 0
        %1237 = vmatprep.mubr.bf16.mxu0 0
        %1238 = vmatmul.mubr.bf16.gmra.mrb[0].mxu0 %v1182
        %v1239 = vpop.f32.mrb[0].mxu0
        %v1240 = vadd.f32 0.0, %v1239
        %v1241 = vpop.f32.mrb[0].mxu0
        %v1242 = vpop.f32.mrb[0].mxu0
        %v1243 = vadd.f32 0.0, %v1242
        %v1244 = vpop.f32.mrb[0].mxu0
        %1245 = vmatprep.mubr.bf16.mxu0 0
        %1246 = vmatmul.mubr.bf16.gmra.mrb[0].mxu0 %v1185
        %v1247 = vpop.f32.mrb[0].mxu0
        %v1248 = vadd.f32 0.0, %v1247
        %v1249 = vpop.f32.mrb[0].mxu0
        %v1250 = vpop.f32.mrb[0].mxu0
        %v1251 = vadd.f32 0.0, %v1250
        %v1252 = vpop.f32.mrb[0].mxu0
        %1253 = vmatprep.mubr.bf16.mxu0 0
        %1254 = vmatmul.mubr.bf16.gmra.mrb[0].mxu0 %v1188
        %v1255 = vpop.f32.mrb[0].mxu0
        %v1256 = vadd.f32 0.0, %v1255
        %v1257 = vpop.f32.mrb[0].mxu0
        %v1258 = vpop.f32.mrb[0].mxu0
        %v1259 = vadd.f32 0.0, %v1258
        %v1260 = vpop.f32.mrb[0].mxu0
        %1261 = vmatprep.mubr.bf16.mxu0 0
        %1262 = vmatmul.mubr.bf16.gmra.mrb[0].mxu0 %v1191
        %v1263 = vpop.f32.mrb[0].mxu0
        %v1264 = vadd.f32 0.0, %v1263
        %v1265 = vpop.f32.mrb[0].mxu0
        %v1266 = vpop.f32.mrb[0].mxu0
        %v1267 = vadd.f32 0.0, %v1266
        %v1268 = vpop.f32.mrb[0].mxu0
        %1269 = vmatprep.mubr.bf16.mxu0 0
        %1270 = vmatmul.mubr.bf16.gmra.mrb[0].mxu0 %v1194
        %v1271 = vpop.f32.mrb[0].mxu0
        %v1272 = vadd.f32 0.0, %v1271
        %v1273 = vpop.f32.mrb[0].mxu0
        %v1274 = vpop.f32.mrb[0].mxu0
        %v1275 = vadd.f32 0.0, %v1274
        %v1276 = vpop.f32.mrb[0].mxu0
        %1277 = vmatprep.mubr.bf16.mxu0 0
        %1278 = vmatmul.mubr.bf16.gmra.mrb[0].mxu0 %v1197
        %v1279 = vpop.f32.mrb[0].mxu0
        %v1280 = vadd.f32 0.0, %v1279
        %v1281 = vpop.f32.mrb[0].mxu0
        %v1282 = vpop.f32.mrb[0].mxu0
        %v1283 = vadd.f32 0.0, %v1282
        %v1284 = vpop.f32.mrb[0].mxu0
        %1285 = vmatprep.mubr.bf16.mxu0 0
        %1286 = vmatmul.mubr.bf16.gmra.mrb[0].mxu0 %v1200
        %v1287 = vpop.f32.mrb[0].mxu0
        %v1288 = vadd.f32 0.0, %v1287
        %v1289 = vpop.f32.mrb[0].mxu0
        %v1290 = vpop.f32.mrb[0].mxu0
        %v1291 = vadd.f32 0.0, %v1290
        %v1292 = vpop.f32.mrb[0].mxu0
        %1293 = vmatprep.mubr.bf16.mxu0 0
        %1294 = vmatmul.mubr.bf16.gmra.mrb[0].mxu0 %v1203
        %v1295 = vpop.f32.mrb[0].mxu0
        %v1296 = vadd.f32 0.0, %v1295
        %v1297 = vpop.f32.mrb[0].mxu0
        %v1298 = vpop.f32.mrb[0].mxu0
        %v1299 = vadd.f32 0.0, %v1298
        %v1300 = vpop.f32.mrb[0].mxu0
        %1301 = vdwg.mxu0
        %vm1302 = vsmask.f32 4352
        %v1304 = vshrl.u32 %v1124, 16
        %v1306 = vrot.slane %v1304, 3
        %v1307 = vshll.u32 %v1124, 16
        %v1309 = vrot.slane %v1307, 4
        %v1310 = vor.u32 %v1306, %v1309
        %v1312 = vshrl.u32 %v1125, 16
        %v1314 = vrot.slane %v1312, 3
        %v1315 = vshll.u32 %v1125, 16
        %v1317 = vrot.slane %v1315, 4
        %v1318 = vor.u32 %v1314, %v1317
        %v1319 = vsel %vm1302, %v1310, %v1318
        %v1321 = vshrl.u32 %v1126, 16
        %v1323 = vrot.slane %v1321, 3
        %v1324 = vshll.u32 %v1126, 16
        %v1326 = vrot.slane %v1324, 4
        %v1327 = vor.u32 %v1323, %v1326
        %v1328 = vsel %vm1302, %v1318, %v1327
        %v1330 = vshrl.u32 %v1127, 16
        %v1332 = vrot.slane %v1330, 3
        %v1333 = vshll.u32 %v1127, 16
        %v1335 = vrot.slane %v1333, 4
        %v1336 = vor.u32 %v1332, %v1335
        %v1337 = vsel %vm1302, %v1327, %v1336
        %v1339 = vshrl.u32 %v1128, 16
        %v1341 = vrot.slane %v1339, 3
        %v1342 = vshll.u32 %v1128, 16
        %v1344 = vrot.slane %v1342, 4
        %v1345 = vor.u32 %v1341, %v1344
        %v1346 = vsel %vm1302, %v1336, %v1345
        %v1348 = vshrl.u32 %v1129, 16
        %v1350 = vrot.slane %v1348, 3
        %v1351 = vshll.u32 %v1129, 16
        %v1353 = vrot.slane %v1351, 4
        %v1354 = vor.u32 %v1350, %v1353
        %v1355 = vsel %vm1302, %v1345, %v1354
        %v1357 = vshrl.u32 %v1130, 16
        %v1359 = vrot.slane %v1357, 3
        %v1360 = vshll.u32 %v1130, 16
        %v1362 = vrot.slane %v1360, 4
        %v1363 = vor.u32 %v1359, %v1362
        %v1364 = vsel %vm1302, %v1354, %v1363
        %v1366 = vshrl.u32 %v1131, 16
        %v1368 = vrot.slane %v1366, 3
        %v1369 = vshll.u32 %v1131, 16
        %v1371 = vrot.slane %v1369, 4
        %v1372 = vor.u32 %v1368, %v1371
        %v1373 = vsel %vm1302, %v1363, %v1372
        %v1375 = vshrl.u32 %v1132, 16
        %v1377 = vrot.slane %v1375, 3
        %v1378 = vshll.u32 %v1132, 16
        %v1380 = vrot.slane %v1378, 4
        %v1381 = vor.u32 %v1377, %v1380
        %v1382 = vsel %vm1302, %v1372, %v1381
        %v1387 = vunpack.c.l.b16 %v1133
        %v1388 = vunpack.c.l.b16 %v1134
        %v1389 = vunpack.c.l.b16 %v1135
        %v1390 = vunpack.c.l.b16 %v1136
        %v1391 = vpack.c.b16 %v1388, %v1387
        %v1392 = vpack.c.b16 %v1390, %v1389
        %v1396 = vsel %vm614, %v1319, 0
        %v1399 = vsel %vm614, %v1328, 0
        %v1402 = vsel %vm614, %v1337, 0
        %v1405 = vsel %vm614, %v1346, 0
        %v1408 = vsel %vm614, %v1355, 0
        %v1411 = vsel %vm614, %v1364, 0
        %v1414 = vsel %vm614, %v1373, 0
        %v1417 = vsel %vm614, %v1382, 0
        %1419 = vmatprep.subr.bf16.mxu0 0
        %1420 = vmatpush1.bf16.msra.mxu0 %v1391
        %1421 = vmatprep.subr.bf16.mxu0 0
        %1422 = vmatpush1.bf16.msra.mxu0 %v1392
        %1423 = vmatprep.subr.bf16.mxu0 0
        %1424 = vmatpush1.bf16.msra.mxu0 0
        %1425 = vmatprep.subr.bf16.mxu0 0
        %1426 = vmatpush1.bf16.msra.mxu0 0
        %1427 = vmatprep.subr.bf16.mxu0 0
        %1428 = vmatpush1.bf16.msra.mxu0 0
        %1429 = vmatprep.subr.bf16.mxu0 0
        %1430 = vmatpush1.bf16.msra.mxu0 0
        %1431 = vmatprep.subr.bf16.mxu0 0
        %1432 = vmatpush1.bf16.msra.mxu0 0
        %1433 = vmatprep.subr.bf16.mxu0 0
        %1434 = vmatpush1.bf16.msra.mxu0 0
        %1435 = vmatprep.subr.bf16.mxu0 0
        %1436 = vmatpush1.bf16.msra.mxu0 0
        %1437 = vmatprep.subr.bf16.mxu0 0
        %1438 = vmatpush1.bf16.msra.mxu0 0
        %1439 = vmatprep.subr.bf16.mxu0 0
        %1440 = vmatpush1.bf16.msra.mxu0 0
        %1441 = vmatprep.subr.bf16.mxu0 0
        %1442 = vmatpush1.bf16.msra.mxu0 0
        %1443 = vmatprep.subr.bf16.mxu0 0
        %1444 = vmatpush1.bf16.msra.mxu0 0
        %1445 = vmatprep.subr.bf16.mxu0 0
        %1446 = vmatpush1.bf16.msra.mxu0 0
        %1447 = vmatprep.subr.bf16.mxu0 0
        %1448 = vmatpush1.bf16.msra.mxu0 0
        %1449 = vmatprep.subr.bf16.mxu0 0
        %1450 = vmatpush1.bf16.msra.mxu0 0
        %1451 = vmatprep.mubr.bf16.mxu0 0
        %1452 = vmatmul.mubr.bf16.gmra.mrb[0].mxu0 %v1396
        %v1453 = vpop.f32.mrb[0].mxu0
        %v1454 = vadd.f32 %v1240, %v1453
        %v1455 = vpop.f32.mrb[0].mxu0
        %v1456 = vpop.f32.mrb[0].mxu0
        %v1457 = vadd.f32 %v1243, %v1456
        %v1458 = vpop.f32.mrb[0].mxu0
        %1459 = vmatprep.mubr.bf16.mxu0 0
        %1460 = vmatmul.mubr.bf16.gmra.mrb[0].mxu0 %v1399
        %v1461 = vpop.f32.mrb[0].mxu0
        %v1462 = vadd.f32 %v1248, %v1461
        %v1463 = vpop.f32.mrb[0].mxu0
        %v1464 = vpop.f32.mrb[0].mxu0
        %v1465 = vadd.f32 %v1251, %v1464
        %v1466 = vpop.f32.mrb[0].mxu0
        %1467 = vmatprep.mubr.bf16.mxu0 0
        %1468 = vmatmul.mubr.bf16.gmra.mrb[0].mxu0 %v1402
        %v1469 = vpop.f32.mrb[0].mxu0
        %v1470 = vadd.f32 %v1256, %v1469
        %v1471 = vpop.f32.mrb[0].mxu0
        %v1472 = vpop.f32.mrb[0].mxu0
        %v1473 = vadd.f32 %v1259, %v1472
        %v1474 = vpop.f32.mrb[0].mxu0
        %1475 = vmatprep.mubr.bf16.mxu0 0
        %1476 = vmatmul.mubr.bf16.gmra.mrb[0].mxu0 %v1405
        %v1477 = vpop.f32.mrb[0].mxu0
        %v1478 = vadd.f32 %v1264, %v1477
        %v1479 = vpop.f32.mrb[0].mxu0
        %v1480 = vpop.f32.mrb[0].mxu0
        %v1481 = vadd.f32 %v1267, %v1480
        %v1482 = vpop.f32.mrb[0].mxu0
        %1483 = vmatprep.mubr.bf16.mxu0 0
        %1484 = vmatmul.mubr.bf16.gmra.mrb[0].mxu0 %v1408
        %v1485 = vpop.f32.mrb[0].mxu0
        %v1486 = vadd.f32 %v1272, %v1485
        %v1487 = vpop.f32.mrb[0].mxu0
        %v1488 = vpop.f32.mrb[0].mxu0
        %v1489 = vadd.f32 %v1275, %v1488
        %v1490 = vpop.f32.mrb[0].mxu0
        %1491 = vmatprep.mubr.bf16.mxu0 0
        %1492 = vmatmul.mubr.bf16.gmra.mrb[0].mxu0 %v1411
        %v1493 = vpop.f32.mrb[0].mxu0
        %v1494 = vadd.f32 %v1280, %v1493
        %v1495 = vpop.f32.mrb[0].mxu0
        %v1496 = vpop.f32.mrb[0].mxu0
        %v1497 = vadd.f32 %v1283, %v1496
        %v1498 = vpop.f32.mrb[0].mxu0
        %1499 = vmatprep.mubr.bf16.mxu0 0
        %1500 = vmatmul.mubr.bf16.gmra.mrb[0].mxu0 %v1414
        %v1501 = vpop.f32.mrb[0].mxu0
        %v1502 = vadd.f32 %v1288, %v1501
        %v1503 = vpop.f32.mrb[0].mxu0
        %v1504 = vpop.f32.mrb[0].mxu0
        %v1505 = vadd.f32 %v1291, %v1504
        %v1506 = vpop.f32.mrb[0].mxu0
        %1507 = vmatprep.mubr.bf16.mxu0 0
        %1508 = vmatmul.mubr.bf16.gmra.mrb[0].mxu0 %v1417
        %v1509 = vpop.f32.mrb[0].mxu0
        %v1510 = vadd.f32 %v1296, %v1509
        %v1511 = vpop.f32.mrb[0].mxu0
        %v1512 = vpop.f32.mrb[0].mxu0
        %v1513 = vadd.f32 %v1299, %v1512
        %v1514 = vpop.f32.mrb[0].mxu0
        %1515 = vdwg.mxu0
        %v1516 = vld [vmem:[#allocation2 + $0x40] sm:$0x1f]
        %s1517 = scalar_lea.vmem %s6, 32
        %v1518 = vld [vmem:[%s1517] sm:$0xf]
        %v1519 = vld [vmem:[%s1517 + $0x4] sm:$0xf]
        %v1520 = vld [vmem:[%s1517 + $0x8] sm:$0xf]
        %v1521 = vld [vmem:[%s1517 + $0xc] sm:$0xf]
        %vm1522 = vsmask.f32 3328
        %v1524 = vshrl.u32 %v1137, 16
        %v1526 = vrot.slane %v1524, 4
        %v1527 = vshll.u32 %v1137, 16
        %v1529 = vrot.slane %v1527, 5
        %v1530 = vor.u32 %v1526, %v1529
        %v1531 = vrot.slane %v1312, 4
        %v1532 = vrot.slane %v1315, 5
        %v1533 = vor.u32 %v1531, %v1532
        %v1534 = vsel %vm1522, %v1530, %v1533
        %v1535 = vrot.slane %v1321, 4
        %v1536 = vrot.slane %v1324, 5
        %v1537 = vor.u32 %v1535, %v1536
        %v1538 = vsel %vm1522, %v1533, %v1537
        %v1539 = vrot.slane %v1330, 4
        %v1540 = vrot.slane %v1333, 5
        %v1541 = vor.u32 %v1539, %v1540
        %v1542 = vsel %vm1522, %v1537, %v1541
        %v1543 = vrot.slane %v1339, 4
        %v1544 = vrot.slane %v1342, 5
        %v1545 = vor.u32 %v1543, %v1544
        %v1546 = vsel %vm1522, %v1541, %v1545
        %v1547 = vrot.slane %v1348, 4
        %v1548 = vrot.slane %v1351, 5
        %v1549 = vor.u32 %v1547, %v1548
        %v1550 = vsel %vm1522, %v1545, %v1549
        %v1551 = vrot.slane %v1357, 4
        %v1552 = vrot.slane %v1360, 5
        %v1553 = vor.u32 %v1551, %v1552
        %v1554 = vsel %vm1522, %v1549, %v1553
        %v1555 = vrot.slane %v1366, 4
        %v1556 = vrot.slane %v1369, 5
        %v1557 = vor.u32 %v1555, %v1556
        %v1558 = vsel %vm1522, %v1553, %v1557
        %v1560 = vshrl.u32 %v1516, 16
        %v1562 = vrot.slane %v1560, 4
        %v1563 = vshll.u32 %v1516, 16
        %v1565 = vrot.slane %v1563, 5
        %v1566 = vor.u32 %v1562, %v1565
        %v1567 = vsel %vm1522, %v1557, %v1566
        %v1572 = vunpack.c.l.b16 %v1518
        %v1573 = vunpack.c.l.b16 %v1519
        %v1574 = vunpack.c.l.b16 %v1520
        %v1575 = vunpack.c.l.b16 %v1521
        %v1576 = vpack.c.b16 %v1573, %v1572
        %v1577 = vpack.c.b16 %v1575, %v1574
        %v1581 = vsel %vm614, %v1534, 0
        %v1584 = vsel %vm614, %v1538, 0
        %v1587 = vsel %vm614, %v1542, 0
        %v1590 = vsel %vm614, %v1546, 0
        %v1593 = vsel %vm614, %v1550, 0
        %v1596 = vsel %vm614, %v1554, 0
        %v1599 = vsel %vm614, %v1558, 0
        %v1602 = vsel %vm614, %v1567, 0
        %1604 = vmatprep.subr.bf16.mxu0 0
        %1605 = vmatpush1.bf16.msra.mxu0 %v1576
        %1606 = vmatprep.subr.bf16.mxu0 0
        %1607 = vmatpush1.bf16.msra.mxu0 %v1577
        %1608 = vmatprep.subr.bf16.mxu0 0
        %1609 = vmatpush1.bf16.msra.mxu0 0
        %1610 = vmatprep.subr.bf16.mxu0 0
        %1611 = vmatpush1.bf16.msra.mxu0 0
        %1612 = vmatprep.subr.bf16.mxu0 0
        %1613 = vmatpush1.bf16.msra.mxu0 0
        %1614 = vmatprep.subr.bf16.mxu0 0
        %1615 = vmatpush1.bf16.msra.mxu0 0
        %1616 = vmatprep.subr.bf16.mxu0 0
        %1617 = vmatpush1.bf16.msra.mxu0 0
        %1618 = vmatprep.subr.bf16.mxu0 0
        %1619 = vmatpush1.bf16.msra.mxu0 0
        %1620 = vmatprep.subr.bf16.mxu0 0
        %1621 = vmatpush1.bf16.msra.mxu0 0
        %1622 = vmatprep.subr.bf16.mxu0 0
        %1623 = vmatpush1.bf16.msra.mxu0 0
        %1624 = vmatprep.subr.bf16.mxu0 0
        %1625 = vmatpush1.bf16.msra.mxu0 0
        %1626 = vmatprep.subr.bf16.mxu0 0
        %1627 = vmatpush1.bf16.msra.mxu0 0
        %1628 = vmatprep.subr.bf16.mxu0 0
        %1629 = vmatpush1.bf16.msra.mxu0 0
        %1630 = vmatprep.subr.bf16.mxu0 0
        %1631 = vmatpush1.bf16.msra.mxu0 0
        %1632 = vmatprep.subr.bf16.mxu0 0
        %1633 = vmatpush1.bf16.msra.mxu0 0
        %1634 = vmatprep.subr.bf16.mxu0 0
        %1635 = vmatpush1.bf16.msra.mxu0 0
        %1636 = vmatprep.mubr.bf16.mxu0 0
        %1637 = vmatmul.mubr.bf16.gmra.mrb[0].mxu0 %v1581
        %v1638 = vpop.f32.mrb[0].mxu0
        %v1639 = vadd.f32 0.0, %v1638
        %v1640 = vpop.f32.mrb[0].mxu0
        %v1641 = vpop.f32.mrb[0].mxu0
        %v1642 = vadd.f32 0.0, %v1641
        %v1643 = vpop.f32.mrb[0].mxu0
        %1644 = vmatprep.mubr.bf16.mxu0 0
        %1645 = vmatmul.mubr.bf16.gmra.mrb[0].mxu0 %v1584
        %v1646 = vpop.f32.mrb[0].mxu0
        %v1647 = vadd.f32 0.0, %v1646
        %v1648 = vpop.f32.mrb[0].mxu0
        %v1649 = vpop.f32.mrb[0].mxu0
        %v1650 = vadd.f32 0.0, %v1649
        %v1651 = vpop.f32.mrb[0].mxu0
        %1652 = vmatprep.mubr.bf16.mxu0 0
        %1653 = vmatmul.mubr.bf16.gmra.mrb[0].mxu0 %v1587
        %v1654 = vpop.f32.mrb[0].mxu0
        %v1655 = vadd.f32 0.0, %v1654
        %v1656 = vpop.f32.mrb[0].mxu0
        %v1657 = vpop.f32.mrb[0].mxu0
        %v1658 = vadd.f32 0.0, %v1657
        %v1659 = vpop.f32.mrb[0].mxu0
        %1660 = vmatprep.mubr.bf16.mxu0 0
        %1661 = vmatmul.mubr.bf16.gmra.mrb[0].mxu0 %v1590
        %v1662 = vpop.f32.mrb[0].mxu0
        %v1663 = vadd.f32 0.0, %v1662
        %v1664 = vpop.f32.mrb[0].mxu0
        %v1665 = vpop.f32.mrb[0].mxu0
        %v1666 = vadd.f32 0.0, %v1665
        %v1667 = vpop.f32.mrb[0].mxu0
        %1668 = vmatprep.mubr.bf16.mxu0 0
        %1669 = vmatmul.mubr.bf16.gmra.mrb[0].mxu0 %v1593
        %v1670 = vpop.f32.mrb[0].mxu0
        %v1671 = vadd.f32 0.0, %v1670
        %v1672 = vpop.f32.mrb[0].mxu0
        %v1673 = vpop.f32.mrb[0].mxu0
        %v1674 = vadd.f32 0.0, %v1673
        %v1675 = vpop.f32.mrb[0].mxu0
        %1676 = vmatprep.mubr.bf16.mxu0 0
        %1677 = vmatmul.mubr.bf16.gmra.mrb[0].mxu0 %v1596
        %v1678 = vpop.f32.mrb[0].mxu0
        %v1679 = vadd.f32 0.0, %v1678
        %v1680 = vpop.f32.mrb[0].mxu0
        %v1681 = vpop.f32.mrb[0].mxu0
        %v1682 = vadd.f32 0.0, %v1681
        %v1683 = vpop.f32.mrb[0].mxu0
        %1684 = vmatprep.mubr.bf16.mxu0 0
        %1685 = vmatmul.mubr.bf16.gmra.mrb[0].mxu0 %v1599
        %v1686 = vpop.f32.mrb[0].mxu0
        %v1687 = vadd.f32 0.0, %v1686
        %v1688 = vpop.f32.mrb[0].mxu0
        %v1689 = vpop.f32.mrb[0].mxu0
        %v1690 = vadd.f32 0.0, %v1689
        %v1691 = vpop.f32.mrb[0].mxu0
        %1692 = vmatprep.mubr.bf16.mxu0 0
        %1693 = vmatmul.mubr.bf16.gmra.mrb[0].mxu0 %v1602
        %v1694 = vpop.f32.mrb[0].mxu0
        %v1695 = vadd.f32 0.0, %v1694
        %v1696 = vpop.f32.mrb[0].mxu0
        %v1697 = vpop.f32.mrb[0].mxu0
        %v1698 = vadd.f32 0.0, %v1697
        %v1699 = vpop.f32.mrb[0].mxu0
        %1700 = vdwg.mxu0
        %v1701 = vadd.f32 %v1454, %v1639
        %v1702 = vadd.f32 %v1457, %v1642
        %v1703 = vadd.f32 %v1462, %v1647
        %v1704 = vadd.f32 %v1465, %v1650
        %v1705 = vadd.f32 %v1470, %v1655
        %v1706 = vadd.f32 %v1473, %v1658
        %v1707 = vadd.f32 %v1478, %v1663
        %v1708 = vadd.f32 %v1481, %v1666
        %v1709 = vadd.f32 %v1486, %v1671
        %v1710 = vadd.f32 %v1489, %v1674
        %v1711 = vadd.f32 %v1494, %v1679
        %v1712 = vadd.f32 %v1497, %v1682
        %v1713 = vadd.f32 %v1502, %v1687
        %v1714 = vadd.f32 %v1505, %v1690
        %v1715 = vadd.f32 %v1510, %v1695
        %v1716 = vadd.f32 %v1513, %v1698
        %v1717 = vld [vmem:[#allocation2 + $0x8] sm:$0xf8]
        %v1718 = vld [vmem:[#allocation2 + $0x10] sm:$0xff]
        %v1719 = vld [vmem:[#allocation2 + $0x18] sm:$0xff]
        %v1720 = vld [vmem:[#allocation2 + $0x20] sm:$0xff]
        %v1721 = vld [vmem:[#allocation2 + $0x28] sm:$0xff]
        %v1722 = vld [vmem:[#allocation2 + $0x30] sm:$0xff]
        %v1723 = vld [vmem:[#allocation2 + $0x38] sm:$0xff]
        %v1724 = vld [vmem:[#allocation2 + $0x40] sm:$0xff]
        %v1725 = vld [vmem:[#allocation2 + $0x48] sm:$0xf]
        %s1726 = scalar_lea.vmem %s6, 48
        %v1727 = vld [vmem:[%s1726] sm:$0xf]
        %v1728 = vld [vmem:[%s1726 + $0x4] sm:$0xf]
        %v1729 = vld [vmem:[%s1726 + $0x8] sm:$0xf]
        %v1730 = vld [vmem:[%s1726 + $0xc] sm:$0xf]
        %v1732 = vshrl.u32 %v1717, 16
        %v1734 = vrot.slane %v1732, 3
        %v1735 = vshll.u32 %v1717, 16
        %v1737 = vrot.slane %v1735, 4
        %v1738 = vor.u32 %v1734, %v1737
        %v1740 = vshrl.u32 %v1718, 16
        %v1742 = vrot.slane %v1740, 3
        %v1743 = vshll.u32 %v1718, 16
        %v1745 = vrot.slane %v1743, 4
        %v1746 = vor.u32 %v1742, %v1745
        %v1747 = vsel %vm1302, %v1738, %v1746
        %v1749 = vshrl.u32 %v1719, 16
        %v1751 = vrot.slane %v1749, 3
        %v1752 = vshll.u32 %v1719, 16
        %v1754 = vrot.slane %v1752, 4
        %v1755 = vor.u32 %v1751, %v1754
        %v1756 = vsel %vm1302, %v1746, %v1755
        %v1758 = vshrl.u32 %v1720, 16
        %v1760 = vrot.slane %v1758, 3
        %v1761 = vshll.u32 %v1720, 16
        %v1763 = vrot.slane %v1761, 4
        %v1764 = vor.u32 %v1760, %v1763
        %v1765 = vsel %vm1302, %v1755, %v1764
        %v1767 = vshrl.u32 %v1721, 16
        %v1769 = vrot.slane %v1767, 3
        %v1770 = vshll.u32 %v1721, 16
        %v1772 = vrot.slane %v1770, 4
        %v1773 = vor.u32 %v1769, %v1772
        %v1774 = vsel %vm1302, %v1764, %v1773
        %v1776 = vshrl.u32 %v1722, 16
        %v1778 = vrot.slane %v1776, 3
        %v1779 = vshll.u32 %v1722, 16
        %v1781 = vrot.slane %v1779, 4
        %v1782 = vor.u32 %v1778, %v1781
        %v1783 = vsel %vm1302, %v1773, %v1782
        %v1785 = vshrl.u32 %v1723, 16
        %v1787 = vrot.slane %v1785, 3
        %v1788 = vshll.u32 %v1723, 16
        %v1790 = vrot.slane %v1788, 4
        %v1791 = vor.u32 %v1787, %v1790
        %v1792 = vsel %vm1302, %v1782, %v1791
        %v1794 = vshrl.u32 %v1724, 16
        %v1796 = vrot.slane %v1794, 3
        %v1797 = vshll.u32 %v1724, 16
        %v1799 = vrot.slane %v1797, 4
        %v1800 = vor.u32 %v1796, %v1799
        %v1801 = vsel %vm1302, %v1791, %v1800
        %v1803 = vshrl.u32 %v1725, 16
        %v1805 = vrot.slane %v1803, 3
        %v1806 = vshll.u32 %v1725, 16
        %v1808 = vrot.slane %v1806, 4
        %v1809 = vor.u32 %v1805, %v1808
        %v1810 = vsel %vm1302, %v1800, %v1809
        %v1815 = vunpack.c.l.b16 %v1727
        %v1816 = vunpack.c.l.b16 %v1728
        %v1817 = vunpack.c.l.b16 %v1729
        %v1818 = vunpack.c.l.b16 %v1730
        %v1819 = vpack.c.b16 %v1816, %v1815
        %v1820 = vpack.c.b16 %v1818, %v1817
        %v1824 = vsel %vm614, %v1747, 0
        %v1827 = vsel %vm614, %v1756, 0
        %v1830 = vsel %vm614, %v1765, 0
        %v1833 = vsel %vm614, %v1774, 0
        %v1836 = vsel %vm614, %v1783, 0
        %v1839 = vsel %vm614, %v1792, 0
        %v1842 = vsel %vm614, %v1801, 0
        %v1845 = vsel %vm614, %v1810, 0
        %1847 = vmatprep.subr.bf16.mxu0 0
        %1848 = vmatpush1.bf16.msra.mxu0 %v1819
        %1849 = vmatprep.subr.bf16.mxu0 0
        %1850 = vmatpush1.bf16.msra.mxu0 %v1820
        %1851 = vmatprep.subr.bf16.mxu0 0
        %1852 = vmatpush1.bf16.msra.mxu0 0
        %1853 = vmatprep.subr.bf16.mxu0 0
        %1854 = vmatpush1.bf16.msra.mxu0 0
        %1855 = vmatprep.subr.bf16.mxu0 0
        %1856 = vmatpush1.bf16.msra.mxu0 0
        %1857 = vmatprep.subr.bf16.mxu0 0
        %1858 = vmatpush1.bf16.msra.mxu0 0
        %1859 = vmatprep.subr.bf16.mxu0 0
        %1860 = vmatpush1.bf16.msra.mxu0 0
        %1861 = vmatprep.subr.bf16.mxu0 0
        %1862 = vmatpush1.bf16.msra.mxu0 0
        %1863 = vmatprep.subr.bf16.mxu0 0
        %1864 = vmatpush1.bf16.msra.mxu0 0
        %1865 = vmatprep.subr.bf16.mxu0 0
        %1866 = vmatpush1.bf16.msra.mxu0 0
        %1867 = vmatprep.subr.bf16.mxu0 0
        %1868 = vmatpush1.bf16.msra.mxu0 0
        %1869 = vmatprep.subr.bf16.mxu0 0
        %1870 = vmatpush1.bf16.msra.mxu0 0
        %1871 = vmatprep.subr.bf16.mxu0 0
        %1872 = vmatpush1.bf16.msra.mxu0 0
        %1873 = vmatprep.subr.bf16.mxu0 0
        %1874 = vmatpush1.bf16.msra.mxu0 0
        %1875 = vmatprep.subr.bf16.mxu0 0
        %1876 = vmatpush1.bf16.msra.mxu0 0
        %1877 = vmatprep.subr.bf16.mxu0 0
        %1878 = vmatpush1.bf16.msra.mxu0 0
        %1879 = vmatprep.mubr.bf16.mxu0 0
        %1880 = vmatmul.mubr.bf16.gmra.mrb[0].mxu0 %v1824
        %v1881 = vpop.f32.mrb[0].mxu0
        %v1882 = vadd.f32 0.0, %v1881
        %v1883 = vpop.f32.mrb[0].mxu0
        %v1884 = vpop.f32.mrb[0].mxu0
        %v1885 = vadd.f32 0.0, %v1884
        %v1886 = vpop.f32.mrb[0].mxu0
        %1887 = vmatprep.mubr.bf16.mxu0 0
        %1888 = vmatmul.mubr.bf16.gmra.mrb[0].mxu0 %v1827
        %v1889 = vpop.f32.mrb[0].mxu0
        %v1890 = vadd.f32 0.0, %v1889
        %v1891 = vpop.f32.mrb[0].mxu0
        %v1892 = vpop.f32.mrb[0].mxu0
        %v1893 = vadd.f32 0.0, %v1892
        %v1894 = vpop.f32.mrb[0].mxu0
        %1895 = vmatprep.mubr.bf16.mxu0 0
        %1896 = vmatmul.mubr.bf16.gmra.mrb[0].mxu0 %v1830
        %v1897 = vpop.f32.mrb[0].mxu0
        %v1898 = vadd.f32 0.0, %v1897
        %v1899 = vpop.f32.mrb[0].mxu0
        %v1900 = vpop.f32.mrb[0].mxu0
        %v1901 = vadd.f32 0.0, %v1900
        %v1902 = vpop.f32.mrb[0].mxu0
        %1903 = vmatprep.mubr.bf16.mxu0 0
        %1904 = vmatmul.mubr.bf16.gmra.mrb[0].mxu0 %v1833
        %v1905 = vpop.f32.mrb[0].mxu0
        %v1906 = vadd.f32 0.0, %v1905
        %v1907 = vpop.f32.mrb[0].mxu0
        %v1908 = vpop.f32.mrb[0].mxu0
        %v1909 = vadd.f32 0.0, %v1908
        %v1910 = vpop.f32.mrb[0].mxu0
        %1911 = vmatprep.mubr.bf16.mxu0 0
        %1912 = vmatmul.mubr.bf16.gmra.mrb[0].mxu0 %v1836
        %v1913 = vpop.f32.mrb[0].mxu0
        %v1914 = vadd.f32 0.0, %v1913
        %v1915 = vpop.f32.mrb[0].mxu0
        %v1916 = vpop.f32.mrb[0].mxu0
        %v1917 = vadd.f32 0.0, %v1916
        %v1918 = vpop.f32.mrb[0].mxu0
        %1919 = vmatprep.mubr.bf16.mxu0 0
        %1920 = vmatmul.mubr.bf16.gmra.mrb[0].mxu0 %v1839
        %v1921 = vpop.f32.mrb[0].mxu0
        %v1922 = vadd.f32 0.0, %v1921
        %v1923 = vpop.f32.mrb[0].mxu0
        %v1924 = vpop.f32.mrb[0].mxu0
        %v1925 = vadd.f32 0.0, %v1924
        %v1926 = vpop.f32.mrb[0].mxu0
        %1927 = vmatprep.mubr.bf16.mxu0 0
        %1928 = vmatmul.mubr.bf16.gmra.mrb[0].mxu0 %v1842
        %v1929 = vpop.f32.mrb[0].mxu0
        %v1930 = vadd.f32 0.0, %v1929
        %v1931 = vpop.f32.mrb[0].mxu0
        %v1932 = vpop.f32.mrb[0].mxu0
        %v1933 = vadd.f32 0.0, %v1932
        %v1934 = vpop.f32.mrb[0].mxu0
        %1935 = vmatprep.mubr.bf16.mxu0 0
        %1936 = vmatmul.mubr.bf16.gmra.mrb[0].mxu0 %v1845
        %v1937 = vpop.f32.mrb[0].mxu0
        %v1938 = vadd.f32 0.0, %v1937
        %v1939 = vpop.f32.mrb[0].mxu0
        %v1940 = vpop.f32.mrb[0].mxu0
        %v1941 = vadd.f32 0.0, %v1940
        %v1942 = vpop.f32.mrb[0].mxu0
        %1943 = vdwg.mxu0
        %v1944 = vadd.f32 %v1701, %v1882
        %v1945 = vadd.f32 %v1702, %v1885
        %v1946 = vadd.f32 %v1703, %v1890
        %v1947 = vadd.f32 %v1704, %v1893
        %v1948 = vadd.f32 %v1705, %v1898
        %v1949 = vadd.f32 %v1706, %v1901
        %v1950 = vadd.f32 %v1707, %v1906
        %v1951 = vadd.f32 %v1708, %v1909
        %v1952 = vadd.f32 %v1709, %v1914
        %v1953 = vadd.f32 %v1710, %v1917
        %v1954 = vadd.f32 %v1711, %v1922
        %v1955 = vadd.f32 %v1712, %v1925
        %v1956 = vadd.f32 %v1713, %v1930
        %v1957 = vadd.f32 %v1714, %v1933
        %v1958 = vadd.f32 %v1715, %v1938
        %v1959 = vadd.f32 %v1716, %v1941
        %v1960 = vld [vmem:[#allocation2 + $0x8] sm:$0xf0]
        %s1961 = scalar_lea.vmem %s6, 64
        %v1962 = vld [vmem:[%s1961] sm:$0xf]
        %v1963 = vld [vmem:[%s1961 + $0x4] sm:$0xf]
        %v1964 = vld [vmem:[%s1961 + $0x8] sm:$0xf]
        %v1965 = vld [vmem:[%s1961 + $0xc] sm:$0xf]
        %v1975 = vrot.slane %v1960, 4
        %v1976 = vrot.slane %v1718, 4
        %v1977 = vsel %vm1089, %v1975, %v1976
        %v1978 = vrot.slane %v1719, 4
        %v1979 = vsel %vm1089, %v1976, %v1978
        %v1980 = vrot.slane %v1720, 4
        %v1981 = vsel %vm1089, %v1978, %v1980
        %v1982 = vrot.slane %v1721, 4
        %v1983 = vsel %vm1089, %v1980, %v1982
        %v1984 = vrot.slane %v1722, 4
        %v1985 = vsel %vm1089, %v1982, %v1984
        %v1986 = vrot.slane %v1723, 4
        %v1987 = vsel %vm1089, %v1984, %v1986
        %v1988 = vrot.slane %v1724, 4
        %v1989 = vsel %vm1089, %v1986, %v1988
        %v1990 = vrot.slane %v1725, 4
        %v1991 = vsel %vm1089, %v1988, %v1990
        %v1996 = vunpack.c.l.b16 %v1962
        %v1997 = vunpack.c.l.b16 %v1963
        %v1998 = vunpack.c.l.b16 %v1964
        %v1999 = vunpack.c.l.b16 %v1965
        %v2000 = vpack.c.b16 %v1997, %v1996
        %v2001 = vpack.c.b16 %v1999, %v1998
        %v2005 = vsel %vm614, %v1977, 0
        %v2008 = vsel %vm614, %v1979, 0
        %v2011 = vsel %vm614, %v1981, 0
        %v2014 = vsel %vm614, %v1983, 0
        %v2017 = vsel %vm614, %v1985, 0
        %v2020 = vsel %vm614, %v1987, 0
        %v2023 = vsel %vm614, %v1989, 0
        %v2026 = vsel %vm614, %v1991, 0
        %2028 = vmatprep.subr.bf16.mxu0 0
        %2029 = vmatpush1.bf16.msra.mxu0 %v2000
        %2030 = vmatprep.subr.bf16.mxu0 0
        %2031 = vmatpush1.bf16.msra.mxu0 %v2001
        %2032 = vmatprep.subr.bf16.mxu0 0
        %2033 = vmatpush1.bf16.msra.mxu0 0
        %2034 = vmatprep.subr.bf16.mxu0 0
        %2035 = vmatpush1.bf16.msra.mxu0 0
        %2036 = vmatprep.subr.bf16.mxu0 0
        %2037 = vmatpush1.bf16.msra.mxu0 0
        %2038 = vmatprep.subr.bf16.mxu0 0
        %2039 = vmatpush1.bf16.msra.mxu0 0
        %2040 = vmatprep.subr.bf16.mxu0 0
        %2041 = vmatpush1.bf16.msra.mxu0 0
        %2042 = vmatprep.subr.bf16.mxu0 0
        %2043 = vmatpush1.bf16.msra.mxu0 0
        %2044 = vmatprep.subr.bf16.mxu0 0
        %2045 = vmatpush1.bf16.msra.mxu0 0
        %2046 = vmatprep.subr.bf16.mxu0 0
        %2047 = vmatpush1.bf16.msra.mxu0 0
        %2048 = vmatprep.subr.bf16.mxu0 0
        %2049 = vmatpush1.bf16.msra.mxu0 0
        %2050 = vmatprep.subr.bf16.mxu0 0
        %2051 = vmatpush1.bf16.msra.mxu0 0
        %2052 = vmatprep.subr.bf16.mxu0 0
        %2053 = vmatpush1.bf16.msra.mxu0 0
        %2054 = vmatprep.subr.bf16.mxu0 0
        %2055 = vmatpush1.bf16.msra.mxu0 0
        %2056 = vmatprep.subr.bf16.mxu0 0
        %2057 = vmatpush1.bf16.msra.mxu0 0
        %2058 = vmatprep.subr.bf16.mxu0 0
        %2059 = vmatpush1.bf16.msra.mxu0 0
        %2060 = vmatprep.mubr.bf16.mxu0 0
        %2061 = vmatmul.mubr.bf16.gmra.mrb[0].mxu0 %v2005
        %v2062 = vpop.f32.mrb[0].mxu0
        %v2063 = vadd.f32 0.0, %v2062
        %v2064 = vpop.f32.mrb[0].mxu0
        %v2065 = vpop.f32.mrb[0].mxu0
        %v2066 = vadd.f32 0.0, %v2065
        %v2067 = vpop.f32.mrb[0].mxu0
        %2068 = vmatprep.mubr.bf16.mxu0 0
        %2069 = vmatmul.mubr.bf16.gmra.mrb[0].mxu0 %v2008
        %v2070 = vpop.f32.mrb[0].mxu0
        %v2071 = vadd.f32 0.0, %v2070
        %v2072 = vpop.f32.mrb[0].mxu0
        %v2073 = vpop.f32.mrb[0].mxu0
        %v2074 = vadd.f32 0.0, %v2073
        %v2075 = vpop.f32.mrb[0].mxu0
        %2076 = vmatprep.mubr.bf16.mxu0 0
        %2077 = vmatmul.mubr.bf16.gmra.mrb[0].mxu0 %v2011
        %v2078 = vpop.f32.mrb[0].mxu0
        %v2079 = vadd.f32 0.0, %v2078
        %v2080 = vpop.f32.mrb[0].mxu0
        %v2081 = vpop.f32.mrb[0].mxu0
        %v2082 = vadd.f32 0.0, %v2081
        %v2083 = vpop.f32.mrb[0].mxu0
        %2084 = vmatprep.mubr.bf16.mxu0 0
        %2085 = vmatmul.mubr.bf16.gmra.mrb[0].mxu0 %v2014
        %v2086 = vpop.f32.mrb[0].mxu0
        %v2087 = vadd.f32 0.0, %v2086
        %v2088 = vpop.f32.mrb[0].mxu0
        %v2089 = vpop.f32.mrb[0].mxu0
        %v2090 = vadd.f32 0.0, %v2089
        %v2091 = vpop.f32.mrb[0].mxu0
        %2092 = vmatprep.mubr.bf16.mxu0 0
        %2093 = vmatmul.mubr.bf16.gmra.mrb[0].mxu0 %v2017
        %v2094 = vpop.f32.mrb[0].mxu0
        %v2095 = vadd.f32 0.0, %v2094
        %v2096 = vpop.f32.mrb[0].mxu0
        %v2097 = vpop.f32.mrb[0].mxu0
        %v2098 = vadd.f32 0.0, %v2097
        %v2099 = vpop.f32.mrb[0].mxu0
        %2100 = vmatprep.mubr.bf16.mxu0 0
        %2101 = vmatmul.mubr.bf16.gmra.mrb[0].mxu0 %v2020
        %v2102 = vpop.f32.mrb[0].mxu0
        %v2103 = vadd.f32 0.0, %v2102
        %v2104 = vpop.f32.mrb[0].mxu0
        %v2105 = vpop.f32.mrb[0].mxu0
        %v2106 = vadd.f32 0.0, %v2105
        %v2107 = vpop.f32.mrb[0].mxu0
        %2108 = vmatprep.mubr.bf16.mxu0 0
        %2109 = vmatmul.mubr.bf16.gmra.mrb[0].mxu0 %v2023
        %v2110 = vpop.f32.mrb[0].mxu0
        %v2111 = vadd.f32 0.0, %v2110
        %v2112 = vpop.f32.mrb[0].mxu0
        %v2113 = vpop.f32.mrb[0].mxu0
        %v2114 = vadd.f32 0.0, %v2113
        %v2115 = vpop.f32.mrb[0].mxu0
        %2116 = vmatprep.mubr.bf16.mxu0 0
        %2117 = vmatmul.mubr.bf16.gmra.mrb[0].mxu0 %v2026
        %v2118 = vpop.f32.mrb[0].mxu0
        %v2119 = vadd.f32 0.0, %v2118
        %v2120 = vpop.f32.mrb[0].mxu0
        %v2121 = vpop.f32.mrb[0].mxu0
        %v2122 = vadd.f32 0.0, %v2121
        %v2123 = vpop.f32.mrb[0].mxu0
        %2124 = vdwg.mxu0
        %v2125 = vadd.f32 %v1944, %v2063
        %v2126 = vadd.f32 %v1945, %v2066
        %v2127 = vadd.f32 %v1946, %v2071
        %v2128 = vadd.f32 %v1947, %v2074
        %v2129 = vadd.f32 %v1948, %v2079
        %v2130 = vadd.f32 %v1949, %v2082
        %v2131 = vadd.f32 %v1950, %v2087
        %v2132 = vadd.f32 %v1951, %v2090
        %v2133 = vadd.f32 %v1952, %v2095
        %v2134 = vadd.f32 %v1953, %v2098
        %v2135 = vadd.f32 %v1954, %v2103
        %v2136 = vadd.f32 %v1955, %v2106
        %v2137 = vadd.f32 %v1956, %v2111
        %v2138 = vadd.f32 %v1957, %v2114
        %v2139 = vadd.f32 %v1958, %v2119
        %v2140 = vadd.f32 %v1959, %v2122
        %v2141 = vld [vmem:[#allocation2 + $0x48] sm:$0x1f]
        %s2142 = scalar_lea.vmem %s6, 80
        %v2143 = vld [vmem:[%s2142] sm:$0xf]
        %v2144 = vld [vmem:[%s2142 + $0x4] sm:$0xf]
        %v2145 = vld [vmem:[%s2142 + $0x8] sm:$0xf]
        %v2146 = vld [vmem:[%s2142 + $0xc] sm:$0xf]
        %v2148 = vshrl.u32 %v1960, 16
        %v2150 = vrot.slane %v2148, 4
        %v2151 = vshll.u32 %v1960, 16
        %v2153 = vrot.slane %v2151, 5
        %v2154 = vor.u32 %v2150, %v2153
        %v2155 = vrot.slane %v1740, 4
        %v2156 = vrot.slane %v1743, 5
        %v2157 = vor.u32 %v2155, %v2156
        %v2158 = vsel %vm1522, %v2154, %v2157
        %v2159 = vrot.slane %v1749, 4
        %v2160 = vrot.slane %v1752, 5
        %v2161 = vor.u32 %v2159, %v2160
        %v2162 = vsel %vm1522, %v2157, %v2161
        %v2163 = vrot.slane %v1758, 4
        %v2164 = vrot.slane %v1761, 5
        %v2165 = vor.u32 %v2163, %v2164
        %v2166 = vsel %vm1522, %v2161, %v2165
        %v2167 = vrot.slane %v1767, 4
        %v2168 = vrot.slane %v1770, 5
        %v2169 = vor.u32 %v2167, %v2168
        %v2170 = vsel %vm1522, %v2165, %v2169
        %v2171 = vrot.slane %v1776, 4
        %v2172 = vrot.slane %v1779, 5
        %v2173 = vor.u32 %v2171, %v2172
        %v2174 = vsel %vm1522, %v2169, %v2173
        %v2175 = vrot.slane %v1785, 4
        %v2176 = vrot.slane %v1788, 5
        %v2177 = vor.u32 %v2175, %v2176
        %v2178 = vsel %vm1522, %v2173, %v2177
        %v2179 = vrot.slane %v1794, 4
        %v2180 = vrot.slane %v1797, 5
        %v2181 = vor.u32 %v2179, %v2180
        %v2182 = vsel %vm1522, %v2177, %v2181
        %v2184 = vshrl.u32 %v2141, 16
        %v2186 = vrot.slane %v2184, 4
        %v2187 = vshll.u32 %v2141, 16
        %v2189 = vrot.slane %v2187, 5
        %v2190 = vor.u32 %v2186, %v2189
        %v2191 = vsel %vm1522, %v2181, %v2190
        %v2196 = vunpack.c.l.b16 %v2143
        %v2197 = vunpack.c.l.b16 %v2144
        %v2198 = vunpack.c.l.b16 %v2145
        %v2199 = vunpack.c.l.b16 %v2146
        %v2200 = vpack.c.b16 %v2197, %v2196
        %v2201 = vpack.c.b16 %v2199, %v2198
        %v2205 = vsel %vm614, %v2158, 0
        %v2208 = vsel %vm614, %v2162, 0
        %v2211 = vsel %vm614, %v2166, 0
        %v2214 = vsel %vm614, %v2170, 0
        %v2217 = vsel %vm614, %v2174, 0
        %v2220 = vsel %vm614, %v2178, 0
        %v2223 = vsel %vm614, %v2182, 0
        %v2226 = vsel %vm614, %v2191, 0
        %2228 = vmatprep.subr.bf16.mxu0 0
        %2229 = vmatpush1.bf16.msra.mxu0 %v2200
        %2230 = vmatprep.subr.bf16.mxu0 0
        %2231 = vmatpush1.bf16.msra.mxu0 %v2201
        %2232 = vmatprep.subr.bf16.mxu0 0
        %2233 = vmatpush1.bf16.msra.mxu0 0
        %2234 = vmatprep.subr.bf16.mxu0 0
        %2235 = vmatpush1.bf16.msra.mxu0 0
        %2236 = vmatprep.subr.bf16.mxu0 0
        %2237 = vmatpush1.bf16.msra.mxu0 0
        %2238 = vmatprep.subr.bf16.mxu0 0
        %2239 = vmatpush1.bf16.msra.mxu0 0
        %2240 = vmatprep.subr.bf16.mxu0 0
        %2241 = vmatpush1.bf16.msra.mxu0 0
        %2242 = vmatprep.subr.bf16.mxu0 0
        %2243 = vmatpush1.bf16.msra.mxu0 0
        %2244 = vmatprep.subr.bf16.mxu0 0
        %2245 = vmatpush1.bf16.msra.mxu0 0
        %2246 = vmatprep.subr.bf16.mxu0 0
        %2247 = vmatpush1.bf16.msra.mxu0 0
        %2248 = vmatprep.subr.bf16.mxu0 0
        %2249 = vmatpush1.bf16.msra.mxu0 0
        %2250 = vmatprep.subr.bf16.mxu0 0
        %2251 = vmatpush1.bf16.msra.mxu0 0
        %2252 = vmatprep.subr.bf16.mxu0 0
        %2253 = vmatpush1.bf16.msra.mxu0 0
        %2254 = vmatprep.subr.bf16.mxu0 0
        %2255 = vmatpush1.bf16.msra.mxu0 0
        %2256 = vmatprep.subr.bf16.mxu0 0
        %2257 = vmatpush1.bf16.msra.mxu0 0
        %2258 = vmatprep.subr.bf16.mxu0 0
        %2259 = vmatpush1.bf16.msra.mxu0 0
        %2260 = vmatprep.mubr.bf16.mxu0 0
        %2261 = vmatmul.mubr.bf16.gmra.mrb[0].mxu0 %v2205
        %v2262 = vpop.f32.mrb[0].mxu0
        %v2263 = vadd.f32 0.0, %v2262
        %v2264 = vpop.f32.mrb[0].mxu0
        %v2265 = vpop.f32.mrb[0].mxu0
        %v2266 = vadd.f32 0.0, %v2265
        %v2267 = vpop.f32.mrb[0].mxu0
        %2268 = vmatprep.mubr.bf16.mxu0 0
        %2269 = vmatmul.mubr.bf16.gmra.mrb[0].mxu0 %v2208
        %v2270 = vpop.f32.mrb[0].mxu0
        %v2271 = vadd.f32 0.0, %v2270
        %v2272 = vpop.f32.mrb[0].mxu0
        %v2273 = vpop.f32.mrb[0].mxu0
        %v2274 = vadd.f32 0.0, %v2273
        %v2275 = vpop.f32.mrb[0].mxu0
        %2276 = vmatprep.mubr.bf16.mxu0 0
        %2277 = vmatmul.mubr.bf16.gmra.mrb[0].mxu0 %v2211
        %v2278 = vpop.f32.mrb[0].mxu0
        %v2279 = vadd.f32 0.0, %v2278
        %v2280 = vpop.f32.mrb[0].mxu0
        %v2281 = vpop.f32.mrb[0].mxu0
        %v2282 = vadd.f32 0.0, %v2281
        %v2283 = vpop.f32.mrb[0].mxu0
        %2284 = vmatprep.mubr.bf16.mxu0 0
        %2285 = vmatmul.mubr.bf16.gmra.mrb[0].mxu0 %v2214
        %v2286 = vpop.f32.mrb[0].mxu0
        %v2287 = vadd.f32 0.0, %v2286
        %v2288 = vpop.f32.mrb[0].mxu0
        %v2289 = vpop.f32.mrb[0].mxu0
        %v2290 = vadd.f32 0.0, %v2289
        %v2291 = vpop.f32.mrb[0].mxu0
        %2292 = vmatprep.mubr.bf16.mxu0 0
        %2293 = vmatmul.mubr.bf16.gmra.mrb[0].mxu0 %v2217
        %v2294 = vpop.f32.mrb[0].mxu0
        %v2295 = vadd.f32 0.0, %v2294
        %v2296 = vpop.f32.mrb[0].mxu0
        %v2297 = vpop.f32.mrb[0].mxu0
        %v2298 = vadd.f32 0.0, %v2297
        %v2299 = vpop.f32.mrb[0].mxu0
        %2300 = vmatprep.mubr.bf16.mxu0 0
        %2301 = vmatmul.mubr.bf16.gmra.mrb[0].mxu0 %v2220
        %v2302 = vpop.f32.mrb[0].mxu0
        %v2303 = vadd.f32 0.0, %v2302
        %v2304 = vpop.f32.mrb[0].mxu0
        %v2305 = vpop.f32.mrb[0].mxu0
        %v2306 = vadd.f32 0.0, %v2305
        %v2307 = vpop.f32.mrb[0].mxu0
        %2308 = vmatprep.mubr.bf16.mxu0 0
        %2309 = vmatmul.mubr.bf16.gmra.mrb[0].mxu0 %v2223
        %v2310 = vpop.f32.mrb[0].mxu0
        %v2311 = vadd.f32 0.0, %v2310
        %v2312 = vpop.f32.mrb[0].mxu0
        %v2313 = vpop.f32.mrb[0].mxu0
        %v2314 = vadd.f32 0.0, %v2313
        %v2315 = vpop.f32.mrb[0].mxu0
        %2316 = vmatprep.mubr.bf16.mxu0 0
        %2317 = vmatmul.mubr.bf16.gmra.mrb[0].mxu0 %v2226
        %v2318 = vpop.f32.mrb[0].mxu0
        %v2319 = vadd.f32 0.0, %v2318
        %v2320 = vpop.f32.mrb[0].mxu0
        %v2321 = vpop.f32.mrb[0].mxu0
        %v2322 = vadd.f32 0.0, %v2321
        %v2323 = vpop.f32.mrb[0].mxu0
        %2324 = vdwg.mxu0
        %v2325 = vadd.f32 %v2125, %v2263
        %v2326 = vadd.f32 %v2126, %v2266
        %v2327 = vadd.f32 %v2127, %v2271
        %v2328 = vadd.f32 %v2128, %v2274
        %v2329 = vadd.f32 %v2129, %v2279
        %v2330 = vadd.f32 %v2130, %v2282
        %v2331 = vadd.f32 %v2131, %v2287
        %v2332 = vadd.f32 %v2132, %v2290
        %v2333 = vadd.f32 %v2133, %v2295
        %v2334 = vadd.f32 %v2134, %v2298
        %v2335 = vadd.f32 %v2135, %v2303
        %v2336 = vadd.f32 %v2136, %v2306
        %v2337 = vadd.f32 %v2137, %v2311
        %v2338 = vadd.f32 %v2138, %v2314
        %v2339 = vadd.f32 %v2139, %v2319
        %v2340 = vadd.f32 %v2140, %v2322
        %v2341 = vld [vmem:[#allocation2 + $0x10] sm:$0xf8]
        %v2342 = vld [vmem:[#allocation2 + $0x18] sm:$0xff]
        %v2343 = vld [vmem:[#allocation2 + $0x20] sm:$0xff]
        %v2344 = vld [vmem:[#allocation2 + $0x28] sm:$0xff]
        %v2345 = vld [vmem:[#allocation2 + $0x30] sm:$0xff]
        %v2346 = vld [vmem:[#allocation2 + $0x38] sm:$0xff]
        %v2347 = vld [vmem:[#allocation2 + $0x40] sm:$0xff]
        %v2348 = vld [vmem:[#allocation2 + $0x48] sm:$0xff]
        %v2349 = vld [vmem:[#allocation2 + $0x50] sm:$0xf]
        %s2350 = scalar_lea.vmem %s6, 96
        %v2351 = vld [vmem:[%s2350] sm:$0xf]
        %v2352 = vld [vmem:[%s2350 + $0x4] sm:$0xf]
        %v2353 = vld [vmem:[%s2350 + $0x8] sm:$0xf]
        %v2354 = vld [vmem:[%s2350 + $0xc] sm:$0xf]
        %v2356 = vshrl.u32 %v2341, 16
        %v2358 = vrot.slane %v2356, 3
        %v2359 = vshll.u32 %v2341, 16
        %v2361 = vrot.slane %v2359, 4
        %v2362 = vor.u32 %v2358, %v2361
        %v2364 = vshrl.u32 %v2342, 16
        %v2366 = vrot.slane %v2364, 3
        %v2367 = vshll.u32 %v2342, 16
        %v2369 = vrot.slane %v2367, 4
        %v2370 = vor.u32 %v2366, %v2369
        %v2371 = vsel %vm1302, %v2362, %v2370
        %v2373 = vshrl.u32 %v2343, 16
        %v2375 = vrot.slane %v2373, 3
        %v2376 = vshll.u32 %v2343, 16
        %v2378 = vrot.slane %v2376, 4
        %v2379 = vor.u32 %v2375, %v2378
        %v2380 = vsel %vm1302, %v2370, %v2379
        %v2382 = vshrl.u32 %v2344, 16
        %v2384 = vrot.slane %v2382, 3
        %v2385 = vshll.u32 %v2344, 16
        %v2387 = vrot.slane %v2385, 4
        %v2388 = vor.u32 %v2384, %v2387
        %v2389 = vsel %vm1302, %v2379, %v2388
        %v2391 = vshrl.u32 %v2345, 16
        %v2393 = vrot.slane %v2391, 3
        %v2394 = vshll.u32 %v2345, 16
        %v2396 = vrot.slane %v2394, 4
        %v2397 = vor.u32 %v2393, %v2396
        %v2398 = vsel %vm1302, %v2388, %v2397
        %v2400 = vshrl.u32 %v2346, 16
        %v2402 = vrot.slane %v2400, 3
        %v2403 = vshll.u32 %v2346, 16
        %v2405 = vrot.slane %v2403, 4
        %v2406 = vor.u32 %v2402, %v2405
        %v2407 = vsel %vm1302, %v2397, %v2406
        %v2409 = vshrl.u32 %v2347, 16
        %v2411 = vrot.slane %v2409, 3
        %v2412 = vshll.u32 %v2347, 16
        %v2414 = vrot.slane %v2412, 4
        %v2415 = vor.u32 %v2411, %v2414
        %v2416 = vsel %vm1302, %v2406, %v2415
        %v2418 = vshrl.u32 %v2348, 16
        %v2420 = vrot.slane %v2418, 3
        %v2421 = vshll.u32 %v2348, 16
        %v2423 = vrot.slane %v2421, 4
        %v2424 = vor.u32 %v2420, %v2423
        %v2425 = vsel %vm1302, %v2415, %v2424
        %v2427 = vshrl.u32 %v2349, 16
        %v2429 = vrot.slane %v2427, 3
        %v2430 = vshll.u32 %v2349, 16
        %v2432 = vrot.slane %v2430, 4
        %v2433 = vor.u32 %v2429, %v2432
        %v2434 = vsel %vm1302, %v2424, %v2433
        %v2439 = vunpack.c.l.b16 %v2351
        %v2440 = vunpack.c.l.b16 %v2352
        %v2441 = vunpack.c.l.b16 %v2353
        %v2442 = vunpack.c.l.b16 %v2354
        %v2443 = vpack.c.b16 %v2440, %v2439
        %v2444 = vpack.c.b16 %v2442, %v2441
        %v2448 = vsel %vm614, %v2371, 0
        %v2451 = vsel %vm614, %v2380, 0
        %v2454 = vsel %vm614, %v2389, 0
        %v2457 = vsel %vm614, %v2398, 0
        %v2460 = vsel %vm614, %v2407, 0
        %v2463 = vsel %vm614, %v2416, 0
        %v2466 = vsel %vm614, %v2425, 0
        %v2469 = vsel %vm614, %v2434, 0
        %2471 = vmatprep.subr.bf16.mxu0 0
        %2472 = vmatpush1.bf16.msra.mxu0 %v2443
        %2473 = vmatprep.subr.bf16.mxu0 0
        %2474 = vmatpush1.bf16.msra.mxu0 %v2444
        %2475 = vmatprep.subr.bf16.mxu0 0
        %2476 = vmatpush1.bf16.msra.mxu0 0
        %2477 = vmatprep.subr.bf16.mxu0 0
        %2478 = vmatpush1.bf16.msra.mxu0 0
        %2479 = vmatprep.subr.bf16.mxu0 0
        %2480 = vmatpush1.bf16.msra.mxu0 0
        %2481 = vmatprep.subr.bf16.mxu0 0
        %2482 = vmatpush1.bf16.msra.mxu0 0
        %2483 = vmatprep.subr.bf16.mxu0 0
        %2484 = vmatpush1.bf16.msra.mxu0 0
        %2485 = vmatprep.subr.bf16.mxu0 0
        %2486 = vmatpush1.bf16.msra.mxu0 0
        %2487 = vmatprep.subr.bf16.mxu0 0
        %2488 = vmatpush1.bf16.msra.mxu0 0
        %2489 = vmatprep.subr.bf16.mxu0 0
        %2490 = vmatpush1.bf16.msra.mxu0 0
        %2491 = vmatprep.subr.bf16.mxu0 0
        %2492 = vmatpush1.bf16.msra.mxu0 0
        %2493 = vmatprep.subr.bf16.mxu0 0
        %2494 = vmatpush1.bf16.msra.mxu0 0
        %2495 = vmatprep.subr.bf16.mxu0 0
        %2496 = vmatpush1.bf16.msra.mxu0 0
        %2497 = vmatprep.subr.bf16.mxu0 0
        %2498 = vmatpush1.bf16.msra.mxu0 0
        %2499 = vmatprep.subr.bf16.mxu0 0
        %2500 = vmatpush1.bf16.msra.mxu0 0
        %2501 = vmatprep.subr.bf16.mxu0 0
        %2502 = vmatpush1.bf16.msra.mxu0 0
        %2503 = vmatprep.mubr.bf16.mxu0 0
        %2504 = vmatmul.mubr.bf16.gmra.mrb[0].mxu0 %v2448
        %v2505 = vpop.f32.mrb[0].mxu0
        %v2506 = vadd.f32 0.0, %v2505
        %v2507 = vpop.f32.mrb[0].mxu0
        %v2508 = vpop.f32.mrb[0].mxu0
        %v2509 = vadd.f32 0.0, %v2508
        %v2510 = vpop.f32.mrb[0].mxu0
        %2511 = vmatprep.mubr.bf16.mxu0 0
        %2512 = vmatmul.mubr.bf16.gmra.mrb[0].mxu0 %v2451
        %v2513 = vpop.f32.mrb[0].mxu0
        %v2514 = vadd.f32 0.0, %v2513
        %v2515 = vpop.f32.mrb[0].mxu0
        %v2516 = vpop.f32.mrb[0].mxu0
        %v2517 = vadd.f32 0.0, %v2516
        %v2518 = vpop.f32.mrb[0].mxu0
        %2519 = vmatprep.mubr.bf16.mxu0 0
        %2520 = vmatmul.mubr.bf16.gmra.mrb[0].mxu0 %v2454
        %v2521 = vpop.f32.mrb[0].mxu0
        %v2522 = vadd.f32 0.0, %v2521
        %v2523 = vpop.f32.mrb[0].mxu0
        %v2524 = vpop.f32.mrb[0].mxu0
        %v2525 = vadd.f32 0.0, %v2524
        %v2526 = vpop.f32.mrb[0].mxu0
        %2527 = vmatprep.mubr.bf16.mxu0 0
        %2528 = vmatmul.mubr.bf16.gmra.mrb[0].mxu0 %v2457
        %v2529 = vpop.f32.mrb[0].mxu0
        %v2530 = vadd.f32 0.0, %v2529
        %v2531 = vpop.f32.mrb[0].mxu0
        %v2532 = vpop.f32.mrb[0].mxu0
        %v2533 = vadd.f32 0.0, %v2532
        %v2534 = vpop.f32.mrb[0].mxu0
        %2535 = vmatprep.mubr.bf16.mxu0 0
        %2536 = vmatmul.mubr.bf16.gmra.mrb[0].mxu0 %v2460
        %v2537 = vpop.f32.mrb[0].mxu0
        %v2538 = vadd.f32 0.0, %v2537
        %v2539 = vpop.f32.mrb[0].mxu0
        %v2540 = vpop.f32.mrb[0].mxu0
        %v2541 = vadd.f32 0.0, %v2540
        %v2542 = vpop.f32.mrb[0].mxu0
        %2543 = vmatprep.mubr.bf16.mxu0 0
        %2544 = vmatmul.mubr.bf16.gmra.mrb[0].mxu0 %v2463
        %v2545 = vpop.f32.mrb[0].mxu0
        %v2546 = vadd.f32 0.0, %v2545
        %v2547 = vpop.f32.mrb[0].mxu0
        %v2548 = vpop.f32.mrb[0].mxu0
        %v2549 = vadd.f32 0.0, %v2548
        %v2550 = vpop.f32.mrb[0].mxu0
        %2551 = vmatprep.mubr.bf16.mxu0 0
        %2552 = vmatmul.mubr.bf16.gmra.mrb[0].mxu0 %v2466
        %v2553 = vpop.f32.mrb[0].mxu0
        %v2554 = vadd.f32 0.0, %v2553
        %v2555 = vpop.f32.mrb[0].mxu0
        %v2556 = vpop.f32.mrb[0].mxu0
        %v2557 = vadd.f32 0.0, %v2556
        %v2558 = vpop.f32.mrb[0].mxu0
        %2559 = vmatprep.mubr.bf16.mxu0 0
        %2560 = vmatmul.mubr.bf16.gmra.mrb[0].mxu0 %v2469
        %v2561 = vpop.f32.mrb[0].mxu0
        %v2562 = vadd.f32 0.0, %v2561
        %v2563 = vpop.f32.mrb[0].mxu0
        %v2564 = vpop.f32.mrb[0].mxu0
        %v2565 = vadd.f32 0.0, %v2564
        %v2566 = vpop.f32.mrb[0].mxu0
        %2567 = vdwg.mxu0
        %v2568 = vadd.f32 %v2325, %v2506
        %v2569 = vadd.f32 %v2326, %v2509
        %v2570 = vadd.f32 %v2327, %v2514
        %v2571 = vadd.f32 %v2328, %v2517
        %v2572 = vadd.f32 %v2329, %v2522
        %v2573 = vadd.f32 %v2330, %v2525
        %v2574 = vadd.f32 %v2331, %v2530
        %v2575 = vadd.f32 %v2332, %v2533
        %v2576 = vadd.f32 %v2333, %v2538
        %v2577 = vadd.f32 %v2334, %v2541
        %v2578 = vadd.f32 %v2335, %v2546
        %v2579 = vadd.f32 %v2336, %v2549
        %v2580 = vadd.f32 %v2337, %v2554
        %v2581 = vadd.f32 %v2338, %v2557
        %v2582 = vadd.f32 %v2339, %v2562
        %v2583 = vadd.f32 %v2340, %v2565
        %v2584 = vld [vmem:[#allocation2 + $0x10] sm:$0xf0]
        %s2585 = scalar_lea.vmem %s6, 112
        %v2586 = vld [vmem:[%s2585] sm:$0xf]
        %v2587 = vld [vmem:[%s2585 + $0x4] sm:$0xf]
        %v2588 = vld [vmem:[%s2585 + $0x8] sm:$0xf]
        %v2589 = vld [vmem:[%s2585 + $0xc] sm:$0xf]
        %v2599 = vrot.slane %v2584, 4
        %v2600 = vrot.slane %v2342, 4
        %v2601 = vsel %vm1089, %v2599, %v2600
        %v2602 = vrot.slane %v2343, 4
        %v2603 = vsel %vm1089, %v2600, %v2602
        %v2604 = vrot.slane %v2344, 4
        %v2605 = vsel %vm1089, %v2602, %v2604
        %v2606 = vrot.slane %v2345, 4
        %v2607 = vsel %vm1089, %v2604, %v2606
        %v2608 = vrot.slane %v2346, 4
        %v2609 = vsel %vm1089, %v2606, %v2608
        %v2610 = vrot.slane %v2347, 4
        %v2611 = vsel %vm1089, %v2608, %v2610
        %v2612 = vrot.slane %v2348, 4
        %v2613 = vsel %vm1089, %v2610, %v2612
        %v2614 = vrot.slane %v2349, 4
        %v2615 = vsel %vm1089, %v2612, %v2614
        %v2620 = vunpack.c.l.b16 %v2586
        %v2621 = vunpack.c.l.b16 %v2587
        %v2622 = vunpack.c.l.b16 %v2588
        %v2623 = vunpack.c.l.b16 %v2589
        %v2624 = vpack.c.b16 %v2621, %v2620
        %v2625 = vpack.c.b16 %v2623, %v2622
        %v2629 = vsel %vm614, %v2601, 0
        %v2632 = vsel %vm614, %v2603, 0
        %v2635 = vsel %vm614, %v2605, 0
        %v2638 = vsel %vm614, %v2607, 0
        %v2641 = vsel %vm614, %v2609, 0
        %v2644 = vsel %vm614, %v2611, 0
        %v2647 = vsel %vm614, %v2613, 0
        %v2650 = vsel %vm614, %v2615, 0
        %2652 = vmatprep.subr.bf16.mxu0 0
        %2653 = vmatpush1.bf16.msra.mxu0 %v2624
        %2654 = vmatprep.subr.bf16.mxu0 0
        %2655 = vmatpush1.bf16.msra.mxu0 %v2625
        %2656 = vmatprep.subr.bf16.mxu0 0
        %2657 = vmatpush1.bf16.msra.mxu0 0
        %2658 = vmatprep.subr.bf16.mxu0 0
        %2659 = vmatpush1.bf16.msra.mxu0 0
        %2660 = vmatprep.subr.bf16.mxu0 0
        %2661 = vmatpush1.bf16.msra.mxu0 0
        %2662 = vmatprep.subr.bf16.mxu0 0
        %2663 = vmatpush1.bf16.msra.mxu0 0
        %2664 = vmatprep.subr.bf16.mxu0 0
        %2665 = vmatpush1.bf16.msra.mxu0 0
        %2666 = vmatprep.subr.bf16.mxu0 0
        %2667 = vmatpush1.bf16.msra.mxu0 0
        %2668 = vmatprep.subr.bf16.mxu0 0
        %2669 = vmatpush1.bf16.msra.mxu0 0
        %2670 = vmatprep.subr.bf16.mxu0 0
        %2671 = vmatpush1.bf16.msra.mxu0 0
        %2672 = vmatprep.subr.bf16.mxu0 0
        %2673 = vmatpush1.bf16.msra.mxu0 0
        %2674 = vmatprep.subr.bf16.mxu0 0
        %2675 = vmatpush1.bf16.msra.mxu0 0
        %2676 = vmatprep.subr.bf16.mxu0 0
        %2677 = vmatpush1.bf16.msra.mxu0 0
        %2678 = vmatprep.subr.bf16.mxu0 0
        %2679 = vmatpush1.bf16.msra.mxu0 0
        %2680 = vmatprep.subr.bf16.mxu0 0
        %2681 = vmatpush1.bf16.msra.mxu0 0
        %2682 = vmatprep.subr.bf16.mxu0 0
        %2683 = vmatpush1.bf16.msra.mxu0 0
        %2684 = vmatprep.mubr.bf16.mxu0 0
        %2685 = vmatmul.mubr.bf16.gmra.mrb[0].mxu0 %v2629
        %v2686 = vpop.f32.mrb[0].mxu0
        %v2687 = vadd.f32 0.0, %v2686
        %v2688 = vpop.f32.mrb[0].mxu0
        %v2689 = vpop.f32.mrb[0].mxu0
        %v2690 = vadd.f32 0.0, %v2689
        %v2691 = vpop.f32.mrb[0].mxu0
        %2692 = vmatprep.mubr.bf16.mxu0 0
        %2693 = vmatmul.mubr.bf16.gmra.mrb[0].mxu0 %v2632
        %v2694 = vpop.f32.mrb[0].mxu0
        %v2695 = vadd.f32 0.0, %v2694
        %v2696 = vpop.f32.mrb[0].mxu0
        %v2697 = vpop.f32.mrb[0].mxu0
        %v2698 = vadd.f32 0.0, %v2697
        %v2699 = vpop.f32.mrb[0].mxu0
        %2700 = vmatprep.mubr.bf16.mxu0 0
        %2701 = vmatmul.mubr.bf16.gmra.mrb[0].mxu0 %v2635
        %v2702 = vpop.f32.mrb[0].mxu0
        %v2703 = vadd.f32 0.0, %v2702
        %v2704 = vpop.f32.mrb[0].mxu0
        %v2705 = vpop.f32.mrb[0].mxu0
        %v2706 = vadd.f32 0.0, %v2705
        %v2707 = vpop.f32.mrb[0].mxu0
        %2708 = vmatprep.mubr.bf16.mxu0 0
        %2709 = vmatmul.mubr.bf16.gmra.mrb[0].mxu0 %v2638
        %v2710 = vpop.f32.mrb[0].mxu0
        %v2711 = vadd.f32 0.0, %v2710
        %v2712 = vpop.f32.mrb[0].mxu0
        %v2713 = vpop.f32.mrb[0].mxu0
        %v2714 = vadd.f32 0.0, %v2713
        %v2715 = vpop.f32.mrb[0].mxu0
        %2716 = vmatprep.mubr.bf16.mxu0 0
        %2717 = vmatmul.mubr.bf16.gmra.mrb[0].mxu0 %v2641
        %v2718 = vpop.f32.mrb[0].mxu0
        %v2719 = vadd.f32 0.0, %v2718
        %v2720 = vpop.f32.mrb[0].mxu0
        %v2721 = vpop.f32.mrb[0].mxu0
        %v2722 = vadd.f32 0.0, %v2721
        %v2723 = vpop.f32.mrb[0].mxu0
        %2724 = vmatprep.mubr.bf16.mxu0 0
        %2725 = vmatmul.mubr.bf16.gmra.mrb[0].mxu0 %v2644
        %v2726 = vpop.f32.mrb[0].mxu0
        %v2727 = vadd.f32 0.0, %v2726
        %v2728 = vpop.f32.mrb[0].mxu0
        %v2729 = vpop.f32.mrb[0].mxu0
        %v2730 = vadd.f32 0.0, %v2729
        %v2731 = vpop.f32.mrb[0].mxu0
        %2732 = vmatprep.mubr.bf16.mxu0 0
        %2733 = vmatmul.mubr.bf16.gmra.mrb[0].mxu0 %v2647
        %v2734 = vpop.f32.mrb[0].mxu0
        %v2735 = vadd.f32 0.0, %v2734
        %v2736 = vpop.f32.mrb[0].mxu0
        %v2737 = vpop.f32.mrb[0].mxu0
        %v2738 = vadd.f32 0.0, %v2737
        %v2739 = vpop.f32.mrb[0].mxu0
        %2740 = vmatprep.mubr.bf16.mxu0 0
        %2741 = vmatmul.mubr.bf16.gmra.mrb[0].mxu0 %v2650
        %v2742 = vpop.f32.mrb[0].mxu0
        %v2743 = vadd.f32 0.0, %v2742
        %v2744 = vpop.f32.mrb[0].mxu0
        %v2745 = vpop.f32.mrb[0].mxu0
        %v2746 = vadd.f32 0.0, %v2745
        %v2747 = vpop.f32.mrb[0].mxu0
        %2748 = vdwg.mxu0
        %v2749 = vadd.f32 %v2568, %v2687
        %v2750 = vadd.f32 %v2569, %v2690
        %v2751 = vadd.f32 %v2570, %v2695
        %v2752 = vadd.f32 %v2571, %v2698
        %v2753 = vadd.f32 %v2572, %v2703
        %v2754 = vadd.f32 %v2573, %v2706
        %v2755 = vadd.f32 %v2574, %v2711
        %v2756 = vadd.f32 %v2575, %v2714
        %v2757 = vadd.f32 %v2576, %v2719
        %v2758 = vadd.f32 %v2577, %v2722
        %v2759 = vadd.f32 %v2578, %v2727
        %v2760 = vadd.f32 %v2579, %v2730
        %v2761 = vadd.f32 %v2580, %v2735
        %v2762 = vadd.f32 %v2581, %v2738
        %v2763 = vadd.f32 %v2582, %v2743
        %v2764 = vadd.f32 %v2583, %v2746
        %v2765 = vld [vmem:[#allocation2 + $0x50] sm:$0x1f]
        %s2766 = scalar_lea.vmem %s6, 128
        %v2767 = vld [vmem:[%s2766] sm:$0xf]
        %v2768 = vld [vmem:[%s2766 + $0x4] sm:$0xf]
        %v2769 = vld [vmem:[%s2766 + $0x8] sm:$0xf]
        %v2770 = vld [vmem:[%s2766 + $0xc] sm:$0xf]
        %v2772 = vshrl.u32 %v2584, 16
        %v2774 = vrot.slane %v2772, 4
        %v2775 = vshll.u32 %v2584, 16
        %v2777 = vrot.slane %v2775, 5
        %v2778 = vor.u32 %v2774, %v2777
        %v2779 = vrot.slane %v2364, 4
        %v2780 = vrot.slane %v2367, 5
        %v2781 = vor.u32 %v2779, %v2780
        %v2782 = vsel %vm1522, %v2778, %v2781
        %v2783 = vrot.slane %v2373, 4
        %v2784 = vrot.slane %v2376, 5
        %v2785 = vor.u32 %v2783, %v2784
        %v2786 = vsel %vm1522, %v2781, %v2785
        %v2787 = vrot.slane %v2382, 4
        %v2788 = vrot.slane %v2385, 5
        %v2789 = vor.u32 %v2787, %v2788
        %v2790 = vsel %vm1522, %v2785, %v2789
        %v2791 = vrot.slane %v2391, 4
        %v2792 = vrot.slane %v2394, 5
        %v2793 = vor.u32 %v2791, %v2792
        %v2794 = vsel %vm1522, %v2789, %v2793
        %v2795 = vrot.slane %v2400, 4
        %v2796 = vrot.slane %v2403, 5
        %v2797 = vor.u32 %v2795, %v2796
        %v2798 = vsel %vm1522, %v2793, %v2797
        %v2799 = vrot.slane %v2409, 4
        %v2800 = vrot.slane %v2412, 5
        %v2801 = vor.u32 %v2799, %v2800
        %v2802 = vsel %vm1522, %v2797, %v2801
        %v2803 = vrot.slane %v2418, 4
        %v2804 = vrot.slane %v2421, 5
        %v2805 = vor.u32 %v2803, %v2804
        %v2806 = vsel %vm1522, %v2801, %v2805
        %v2808 = vshrl.u32 %v2765, 16
        %v2810 = vrot.slane %v2808, 4
        %v2811 = vshll.u32 %v2765, 16
        %v2813 = vrot.slane %v2811, 5
        %v2814 = vor.u32 %v2810, %v2813
        %v2815 = vsel %vm1522, %v2805, %v2814
        %v2820 = vunpack.c.l.b16 %v2767
        %v2821 = vunpack.c.l.b16 %v2768
        %v2822 = vunpack.c.l.b16 %v2769
        %v2823 = vunpack.c.l.b16 %v2770
        %v2824 = vpack.c.b16 %v2821, %v2820
        %v2825 = vpack.c.b16 %v2823, %v2822
        %v2829 = vsel %vm614, %v2782, 0
        %v2832 = vsel %vm614, %v2786, 0
        %v2835 = vsel %vm614, %v2790, 0
        %v2838 = vsel %vm614, %v2794, 0
        %v2841 = vsel %vm614, %v2798, 0
        %v2844 = vsel %vm614, %v2802, 0
        %v2847 = vsel %vm614, %v2806, 0
        %v2850 = vsel %vm614, %v2815, 0
        %2852 = vmatprep.subr.bf16.mxu0 0
        %2853 = vmatpush1.bf16.msra.mxu0 %v2824
        %2854 = vmatprep.subr.bf16.mxu0 0
        %2855 = vmatpush1.bf16.msra.mxu0 %v2825
        %2856 = vmatprep.subr.bf16.mxu0 0
        %2857 = vmatpush1.bf16.msra.mxu0 0
        %2858 = vmatprep.subr.bf16.mxu0 0
        %2859 = vmatpush1.bf16.msra.mxu0 0
        %2860 = vmatprep.subr.bf16.mxu0 0
        %2861 = vmatpush1.bf16.msra.mxu0 0
        %2862 = vmatprep.subr.bf16.mxu0 0
        %2863 = vmatpush1.bf16.msra.mxu0 0
        %2864 = vmatprep.subr.bf16.mxu0 0
        %2865 = vmatpush1.bf16.msra.mxu0 0
        %2866 = vmatprep.subr.bf16.mxu0 0
        %2867 = vmatpush1.bf16.msra.mxu0 0
        %2868 = vmatprep.subr.bf16.mxu0 0
        %2869 = vmatpush1.bf16.msra.mxu0 0
        %2870 = vmatprep.subr.bf16.mxu0 0
        %2871 = vmatpush1.bf16.msra.mxu0 0
        %2872 = vmatprep.subr.bf16.mxu0 0
        %2873 = vmatpush1.bf16.msra.mxu0 0
        %2874 = vmatprep.subr.bf16.mxu0 0
        %2875 = vmatpush1.bf16.msra.mxu0 0
        %2876 = vmatprep.subr.bf16.mxu0 0
        %2877 = vmatpush1.bf16.msra.mxu0 0
        %2878 = vmatprep.subr.bf16.mxu0 0
        %2879 = vmatpush1.bf16.msra.mxu0 0
        %2880 = vmatprep.subr.bf16.mxu0 0
        %2881 = vmatpush1.bf16.msra.mxu0 0
        %2882 = vmatprep.subr.bf16.mxu0 0
        %2883 = vmatpush1.bf16.msra.mxu0 0
        %2884 = vmatprep.mubr.bf16.mxu0 0
        %2885 = vmatmul.mubr.bf16.gmra.mrb[0].mxu0 %v2829
        %v2886 = vpop.f32.mrb[0].mxu0
        %v2887 = vadd.f32 0.0, %v2886
        %v2888 = vpop.f32.mrb[0].mxu0
        %v2889 = vpop.f32.mrb[0].mxu0
        %v2890 = vadd.f32 0.0, %v2889
        %v2891 = vpop.f32.mrb[0].mxu0
        %2892 = vmatprep.mubr.bf16.mxu0 0
        %2893 = vmatmul.mubr.bf16.gmra.mrb[0].mxu0 %v2832
        %v2894 = vpop.f32.mrb[0].mxu0
        %v2895 = vadd.f32 0.0, %v2894
        %v2896 = vpop.f32.mrb[0].mxu0
        %v2897 = vpop.f32.mrb[0].mxu0
        %v2898 = vadd.f32 0.0, %v2897
        %v2899 = vpop.f32.mrb[0].mxu0
        %2900 = vmatprep.mubr.bf16.mxu0 0
        %2901 = vmatmul.mubr.bf16.gmra.mrb[0].mxu0 %v2835
        %v2902 = vpop.f32.mrb[0].mxu0
        %v2903 = vadd.f32 0.0, %v2902
        %v2904 = vpop.f32.mrb[0].mxu0
        %v2905 = vpop.f32.mrb[0].mxu0
        %v2906 = vadd.f32 0.0, %v2905
        %v2907 = vpop.f32.mrb[0].mxu0
        %2908 = vmatprep.mubr.bf16.mxu0 0
        %2909 = vmatmul.mubr.bf16.gmra.mrb[0].mxu0 %v2838
        %v2910 = vpop.f32.mrb[0].mxu0
        %v2911 = vadd.f32 0.0, %v2910
        %v2912 = vpop.f32.mrb[0].mxu0
        %v2913 = vpop.f32.mrb[0].mxu0
        %v2914 = vadd.f32 0.0, %v2913
        %v2915 = vpop.f32.mrb[0].mxu0
        %2916 = vmatprep.mubr.bf16.mxu0 0
        %2917 = vmatmul.mubr.bf16.gmra.mrb[0].mxu0 %v2841
        %v2918 = vpop.f32.mrb[0].mxu0
        %v2919 = vadd.f32 0.0, %v2918
        %v2920 = vpop.f32.mrb[0].mxu0
        %v2921 = vpop.f32.mrb[0].mxu0
        %v2922 = vadd.f32 0.0, %v2921
        %v2923 = vpop.f32.mrb[0].mxu0
        %2924 = vmatprep.mubr.bf16.mxu0 0
        %2925 = vmatmul.mubr.bf16.gmra.mrb[0].mxu0 %v2844
        %v2926 = vpop.f32.mrb[0].mxu0
        %v2927 = vadd.f32 0.0, %v2926
        %v2928 = vpop.f32.mrb[0].mxu0
        %v2929 = vpop.f32.mrb[0].mxu0
        %v2930 = vadd.f32 0.0, %v2929
        %v2931 = vpop.f32.mrb[0].mxu0
        %2932 = vmatprep.mubr.bf16.mxu0 0
        %2933 = vmatmul.mubr.bf16.gmra.mrb[0].mxu0 %v2847
        %v2934 = vpop.f32.mrb[0].mxu0
        %v2935 = vadd.f32 0.0, %v2934
        %v2936 = vpop.f32.mrb[0].mxu0
        %v2937 = vpop.f32.mrb[0].mxu0
        %v2938 = vadd.f32 0.0, %v2937
        %v2939 = vpop.f32.mrb[0].mxu0
        %2940 = vmatprep.mubr.bf16.mxu0 0
        %2941 = vmatmul.mubr.bf16.gmra.mrb[0].mxu0 %v2850
        %v2942 = vpop.f32.mrb[0].mxu0
        %v2943 = vadd.f32 0.0, %v2942
        %v2944 = vpop.f32.mrb[0].mxu0
        %v2945 = vpop.f32.mrb[0].mxu0
        %v2946 = vadd.f32 0.0, %v2945
        %v2947 = vpop.f32.mrb[0].mxu0
        %2948 = vdwg.mxu0
        %v2949 = vadd.f32 %v2749, %v2887
        %v2950 = vadd.f32 %v2750, %v2890
        %v2951 = vadd.f32 %v2751, %v2895
        %v2952 = vadd.f32 %v2752, %v2898
        %v2953 = vadd.f32 %v2753, %v2903
        %v2954 = vadd.f32 %v2754, %v2906
        %v2955 = vadd.f32 %v2755, %v2911
        %v2956 = vadd.f32 %v2756, %v2914
        %v2957 = vadd.f32 %v2757, %v2919
        %v2958 = vadd.f32 %v2758, %v2922
        %v2959 = vadd.f32 %v2759, %v2927
        %v2960 = vadd.f32 %v2760, %v2930
        %v2961 = vadd.f32 %v2761, %v2935
        %v2962 = vadd.f32 %v2762, %v2938
        %v2963 = vadd.f32 %v2763, %v2943
        %v2964 = vadd.f32 %v2764, %v2946
        %v2966 = vlaneseq
        %v2967 = vshrl.u32 %v2966, 7
        %v2968 = vsub.s32 0, %v2967
        %v2969 = vrot.slane %v1123, %v2968
        %v2971 = vadd.f32 %v2949, %v2969
        %v2972 = vadd.f32 %v2950, %v2969
        %v2973 = vadd.f32 %v2951, %v2969
        %v2974 = vadd.f32 %v2952, %v2969
        %v2975 = vadd.f32 %v2953, %v2969
        %v2976 = vadd.f32 %v2954, %v2969
        %v2977 = vadd.f32 %v2955, %v2969
        %v2978 = vadd.f32 %v2956, %v2969
        %v2979 = vadd.f32 %v2957, %v2969
        %v2980 = vadd.f32 %v2958, %v2969
        %v2981 = vadd.f32 %v2959, %v2969
        %v2982 = vadd.f32 %v2960, %v2969
        %v2983 = vadd.f32 %v2961, %v2969
        %v2984 = vadd.f32 %v2962, %v2969
        %v2985 = vadd.f32 %v2963, %v2969
        %v2986 = vadd.f32 %v2964, %v2969
        %v2987 = vld [vmem:[%s1] sm:$0xff]
        %v2988 = vld [vmem:[%s1 + $0x8] sm:$0xff]
        %v2989 = vld [vmem:[%s1 + $0x10] sm:$0xff]
        %v2990 = vld [vmem:[%s1 + $0x18] sm:$0xff]
        %v2991 = vld [vmem:[%s1 + $0x20] sm:$0xff]
        %v2992 = vld [vmem:[%s1 + $0x28] sm:$0xff]
        %v2993 = vld [vmem:[%s1 + $0x30] sm:$0xff]
        %v2994 = vld [vmem:[%s1 + $0x38] sm:$0xff]
        %v2995 = vld [vmem:[%s1 + $0x40] sm:$0xff]
        %v2996 = vld [vmem:[%s1 + $0x48] sm:$0xff]
        %v2997 = vld [vmem:[%s1 + $0x50] sm:$0xff]
        %v2998 = vld [vmem:[%s1 + $0x58] sm:$0xff]
        %v2999 = vld [vmem:[%s1 + $0x60] sm:$0xff]
        %v3000 = vld [vmem:[%s1 + $0x68] sm:$0xff]
        %v3001 = vld [vmem:[%s1 + $0x70] sm:$0xff]
        %v3002 = vld [vmem:[%s1 + $0x78] sm:$0xff]
        %3004 = vset.pattern.permute.xlu0 0
        %3005 = vperm.xlu0 %3004, %v2987
        %v3006 = vpop.permute.xlu0 %3005
        %3009 = vset.pattern.permute.xlu0 0
        %3010 = vperm.xlu0 %3009, %v2988
        %v3011 = vpop.permute.xlu0 %3010
        %3014 = vset.pattern.permute.xlu0 0
        %3015 = vperm.xlu0 %3014, %v2989
        %v3016 = vpop.permute.xlu0 %3015
        %3019 = vset.pattern.permute.xlu0 0
        %3020 = vperm.xlu0 %3019, %v2990
        %v3021 = vpop.permute.xlu0 %3020
        %3024 = vset.pattern.permute.xlu0 0
        %3025 = vperm.xlu0 %3024, %v2991
        %v3026 = vpop.permute.xlu0 %3025
        %3029 = vset.pattern.permute.xlu0 0
        %3030 = vperm.xlu0 %3029, %v2992
        %v3031 = vpop.permute.xlu0 %3030
        %3034 = vset.pattern.permute.xlu0 0
        %3035 = vperm.xlu0 %3034, %v2993
        %v3036 = vpop.permute.xlu0 %3035
        %3039 = vset.pattern.permute.xlu0 0
        %3040 = vperm.xlu0 %3039, %v2994
        %v3041 = vpop.permute.xlu0 %3040
        %3044 = vset.pattern.permute.xlu0 0
        %3045 = vperm.xlu0 %3044, %v2995
        %v3046 = vpop.permute.xlu0 %3045
        %3049 = vset.pattern.permute.xlu0 0
        %3050 = vperm.xlu0 %3049, %v2996
        %v3051 = vpop.permute.xlu0 %3050
        %3054 = vset.pattern.permute.xlu0 0
        %3055 = vperm.xlu0 %3054, %v2997
        %v3056 = vpop.permute.xlu0 %3055
        %3059 = vset.pattern.permute.xlu0 0
        %3060 = vperm.xlu0 %3059, %v2998
        %v3061 = vpop.permute.xlu0 %3060
        %3064 = vset.pattern.permute.xlu0 0
        %3065 = vperm.xlu0 %3064, %v2999
        %v3066 = vpop.permute.xlu0 %3065
        %3069 = vset.pattern.permute.xlu0 0
        %3070 = vperm.xlu0 %3069, %v3000
        %v3071 = vpop.permute.xlu0 %3070
        %3074 = vset.pattern.permute.xlu0 0
        %3075 = vperm.xlu0 %3074, %v3001
        %v3076 = vpop.permute.xlu0 %3075
        %3079 = vset.pattern.permute.xlu0 0
        %3080 = vperm.xlu0 %3079, %v3002
        %v3081 = vpop.permute.xlu0 %3080
        %v3083 = vmul.f32 %v2971, %v3006
        %v3084 = vmul.f32 %v2972, %v3011
        %v3085 = vmul.f32 %v2973, %v3016
        %v3086 = vmul.f32 %v2974, %v3021
        %v3087 = vmul.f32 %v2975, %v3026
        %v3088 = vmul.f32 %v2976, %v3031
        %v3089 = vmul.f32 %v2977, %v3036
        %v3090 = vmul.f32 %v2978, %v3041
        %v3091 = vmul.f32 %v2979, %v3046
        %v3092 = vmul.f32 %v2980, %v3051
        %v3093 = vmul.f32 %v2981, %v3056
        %v3094 = vmul.f32 %v2982, %v3061
        %v3095 = vmul.f32 %v2983, %v3066
        %v3096 = vmul.f32 %v2984, %v3071
        %v3097 = vmul.f32 %v2985, %v3076
        %v3098 = vmul.f32 %v2986, %v3081
        %vm3099 = vcmask 523264
        %v3100 = vsel %vm3099, %v3083, 0.0
        %v3101 = vsel %vm3099, %v3084, 0.0
        %v3102 = vadd.f32 %v3100, %v3101
        %v3103 = vsel %vm3099, %v3085, 0.0
        %v3104 = vadd.f32 %v3102, %v3103
        %v3105 = vsel %vm3099, %v3086, 0.0
        %v3106 = vadd.f32 %v3104, %v3105
        %v3107 = vsel %vm3099, %v3087, 0.0
        %v3108 = vadd.f32 %v3106, %v3107
        %v3109 = vsel %vm3099, %v3088, 0.0
        %v3110 = vadd.f32 %v3108, %v3109
        %v3111 = vsel %vm3099, %v3089, 0.0
        %v3112 = vadd.f32 %v3110, %v3111
        %v3113 = vsel %vm3099, %v3090, 0.0
        %v3114 = vadd.f32 %v3112, %v3113
        %v3115 = vsel %vm3099, %v3091, 0.0
        %v3116 = vadd.f32 %v3114, %v3115
        %v3117 = vsel %vm3099, %v3092, 0.0
        %v3118 = vadd.f32 %v3116, %v3117
        %v3119 = vsel %vm3099, %v3093, 0.0
        %v3120 = vadd.f32 %v3118, %v3119
        %v3121 = vsel %vm3099, %v3094, 0.0
        %v3122 = vadd.f32 %v3120, %v3121
        %v3123 = vsel %vm3099, %v3095, 0.0
        %v3124 = vadd.f32 %v3122, %v3123
        %v3125 = vsel %vm3099, %v3096, 0.0
        %v3126 = vadd.f32 %v3124, %v3125
        %v3127 = vsel %vm3099, %v3097, 0.0
        %v3128 = vadd.f32 %v3126, %v3127
        %v3129 = vsel %vm3099, %v3098, 0.0
        %v3130 = vadd.f32 %v3128, %v3129
        %v3131 = vrot.slane %v3130, 4
        %v3132 = vadd.f32 %v3130, %v3131
        %v3133 = vrot.slane %v3132, 2
        %v3134 = vadd.f32 %v3132, %v3133
        %v3135 = vrot.slane %v3134, 1
        %v3136 = vadd.f32 %v3134, %v3135
        %v3137 = vmul.f32 %v3136, 0.015625
        %v3138 = vld [vmem:[%s8] sm:$0xff]
        %v3139 = vld [vmem:[%s8 + $0x8] sm:$0xff]
        %v3140 = vld [vmem:[%s8 + $0x10] sm:$0xff]
        %v3141 = vld [vmem:[%s8 + $0x18] sm:$0xff]
        %v3142 = vld [vmem:[%s8 + $0x20] sm:$0xff]
        %v3143 = vld [vmem:[%s8 + $0x28] sm:$0xff]
        %v3144 = vld [vmem:[%s8 + $0x30] sm:$0xff]
        %v3145 = vld [vmem:[%s8 + $0x38] sm:$0xff]
        %v3147 = vsel %vm3099, %v3137, 0
        %3149 = vmatprep.subr.mxu0 0.0
        %3150 = vmatpush1.msra.mxu0 %v3138
        %3151 = vmatprep.subr.mxu0 0.0
        %3152 = vmatpush1.msra.mxu0 %v3139
        %3153 = vmatprep.subr.mxu0 0.0
        %3154 = vmatpush1.msra.mxu0 %v3140
        %3155 = vmatprep.subr.mxu0 0.0
        %3156 = vmatpush1.msra.mxu0 %v3141
        %3157 = vmatprep.subr.mxu0 0.0
        %3158 = vmatpush1.msra.mxu0 %v3142
        %3159 = vmatprep.subr.mxu0 0.0
        %3160 = vmatpush1.msra.mxu0 %v3143
        %3161 = vmatprep.subr.mxu0 0.0
        %3162 = vmatpush1.msra.mxu0 %v3144
        %3163 = vmatprep.subr.mxu0 0.0
        %3164 = vmatpush1.msra.mxu0 %v3145
        %3165 = vmatprep.subr.mxu0 0.0
        %3166 = vmatpush1.msra.mxu0 0.0
        %3167 = vmatprep.subr.mxu0 0.0
        %3168 = vmatpush1.msra.mxu0 0.0
        %3169 = vmatprep.subr.mxu0 0.0
        %3170 = vmatpush1.msra.mxu0 0.0
        %3171 = vmatprep.subr.mxu0 0.0
        %3172 = vmatpush1.msra.mxu0 0.0
        %3173 = vmatprep.subr.mxu0 0.0
        %3174 = vmatpush1.msra.mxu0 0.0
        %3175 = vmatprep.subr.mxu0 0.0
        %3176 = vmatpush1.msra.mxu0 0.0
        %3177 = vmatprep.subr.mxu0 0.0
        %3178 = vmatpush1.msra.mxu0 0.0
        %3179 = vmatprep.subr.mxu0 0.0
        %3180 = vmatpush1.msra.mxu0 0.0
        %3181 = vmatprep.subr.mxu0 0.0
        %3182 = vmatpush1.msra.mxu0 0.0
        %3183 = vmatprep.subr.mxu0 0.0
        %3184 = vmatpush1.msra.mxu0 0.0
        %3185 = vmatprep.subr.mxu0 0.0
        %3186 = vmatpush1.msra.mxu0 0.0
        %3187 = vmatprep.subr.mxu0 0.0
        %3188 = vmatpush1.msra.mxu0 0.0
        %3189 = vmatprep.subr.mxu0 0.0
        %3190 = vmatpush1.msra.mxu0 0.0
        %3191 = vmatprep.subr.mxu0 0.0
        %3192 = vmatpush1.msra.mxu0 0.0
        %3193 = vmatprep.subr.mxu0 0.0
        %3194 = vmatpush1.msra.mxu0 0.0
        %3195 = vmatprep.subr.mxu0 0.0
        %3196 = vmatpush1.msra.mxu0 0.0
        %3197 = vmatprep.subr.mxu0 0.0
        %3198 = vmatpush1.msra.mxu0 0.0
        %3199 = vmatprep.subr.mxu0 0.0
        %3200 = vmatpush1.msra.mxu0 0.0
        %3201 = vmatprep.subr.mxu0 0.0
        %3202 = vmatpush1.msra.mxu0 0.0
        %3203 = vmatprep.subr.mxu0 0.0
        %3204 = vmatpush1.msra.mxu0 0.0
        %3205 = vmatprep.subr.mxu0 0.0
        %3206 = vmatpush1.msra.mxu0 0.0
        %3207 = vmatprep.subr.mxu0 0.0
        %3208 = vmatpush1.msra.mxu0 0.0
        %3209 = vmatprep.subr.mxu0 0.0
        %3210 = vmatpush1.msra.mxu0 0.0
        %3211 = vmatprep.subr.mxu0 0.0
        %3212 = vmatpush1.msra.mxu0 0.0
        %3213 = vmatprep.mubr.f32.mxu0 0.0
        %3214 = vmatmul.mubr.f32.gmra.mrb[0].mxu0 %v3147
        %v3215 = vpop.f32.mrb[0].mxu0
        %v3216 = vadd.f32 0.0, %v3215
        %v3217 = vpop.f32.mrb[0].mxu0
        %3218 = vdwg.mxu0
        %v3219 = vld [vmem:[%s9] sm:$0xff]
        %v3220 = vld [vmem:[%s9 + $0x8] sm:$0xff]
        %v3221 = vld [vmem:[%s9 + $0x10] sm:$0xff]
        %v3222 = vld [vmem:[%s9 + $0x18] sm:$0xff]
        %v3224 = vsel %vm614, %v3216, 0
        %3226 = vmatprep.subr.mxu0 0.0
        %3227 = vmatpush1.msra.mxu0 %v3219
        %3228 = vmatprep.subr.mxu0 0.0
        %3229 = vmatpush1.msra.mxu0 %v3220
        %3230 = vmatprep.subr.mxu0 0.0
        %3231 = vmatpush1.msra.mxu0 %v3221
        %3232 = vmatprep.subr.mxu0 0.0
        %3233 = vmatpush1.msra.mxu0 %v3222
        %3234 = vmatprep.subr.mxu0 0.0
        %3235 = vmatpush1.msra.mxu0 0.0
        %3236 = vmatprep.subr.mxu0 0.0
        %3237 = vmatpush1.msra.mxu0 0.0
        %3238 = vmatprep.subr.mxu0 0.0
        %3239 = vmatpush1.msra.mxu0 0.0
        %3240 = vmatprep.subr.mxu0 0.0
        %3241 = vmatpush1.msra.mxu0 0.0
        %3242 = vmatprep.subr.mxu0 0.0
        %3243 = vmatpush1.msra.mxu0 0.0
        %3244 = vmatprep.subr.mxu0 0.0
        %3245 = vmatpush1.msra.mxu0 0.0
        %3246 = vmatprep.subr.mxu0 0.0
        %3247 = vmatpush1.msra.mxu0 0.0
        %3248 = vmatprep.subr.mxu0 0.0
        %3249 = vmatpush1.msra.mxu0 0.0
        %3250 = vmatprep.subr.mxu0 0.0
        %3251 = vmatpush1.msra.mxu0 0.0
        %3252 = vmatprep.subr.mxu0 0.0
        %3253 = vmatpush1.msra.mxu0 0.0
        %3254 = vmatprep.subr.mxu0 0.0
        %3255 = vmatpush1.msra.mxu0 0.0
        %3256 = vmatprep.subr.mxu0 0.0
        %3257 = vmatpush1.msra.mxu0 0.0
        %3258 = vmatprep.subr.mxu0 0.0
        %3259 = vmatpush1.msra.mxu0 0.0
        %3260 = vmatprep.subr.mxu0 0.0
        %3261 = vmatpush1.msra.mxu0 0.0
        %3262 = vmatprep.subr.mxu0 0.0
        %3263 = vmatpush1.msra.mxu0 0.0
        %3264 = vmatprep.subr.mxu0 0.0
        %3265 = vmatpush1.msra.mxu0 0.0
        %3266 = vmatprep.subr.mxu0 0.0
        %3267 = vmatpush1.msra.mxu0 0.0
        %3268 = vmatprep.subr.mxu0 0.0
        %3269 = vmatpush1.msra.mxu0 0.0
        %3270 = vmatprep.subr.mxu0 0.0
        %3271 = vmatpush1.msra.mxu0 0.0
        %3272 = vmatprep.subr.mxu0 0.0
        %3273 = vmatpush1.msra.mxu0 0.0
        %3274 = vmatprep.subr.mxu0 0.0
        %3275 = vmatpush1.msra.mxu0 0.0
        %3276 = vmatprep.subr.mxu0 0.0
        %3277 = vmatpush1.msra.mxu0 0.0
        %3278 = vmatprep.subr.mxu0 0.0
        %3279 = vmatpush1.msra.mxu0 0.0
        %3280 = vmatprep.subr.mxu0 0.0
        %3281 = vmatpush1.msra.mxu0 0.0
        %3282 = vmatprep.subr.mxu0 0.0
        %3283 = vmatpush1.msra.mxu0 0.0
        %3284 = vmatprep.subr.mxu0 0.0
        %3285 = vmatpush1.msra.mxu0 0.0
        %3286 = vmatprep.subr.mxu0 0.0
        %3287 = vmatpush1.msra.mxu0 0.0
        %3288 = vmatprep.subr.mxu0 0.0
        %3289 = vmatpush1.msra.mxu0 0.0
        %3290 = vmatprep.mubr.f32.mxu0 0.0
        %3291 = vmatmul.mubr.f32.gmra.mrb[0].mxu0 %v3224
        %v3292 = vpop.f32.mrb[0].mxu0
        %v3293 = vadd.f32 0.0, %v3292
        %v3294 = vpop.f32.mrb[0].mxu0
        %3295 = vdwg.mxu0
        %v3296 = vlaneseq
        %v3297 = vshrl.u32 %v3296, 7
        %v3298 = vsub.s32 0, %v3297
        %v3299 = vrot.slane %v3293, %v3298
        %v3300 = vsub.f32 %v2971, %v3299
        %v3301 = vsub.f32 %v2972, %v3299
        %v3302 = vsub.f32 %v2973, %v3299
        %v3303 = vsub.f32 %v2974, %v3299
        %v3304 = vsub.f32 %v2975, %v3299
        %v3305 = vsub.f32 %v2976, %v3299
        %v3306 = vsub.f32 %v2977, %v3299
        %v3307 = vsub.f32 %v2978, %v3299
        %v3308 = vsub.f32 %v2979, %v3299
        %v3309 = vsub.f32 %v2980, %v3299
        %v3310 = vsub.f32 %v2981, %v3299
        %v3311 = vsub.f32 %v2982, %v3299
        %v3312 = vsub.f32 %v2983, %v3299
        %v3313 = vsub.f32 %v2984, %v3299
        %v3314 = vsub.f32 %v2985, %v3299
        %v3315 = vsub.f32 %v2986, %v3299
        %v3316 = vmul.f32 %v3300, %v3006
        %v3317 = vmul.f32 %v3301, %v3011
        %v3318 = vmul.f32 %v3302, %v3016
        %v3319 = vmul.f32 %v3303, %v3021
        %v3320 = vmul.f32 %v3304, %v3026
        %v3321 = vmul.f32 %v3305, %v3031
        %v3322 = vmul.f32 %v3306, %v3036
        %v3323 = vmul.f32 %v3307, %v3041
        %v3324 = vmul.f32 %v3308, %v3046
        %v3325 = vmul.f32 %v3309, %v3051
        %v3326 = vmul.f32 %v3310, %v3056
        %v3327 = vmul.f32 %v3311, %v3061
        %v3328 = vmul.f32 %v3312, %v3066
        %v3329 = vmul.f32 %v3313, %v3071
        %v3330 = vmul.f32 %v3314, %v3076
        %v3331 = vmul.f32 %v3315, %v3081
        %v3332 = vmul.f32 %v3316, %v3316
        %v3333 = vmul.f32 %v3317, %v3317
        %v3334 = vmul.f32 %v3318, %v3318
        %v3335 = vmul.f32 %v3319, %v3319
        %v3336 = vmul.f32 %v3320, %v3320
        %v3337 = vmul.f32 %v3321, %v3321
        %v3338 = vmul.f32 %v3322, %v3322
        %v3339 = vmul.f32 %v3323, %v3323
        %v3340 = vmul.f32 %v3324, %v3324
        %v3341 = vmul.f32 %v3325, %v3325
        %v3342 = vmul.f32 %v3326, %v3326
        %v3343 = vmul.f32 %v3327, %v3327
        %v3344 = vmul.f32 %v3328, %v3328
        %v3345 = vmul.f32 %v3329, %v3329
        %v3346 = vmul.f32 %v3330, %v3330
        %v3347 = vmul.f32 %v3331, %v3331
        %v3348 = vsel %vm3099, %v3332, 0.0
        %v3349 = vsel %vm3099, %v3333, 0.0
        %v3350 = vadd.f32 %v3348, %v3349
        %v3351 = vsel %vm3099, %v3334, 0.0
        %v3352 = vadd.f32 %v3350, %v3351
        %v3353 = vsel %vm3099, %v3335, 0.0
        %v3354 = vadd.f32 %v3352, %v3353
        %v3355 = vsel %vm3099, %v3336, 0.0
        %v3356 = vadd.f32 %v3354, %v3355
        %v3357 = vsel %vm3099, %v3337, 0.0
        %v3358 = vadd.f32 %v3356, %v3357
        %v3359 = vsel %vm3099, %v3338, 0.0
        %v3360 = vadd.f32 %v3358, %v3359
        %v3361 = vsel %vm3099, %v3339, 0.0
        %v3362 = vadd.f32 %v3360, %v3361
        %v3363 = vsel %vm3099, %v3340, 0.0
        %v3364 = vadd.f32 %v3362, %v3363
        %v3365 = vsel %vm3099, %v3341, 0.0
        %v3366 = vadd.f32 %v3364, %v3365
        %v3367 = vsel %vm3099, %v3342, 0.0
        %v3368 = vadd.f32 %v3366, %v3367
        %v3369 = vsel %vm3099, %v3343, 0.0
        %v3370 = vadd.f32 %v3368, %v3369
        %v3371 = vsel %vm3099, %v3344, 0.0
        %v3372 = vadd.f32 %v3370, %v3371
        %v3373 = vsel %vm3099, %v3345, 0.0
        %v3374 = vadd.f32 %v3372, %v3373
        %v3375 = vsel %vm3099, %v3346, 0.0
        %v3376 = vadd.f32 %v3374, %v3375
        %v3377 = vsel %vm3099, %v3347, 0.0
        %v3378 = vadd.f32 %v3376, %v3377
        %v3379 = vrot.slane %v3378, 4
        %v3380 = vadd.f32 %v3378, %v3379
        %v3381 = vrot.slane %v3380, 2
        %v3382 = vadd.f32 %v3380, %v3381
        %v3383 = vrot.slane %v3382, 1
        %v3384 = vadd.f32 %v3382, %v3383
        %v3385 = vmul.f32 %v3384, 0.015625
        %v3387 = vsel %vm3099, %v3385, 0
        %3389 = vmatprep.subr.mxu0 0.0
        %3390 = vmatpush1.msra.mxu0 %v3138
        %3391 = vmatprep.subr.mxu0 0.0
        %3392 = vmatpush1.msra.mxu0 %v3139
        %3393 = vmatprep.subr.mxu0 0.0
        %3394 = vmatpush1.msra.mxu0 %v3140
        %3395 = vmatprep.subr.mxu0 0.0
        %3396 = vmatpush1.msra.mxu0 %v3141
        %3397 = vmatprep.subr.mxu0 0.0
        %3398 = vmatpush1.msra.mxu0 %v3142
        %3399 = vmatprep.subr.mxu0 0.0
        %3400 = vmatpush1.msra.mxu0 %v3143
        %3401 = vmatprep.subr.mxu0 0.0
        %3402 = vmatpush1.msra.mxu0 %v3144
        %3403 = vmatprep.subr.mxu0 0.0
        %3404 = vmatpush1.msra.mxu0 %v3145
        %3405 = vmatprep.subr.mxu0 0.0
        %3406 = vmatpush1.msra.mxu0 0.0
        %3407 = vmatprep.subr.mxu0 0.0
        %3408 = vmatpush1.msra.mxu0 0.0
        %3409 = vmatprep.subr.mxu0 0.0
        %3410 = vmatpush1.msra.mxu0 0.0
        %3411 = vmatprep.subr.mxu0 0.0
        %3412 = vmatpush1.msra.mxu0 0.0
        %3413 = vmatprep.subr.mxu0 0.0
        %3414 = vmatpush1.msra.mxu0 0.0
        %3415 = vmatprep.subr.mxu0 0.0
        %3416 = vmatpush1.msra.mxu0 0.0
        %3417 = vmatprep.subr.mxu0 0.0
        %3418 = vmatpush1.msra.mxu0 0.0
        %3419 = vmatprep.subr.mxu0 0.0
        %3420 = vmatpush1.msra.mxu0 0.0
        %3421 = vmatprep.subr.mxu0 0.0
        %3422 = vmatpush1.msra.mxu0 0.0
        %3423 = vmatprep.subr.mxu0 0.0
        %3424 = vmatpush1.msra.mxu0 0.0
        %3425 = vmatprep.subr.mxu0 0.0
        %3426 = vmatpush1.msra.mxu0 0.0
        %3427 = vmatprep.subr.mxu0 0.0
        %3428 = vmatpush1.msra.mxu0 0.0
        %3429 = vmatprep.subr.mxu0 0.0
        %3430 = vmatpush1.msra.mxu0 0.0
        %3431 = vmatprep.subr.mxu0 0.0
        %3432 = vmatpush1.msra.mxu0 0.0
        %3433 = vmatprep.subr.mxu0 0.0
        %3434 = vmatpush1.msra.mxu0 0.0
        %3435 = vmatprep.subr.mxu0 0.0
        %3436 = vmatpush1.msra.mxu0 0.0
        %3437 = vmatprep.subr.mxu0 0.0
        %3438 = vmatpush1.msra.mxu0 0.0
        %3439 = vmatprep.subr.mxu0 0.0
        %3440 = vmatpush1.msra.mxu0 0.0
        %3441 = vmatprep.subr.mxu0 0.0
        %3442 = vmatpush1.msra.mxu0 0.0
        %3443 = vmatprep.subr.mxu0 0.0
        %3444 = vmatpush1.msra.mxu0 0.0
        %3445 = vmatprep.subr.mxu0 0.0
        %3446 = vmatpush1.msra.mxu0 0.0
        %3447 = vmatprep.subr.mxu0 0.0
        %3448 = vmatpush1.msra.mxu0 0.0
        %3449 = vmatprep.subr.mxu0 0.0
        %3450 = vmatpush1.msra.mxu0 0.0
        %3451 = vmatprep.subr.mxu0 0.0
        %3452 = vmatpush1.msra.mxu0 0.0
        %3453 = vmatprep.mubr.f32.mxu0 0.0
        %3454 = vmatmul.mubr.f32.gmra.mrb[0].mxu0 %v3387
        %v3455 = vpop.f32.mrb[0].mxu0
        %v3456 = vadd.f32 0.0, %v3455
        %v3457 = vpop.f32.mrb[0].mxu0
        %3458 = vdwg.mxu0
        %v3460 = vsel %vm614, %v3456, 0
        %3462 = vmatprep.subr.mxu0 0.0
        %3463 = vmatpush1.msra.mxu0 %v3219
        %3464 = vmatprep.subr.mxu0 0.0
        %3465 = vmatpush1.msra.mxu0 %v3220
        %3466 = vmatprep.subr.mxu0 0.0
        %3467 = vmatpush1.msra.mxu0 %v3221
        %3468 = vmatprep.subr.mxu0 0.0
        %3469 = vmatpush1.msra.mxu0 %v3222
        %3470 = vmatprep.subr.mxu0 0.0
        %3471 = vmatpush1.msra.mxu0 0.0
        %3472 = vmatprep.subr.mxu0 0.0
        %3473 = vmatpush1.msra.mxu0 0.0
        %3474 = vmatprep.subr.mxu0 0.0
        %3475 = vmatpush1.msra.mxu0 0.0
        %3476 = vmatprep.subr.mxu0 0.0
        %3477 = vmatpush1.msra.mxu0 0.0
        %3478 = vmatprep.subr.mxu0 0.0
        %3479 = vmatpush1.msra.mxu0 0.0
        %3480 = vmatprep.subr.mxu0 0.0
        %3481 = vmatpush1.msra.mxu0 0.0
        %3482 = vmatprep.subr.mxu0 0.0
        %3483 = vmatpush1.msra.mxu0 0.0
        %3484 = vmatprep.subr.mxu0 0.0
        %3485 = vmatpush1.msra.mxu0 0.0
        %3486 = vmatprep.subr.mxu0 0.0
        %3487 = vmatpush1.msra.mxu0 0.0
        %3488 = vmatprep.subr.mxu0 0.0
        %3489 = vmatpush1.msra.mxu0 0.0
        %3490 = vmatprep.subr.mxu0 0.0
        %3491 = vmatpush1.msra.mxu0 0.0
        %3492 = vmatprep.subr.mxu0 0.0
        %3493 = vmatpush1.msra.mxu0 0.0
        %3494 = vmatprep.subr.mxu0 0.0
        %3495 = vmatpush1.msra.mxu0 0.0
        %3496 = vmatprep.subr.mxu0 0.0
        %3497 = vmatpush1.msra.mxu0 0.0
        %3498 = vmatprep.subr.mxu0 0.0
        %3499 = vmatpush1.msra.mxu0 0.0
        %3500 = vmatprep.subr.mxu0 0.0
        %3501 = vmatpush1.msra.mxu0 0.0
        %3502 = vmatprep.subr.mxu0 0.0
        %3503 = vmatpush1.msra.mxu0 0.0
        %3504 = vmatprep.subr.mxu0 0.0
        %3505 = vmatpush1.msra.mxu0 0.0
        %3506 = vmatprep.subr.mxu0 0.0
        %3507 = vmatpush1.msra.mxu0 0.0
        %3508 = vmatprep.subr.mxu0 0.0
        %3509 = vmatpush1.msra.mxu0 0.0
        %3510 = vmatprep.subr.mxu0 0.0
        %3511 = vmatpush1.msra.mxu0 0.0
        %3512 = vmatprep.subr.mxu0 0.0
        %3513 = vmatpush1.msra.mxu0 0.0
        %3514 = vmatprep.subr.mxu0 0.0
        %3515 = vmatpush1.msra.mxu0 0.0
        %3516 = vmatprep.subr.mxu0 0.0
        %3517 = vmatpush1.msra.mxu0 0.0
        %3518 = vmatprep.subr.mxu0 0.0
        %3519 = vmatpush1.msra.mxu0 0.0
        %3520 = vmatprep.subr.mxu0 0.0
        %3521 = vmatpush1.msra.mxu0 0.0
        %3522 = vmatprep.subr.mxu0 0.0
        %3523 = vmatpush1.msra.mxu0 0.0
        %3524 = vmatprep.subr.mxu0 0.0
        %3525 = vmatpush1.msra.mxu0 0.0
        %3526 = vmatprep.mubr.f32.mxu0 0.0
        %3527 = vmatmul.mubr.f32.gmra.mrb[0].mxu0 %v3460
        %v3528 = vpop.f32.mrb[0].mxu0
        %v3529 = vadd.f32 1e-05, %v3528
        %v3530 = vpop.f32.mrb[0].mxu0
        %3531 = vdwg.mxu0
        %v3532 = vrsqrt.pop %v3529
        %v3533 = vld [vmem:[#allocation9] sm:$0x1]
        %v3534 = vmul.f32 %v3532, %v3533
        %v3535 = vlaneseq
        %v3536 = vshrl.u32 %v3535, 7
        %v3537 = vsub.s32 0, %v3536
        %v3538 = vrot.slane %v3534, %v3537
        %v3539 = vmul.f32 %v3300, %v3538
        %v3540 = vmul.f32 %v3301, %v3538
        %v3541 = vmul.f32 %v3302, %v3538
        %v3542 = vmul.f32 %v3303, %v3538
        %v3543 = vmul.f32 %v3304, %v3538
        %v3544 = vmul.f32 %v3305, %v3538
        %v3545 = vmul.f32 %v3306, %v3538
        %v3546 = vmul.f32 %v3307, %v3538
        %v3547 = vmul.f32 %v3308, %v3538
        %v3548 = vmul.f32 %v3309, %v3538
        %v3549 = vmul.f32 %v3310, %v3538
        %v3550 = vmul.f32 %v3311, %v3538
        %v3551 = vmul.f32 %v3312, %v3538
        %v3552 = vmul.f32 %v3313, %v3538
        %v3553 = vmul.f32 %v3314, %v3538
        %v3554 = vmul.f32 %v3315, %v3538
        %v3555 = vld [vmem:[#allocation10] sm:$0x1]
        %v3557 = vlaneseq
        %v3558 = vshrl.u32 %v3557, 7
        %v3559 = vsub.s32 0, %v3558
        %v3560 = vrot.slane %v3555, %v3559
        %v3562 = vadd.f32 %v3539, %v3560
        %v3563 = vadd.f32 %v3540, %v3560
        %v3564 = vadd.f32 %v3541, %v3560
        %v3565 = vadd.f32 %v3542, %v3560
        %v3566 = vadd.f32 %v3543, %v3560
        %v3567 = vadd.f32 %v3544, %v3560
        %v3568 = vadd.f32 %v3545, %v3560
        %v3569 = vadd.f32 %v3546, %v3560
        %v3570 = vadd.f32 %v3547, %v3560
        %v3571 = vadd.f32 %v3548, %v3560
        %v3572 = vadd.f32 %v3549, %v3560
        %v3573 = vadd.f32 %v3550, %v3560
        %v3574 = vadd.f32 %v3551, %v3560
        %v3575 = vadd.f32 %v3552, %v3560
        %v3576 = vadd.f32 %v3553, %v3560
        %v3577 = vadd.f32 %v3554, %v3560
        %v3578 = vmul.f32 %v3562, %v3006
        %v3579 = vmul.f32 %v3563, %v3011
        %v3580 = vmul.f32 %v3564, %v3016
        %v3581 = vmul.f32 %v3565, %v3021
        %v3582 = vmul.f32 %v3566, %v3026
        %v3583 = vmul.f32 %v3567, %v3031
        %v3584 = vmul.f32 %v3568, %v3036
        %v3585 = vmul.f32 %v3569, %v3041
        %v3586 = vmul.f32 %v3570, %v3046
        %v3587 = vmul.f32 %v3571, %v3051
        %v3588 = vmul.f32 %v3572, %v3056
        %v3589 = vmul.f32 %v3573, %v3061
        %v3590 = vmul.f32 %v3574, %v3066
        %v3591 = vmul.f32 %v3575, %v3071
        %v3592 = vmul.f32 %v3576, %v3076
        %v3593 = vmul.f32 %v3577, %v3081
        %v3594 = vpack.c.bf16 %v3579, %v3578
        %v3595 = vpack.c.bf16 %v3581, %v3580
        %v3596 = vpack.c.bf16 %v3583, %v3582
        %v3597 = vpack.c.bf16 %v3585, %v3584
        %v3598 = vpack.c.bf16 %v3587, %v3586
        %v3599 = vpack.c.bf16 %v3589, %v3588
        %v3600 = vpack.c.bf16 %v3591, %v3590
        %v3601 = vpack.c.bf16 %v3593, %v3592
        %3602 = vst.msk [vmem:[#allocation3] sm:$0xff] %vm3099, 0
        %vm3603 = vcmask 519168
        %3604 = vst.msk [vmem:[#allocation3 + $0x8] sm:$0xf] %vm3603, 0
        %vm3605 = vcmask 523268
        %3606 = vst.msk [vmem:[#allocation3 + $0x48] sm:$0xf0] %vm3605, 0
        %3607 = vst.msk [vmem:[#allocation3 + $0x50] sm:$0xff] %vm3099, 0
        %v3616 = vrot.slane %v3594, 4
        %v3617 = vrot.slane %v3595, 4
        %v3618 = vsel %vm1089, %v3616, %v3617
        %v3619 = vrot.slane %v3596, 4
        %v3620 = vsel %vm1089, %v3617, %v3619
        %v3621 = vrot.slane %v3597, 4
        %v3622 = vsel %vm1089, %v3619, %v3621
        %v3623 = vrot.slane %v3598, 4
        %v3624 = vsel %vm1089, %v3621, %v3623
        %v3625 = vrot.slane %v3599, 4
        %v3626 = vsel %vm1089, %v3623, %v3625
        %v3627 = vrot.slane %v3600, 4
        %v3628 = vsel %vm1089, %v3625, %v3627
        %v3629 = vrot.slane %v3601, 4
        %v3630 = vsel %vm1089, %v3627, %v3629
        %3640 = vst.msk [vmem:[#allocation3 + $0x8] sm:$0xf0] %vm3605, %v3616
        %3641 = vst.msk [vmem:[#allocation3 + $0x10] sm:$0xff] %vm3099, %v3618
        %3642 = vst.msk [vmem:[#allocation3 + $0x18] sm:$0xff] %vm3099, %v3620
        %3643 = vst.msk [vmem:[#allocation3 + $0x20] sm:$0xff] %vm3099, %v3622
        %3644 = vst.msk [vmem:[#allocation3 + $0x28] sm:$0xff] %vm3099, %v3624
        %3645 = vst.msk [vmem:[#allocation3 + $0x30] sm:$0xff] %vm3099, %v3626
        %3646 = vst.msk [vmem:[#allocation3 + $0x38] sm:$0xff] %vm3099, %v3628
        %3647 = vst.msk [vmem:[#allocation3 + $0x40] sm:$0xff] %vm3099, %v3630
        %3648 = vst.msk [vmem:[#allocation3 + $0x48] sm:$0xf] %vm3603, %v3629
        %v3649 = vld [vmem:[#allocation13] sm:$0x1]
        %v3650 = vld [vmem:[#allocation3] sm:$0xf8]
        %v3651 = vld [vmem:[#allocation3 + $0x8] sm:$0xff]
        %v3652 = vld [vmem:[#allocation3 + $0x10] sm:$0xff]
        %v3653 = vld [vmem:[#allocation3 + $0x18] sm:$0xff]
        %v3654 = vld [vmem:[#allocation3 + $0x20] sm:$0xff]
        %v3655 = vld [vmem:[#allocation3 + $0x28] sm:$0xff]
        %v3656 = vld [vmem:[#allocation3 + $0x30] sm:$0xff]
        %v3657 = vld [vmem:[#allocation3 + $0x38] sm:$0xff]
        %v3658 = vld [vmem:[#allocation3 + $0x40] sm:$0xf]
        %v3659 = vld [vmem:[#allocation12] sm:$0xf]
        %v3660 = vld [vmem:[#allocation12 + $0x4] sm:$0xf]
        %v3661 = vld [vmem:[#allocation12 + $0x8] sm:$0xf]
        %v3662 = vld [vmem:[#allocation12 + $0xc] sm:$0xf]
        %v3663 = vld [vmem:[#allocation12 + $0x10] sm:$0xf]
        %v3664 = vld [vmem:[#allocation12 + $0x14] sm:$0xf]
        %v3665 = vld [vmem:[#allocation12 + $0x18] sm:$0xf]
        %v3666 = vld [vmem:[#allocation12 + $0x1c] sm:$0xf]
        %v3667 = vld [vmem:[#allocation3] sm:$0xf0]
        %s3668 = scalar_lea.vmem [#allocation12], 32
        %v3669 = vld [vmem:[%s3668] sm:$0xf]
        %v3670 = vld [vmem:[%s3668 + $0x4] sm:$0xf]
        %v3671 = vld [vmem:[%s3668 + $0x8] sm:$0xf]
        %v3672 = vld [vmem:[%s3668 + $0xc] sm:$0xf]
        %v3673 = vld [vmem:[%s3668 + $0x10] sm:$0xf]
        %v3674 = vld [vmem:[%s3668 + $0x14] sm:$0xf]
        %v3675 = vld [vmem:[%s3668 + $0x18] sm:$0xf]
        %v3676 = vld [vmem:[%s3668 + $0x1c] sm:$0xf]
        %v3686 = vrot.slane %v3667, 4
        %v3687 = vrot.slane %v3651, 4
        %v3688 = vsel %vm1089, %v3686, %v3687
        %v3689 = vrot.slane %v3652, 4
        %v3690 = vsel %vm1089, %v3687, %v3689
        %v3691 = vrot.slane %v3653, 4
        %v3692 = vsel %vm1089, %v3689, %v3691
        %v3693 = vrot.slane %v3654, 4
        %v3694 = vsel %vm1089, %v3691, %v3693
        %v3695 = vrot.slane %v3655, 4
        %v3696 = vsel %vm1089, %v3693, %v3695
        %v3697 = vrot.slane %v3656, 4
        %v3698 = vsel %vm1089, %v3695, %v3697
        %v3699 = vrot.slane %v3657, 4
        %v3700 = vsel %vm1089, %v3697, %v3699
        %v3701 = vrot.slane %v3658, 4
        %v3702 = vsel %vm1089, %v3699, %v3701
        %v3711 = vunpack.c.l.b16 %v3669
        %v3712 = vunpack.c.l.b16 %v3670
        %v3713 = vunpack.c.l.b16 %v3671
        %v3714 = vunpack.c.l.b16 %v3672
        %v3715 = vunpack.c.l.b16 %v3673
        %v3716 = vunpack.c.l.b16 %v3674
        %v3717 = vunpack.c.l.b16 %v3675
        %v3718 = vunpack.c.l.b16 %v3676
        %v3719 = vpack.c.b16 %v3712, %v3711
        %v3720 = vpack.c.b16 %v3714, %v3713
        %v3721 = vpack.c.b16 %v3716, %v3715
        %v3722 = vpack.c.b16 %v3718, %v3717
        %v3728 = vsel %vm3099, %v3688, 0
        %v3731 = vsel %vm3099, %v3690, 0
        %v3734 = vsel %vm3099, %v3692, 0
        %v3737 = vsel %vm3099, %v3694, 0
        %v3740 = vsel %vm3099, %v3696, 0
        %v3743 = vsel %vm3099, %v3698, 0
        %v3746 = vsel %vm3099, %v3700, 0
        %v3749 = vsel %vm3099, %v3702, 0
        %3751 = vmatprep.subr.bf16.mxu0 0
        %3752 = vmatpush1.bf16.msra.mxu0 %v3719
        %3753 = vmatprep.subr.bf16.mxu0 0
        %3754 = vmatpush1.bf16.msra.mxu0 %v3720
        %3755 = vmatprep.subr.bf16.mxu0 0
        %3756 = vmatpush1.bf16.msra.mxu0 %v3721
        %3757 = vmatprep.subr.bf16.mxu0 0
        %3758 = vmatpush1.bf16.msra.mxu0 %v3722
        %3759 = vmatprep.subr.bf16.mxu0 0
        %3760 = vmatpush1.bf16.msra.mxu0 0
        %3761 = vmatprep.subr.bf16.mxu0 0
        %3762 = vmatpush1.bf16.msra.mxu0 0
        %3763 = vmatprep.subr.bf16.mxu0 0
        %3764 = vmatpush1.bf16.msra.mxu0 0
        %3765 = vmatprep.subr.bf16.mxu0 0
        %3766 = vmatpush1.bf16.msra.mxu0 0
        %3767 = vmatprep.subr.bf16.mxu0 0
        %3768 = vmatpush1.bf16.msra.mxu0 0
        %3769 = vmatprep.subr.bf16.mxu0 0
        %3770 = vmatpush1.bf16.msra.mxu0 0
        %3771 = vmatprep.subr.bf16.mxu0 0
        %3772 = vmatpush1.bf16.msra.mxu0 0
        %3773 = vmatprep.subr.bf16.mxu0 0
        %3774 = vmatpush1.bf16.msra.mxu0 0
        %3775 = vmatprep.subr.bf16.mxu0 0
        %3776 = vmatpush1.bf16.msra.mxu0 0
        %3777 = vmatprep.subr.bf16.mxu0 0
        %3778 = vmatpush1.bf16.msra.mxu0 0
        %3779 = vmatprep.subr.bf16.mxu0 0
        %3780 = vmatpush1.bf16.msra.mxu0 0
        %3781 = vmatprep.subr.bf16.mxu0 0
        %3782 = vmatpush1.bf16.msra.mxu0 0
        %3783 = vmatprep.mubr.bf16.mxu0 0
        %3784 = vmatmul.mubr.bf16.gmra.mrb[0].mxu0 %v3728
        %v3785 = vpop.f32.mrb[0].mxu0
        %v3786 = vadd.f32 0.0, %v3785
        %v3787 = vpop.f32.mrb[0].mxu0
        %v3788 = vpop.f32.mrb[0].mxu0
        %v3789 = vpop.f32.mrb[0].mxu0
        %3790 = vmatprep.mubr.bf16.mxu0 0
        %3791 = vmatmul.mubr.bf16.gmra.mrb[0].mxu0 %v3731
        %v3792 = vpop.f32.mrb[0].mxu0
        %v3793 = vadd.f32 0.0, %v3792
        %v3794 = vpop.f32.mrb[0].mxu0
        %v3795 = vpop.f32.mrb[0].mxu0
        %v3796 = vpop.f32.mrb[0].mxu0
        %3797 = vmatprep.mubr.bf16.mxu0 0
        %3798 = vmatmul.mubr.bf16.gmra.mrb[0].mxu0 %v3734
        %v3799 = vpop.f32.mrb[0].mxu0
        %v3800 = vadd.f32 0.0, %v3799
        %v3801 = vpop.f32.mrb[0].mxu0
        %v3802 = vpop.f32.mrb[0].mxu0
        %v3803 = vpop.f32.mrb[0].mxu0
        %3804 = vmatprep.mubr.bf16.mxu0 0
        %3805 = vmatmul.mubr.bf16.gmra.mrb[0].mxu0 %v3737
        %v3806 = vpop.f32.mrb[0].mxu0
        %v3807 = vadd.f32 0.0, %v3806
        %v3808 = vpop.f32.mrb[0].mxu0
        %v3809 = vpop.f32.mrb[0].mxu0
        %v3810 = vpop.f32.mrb[0].mxu0
        %3811 = vmatprep.mubr.bf16.mxu0 0
        %3812 = vmatmul.mubr.bf16.gmra.mrb[0].mxu0 %v3740
        %v3813 = vpop.f32.mrb[0].mxu0
        %v3814 = vadd.f32 0.0, %v3813
        %v3815 = vpop.f32.mrb[0].mxu0
        %v3816 = vpop.f32.mrb[0].mxu0
        %v3817 = vpop.f32.mrb[0].mxu0
        %3818 = vmatprep.mubr.bf16.mxu0 0
        %3819 = vmatmul.mubr.bf16.gmra.mrb[0].mxu0 %v3743
        %v3820 = vpop.f32.mrb[0].mxu0
        %v3821 = vadd.f32 0.0, %v3820
        %v3822 = vpop.f32.mrb[0].mxu0
        %v3823 = vpop.f32.mrb[0].mxu0
        %v3824 = vpop.f32.mrb[0].mxu0
        %3825 = vmatprep.mubr.bf16.mxu0 0
        %3826 = vmatmul.mubr.bf16.gmra.mrb[0].mxu0 %v3746
        %v3827 = vpop.f32.mrb[0].mxu0
        %v3828 = vadd.f32 0.0, %v3827
        %v3829 = vpop.f32.mrb[0].mxu0
        %v3830 = vpop.f32.mrb[0].mxu0
        %v3831 = vpop.f32.mrb[0].mxu0
        %3832 = vmatprep.mubr.bf16.mxu0 0
        %3833 = vmatmul.mubr.bf16.gmra.mrb[0].mxu0 %v3749
        %v3834 = vpop.f32.mrb[0].mxu0
        %v3835 = vadd.f32 0.0, %v3834
        %v3836 = vpop.f32.mrb[0].mxu0
        %v3837 = vpop.f32.mrb[0].mxu0
        %v3838 = vpop.f32.mrb[0].mxu0
        %3839 = vdwg.mxu0
        %v3841 = vshrl.u32 %v3650, 16
        %v3843 = vrot.slane %v3841, 3
        %v3844 = vshll.u32 %v3650, 16
        %v3846 = vrot.slane %v3844, 4
        %v3847 = vor.u32 %v3843, %v3846
        %v3849 = vshrl.u32 %v3651, 16
        %v3851 = vrot.slane %v3849, 3
        %v3852 = vshll.u32 %v3651, 16
        %v3854 = vrot.slane %v3852, 4
        %v3855 = vor.u32 %v3851, %v3854
        %v3856 = vsel %vm1302, %v3847, %v3855
        %v3858 = vshrl.u32 %v3652, 16
        %v3860 = vrot.slane %v3858, 3
        %v3861 = vshll.u32 %v3652, 16
        %v3863 = vrot.slane %v3861, 4
        %v3864 = vor.u32 %v3860, %v3863
        %v3865 = vsel %vm1302, %v3855, %v3864
        %v3867 = vshrl.u32 %v3653, 16
        %v3869 = vrot.slane %v3867, 3
        %v3870 = vshll.u32 %v3653, 16
        %v3872 = vrot.slane %v3870, 4
        %v3873 = vor.u32 %v3869, %v3872
        %v3874 = vsel %vm1302, %v3864, %v3873
        %v3876 = vshrl.u32 %v3654, 16
        %v3878 = vrot.slane %v3876, 3
        %v3879 = vshll.u32 %v3654, 16
        %v3881 = vrot.slane %v3879, 4
        %v3882 = vor.u32 %v3878, %v3881
        %v3883 = vsel %vm1302, %v3873, %v3882
        %v3885 = vshrl.u32 %v3655, 16
        %v3887 = vrot.slane %v3885, 3
        %v3888 = vshll.u32 %v3655, 16
        %v3890 = vrot.slane %v3888, 4
        %v3891 = vor.u32 %v3887, %v3890
        %v3892 = vsel %vm1302, %v3882, %v3891
        %v3894 = vshrl.u32 %v3656, 16
        %v3896 = vrot.slane %v3894, 3
        %v3897 = vshll.u32 %v3656, 16
        %v3899 = vrot.slane %v3897, 4
        %v3900 = vor.u32 %v3896, %v3899
        %v3901 = vsel %vm1302, %v3891, %v3900
        %v3903 = vshrl.u32 %v3657, 16
        %v3905 = vrot.slane %v3903, 3
        %v3906 = vshll.u32 %v3657, 16
        %v3908 = vrot.slane %v3906, 4
        %v3909 = vor.u32 %v3905, %v3908
        %v3910 = vsel %vm1302, %v3900, %v3909
        %v3912 = vshrl.u32 %v3658, 16
        %v3914 = vrot.slane %v3912, 3
        %v3915 = vshll.u32 %v3658, 16
        %v3917 = vrot.slane %v3915, 4
        %v3918 = vor.u32 %v3914, %v3917
        %v3919 = vsel %vm1302, %v3909, %v3918
        %v3928 = vunpack.c.l.b16 %v3659
        %v3929 = vunpack.c.l.b16 %v3660
        %v3930 = vunpack.c.l.b16 %v3661
        %v3931 = vunpack.c.l.b16 %v3662
        %v3932 = vunpack.c.l.b16 %v3663
        %v3933 = vunpack.c.l.b16 %v3664
        %v3934 = vunpack.c.l.b16 %v3665
        %v3935 = vunpack.c.l.b16 %v3666
        %v3936 = vpack.c.b16 %v3929, %v3928
        %v3937 = vpack.c.b16 %v3931, %v3930
        %v3938 = vpack.c.b16 %v3933, %v3932
        %v3939 = vpack.c.b16 %v3935, %v3934
        %v3945 = vsel %vm3099, %v3856, 0
        %v3948 = vsel %vm3099, %v3865, 0
        %v3951 = vsel %vm3099, %v3874, 0
        %v3954 = vsel %vm3099, %v3883, 0
        %v3957 = vsel %vm3099, %v3892, 0
        %v3960 = vsel %vm3099, %v3901, 0
        %v3963 = vsel %vm3099, %v3910, 0
        %v3966 = vsel %vm3099, %v3919, 0
        %3968 = vmatprep.subr.bf16.mxu0 0
        %3969 = vmatpush1.bf16.msra.mxu0 %v3936
        %3970 = vmatprep.subr.bf16.mxu0 0
        %3971 = vmatpush1.bf16.msra.mxu0 %v3937
        %3972 = vmatprep.subr.bf16.mxu0 0
        %3973 = vmatpush1.bf16.msra.mxu0 %v3938
        %3974 = vmatprep.subr.bf16.mxu0 0
        %3975 = vmatpush1.bf16.msra.mxu0 %v3939
        %3976 = vmatprep.subr.bf16.mxu0 0
        %3977 = vmatpush1.bf16.msra.mxu0 0
        %3978 = vmatprep.subr.bf16.mxu0 0
        %3979 = vmatpush1.bf16.msra.mxu0 0
        %3980 = vmatprep.subr.bf16.mxu0 0
        %3981 = vmatpush1.bf16.msra.mxu0 0
        %3982 = vmatprep.subr.bf16.mxu0 0
        %3983 = vmatpush1.bf16.msra.mxu0 0
        %3984 = vmatprep.subr.bf16.mxu0 0
        %3985 = vmatpush1.bf16.msra.mxu0 0
        %3986 = vmatprep.subr.bf16.mxu0 0
        %3987 = vmatpush1.bf16.msra.mxu0 0
        %3988 = vmatprep.subr.bf16.mxu0 0
        %3989 = vmatpush1.bf16.msra.mxu0 0
        %3990 = vmatprep.subr.bf16.mxu0 0
        %3991 = vmatpush1.bf16.msra.mxu0 0
        %3992 = vmatprep.subr.bf16.mxu0 0
        %3993 = vmatpush1.bf16.msra.mxu0 0
        %3994 = vmatprep.subr.bf16.mxu0 0
        %3995 = vmatpush1.bf16.msra.mxu0 0
        %3996 = vmatprep.subr.bf16.mxu0 0
        %3997 = vmatpush1.bf16.msra.mxu0 0
        %3998 = vmatprep.subr.bf16.mxu0 0
        %3999 = vmatpush1.bf16.msra.mxu0 0
        %4000 = vmatprep.mubr.bf16.mxu0 0
        %4001 = vmatmul.mubr.bf16.gmra.mrb[0].mxu0 %v3945
        %v4002 = vpop.f32.mrb[0].mxu0
        %v4003 = vadd.f32 %v3786, %v4002
        %v4004 = vpop.f32.mrb[0].mxu0
        %v4005 = vpop.f32.mrb[0].mxu0
        %v4006 = vpop.f32.mrb[0].mxu0
        %4007 = vmatprep.mubr.bf16.mxu0 0
        %4008 = vmatmul.mubr.bf16.gmra.mrb[0].mxu0 %v3948
        %v4009 = vpop.f32.mrb[0].mxu0
        %v4010 = vadd.f32 %v3793, %v4009
        %v4011 = vpop.f32.mrb[0].mxu0
        %v4012 = vpop.f32.mrb[0].mxu0
        %v4013 = vpop.f32.mrb[0].mxu0
        %4014 = vmatprep.mubr.bf16.mxu0 0
        %4015 = vmatmul.mubr.bf16.gmra.mrb[0].mxu0 %v3951
        %v4016 = vpop.f32.mrb[0].mxu0
        %v4017 = vadd.f32 %v3800, %v4016
        %v4018 = vpop.f32.mrb[0].mxu0
        %v4019 = vpop.f32.mrb[0].mxu0
        %v4020 = vpop.f32.mrb[0].mxu0
        %4021 = vmatprep.mubr.bf16.mxu0 0
        %4022 = vmatmul.mubr.bf16.gmra.mrb[0].mxu0 %v3954
        %v4023 = vpop.f32.mrb[0].mxu0
        %v4024 = vadd.f32 %v3807, %v4023
        %v4025 = vpop.f32.mrb[0].mxu0
        %v4026 = vpop.f32.mrb[0].mxu0
        %v4027 = vpop.f32.mrb[0].mxu0
        %4028 = vmatprep.mubr.bf16.mxu0 0
        %4029 = vmatmul.mubr.bf16.gmra.mrb[0].mxu0 %v3957
        %v4030 = vpop.f32.mrb[0].mxu0
        %v4031 = vadd.f32 %v3814, %v4030
        %v4032 = vpop.f32.mrb[0].mxu0
        %v4033 = vpop.f32.mrb[0].mxu0
        %v4034 = vpop.f32.mrb[0].mxu0
        %4035 = vmatprep.mubr.bf16.mxu0 0
        %4036 = vmatmul.mubr.bf16.gmra.mrb[0].mxu0 %v3960
        %v4037 = vpop.f32.mrb[0].mxu0
        %v4038 = vadd.f32 %v3821, %v4037
        %v4039 = vpop.f32.mrb[0].mxu0
        %v4040 = vpop.f32.mrb[0].mxu0
        %v4041 = vpop.f32.mrb[0].mxu0
        %4042 = vmatprep.mubr.bf16.mxu0 0
        %4043 = vmatmul.mubr.bf16.gmra.mrb[0].mxu0 %v3963
        %v4044 = vpop.f32.mrb[0].mxu0
        %v4045 = vadd.f32 %v3828, %v4044
        %v4046 = vpop.f32.mrb[0].mxu0
        %v4047 = vpop.f32.mrb[0].mxu0
        %v4048 = vpop.f32.mrb[0].mxu0
        %4049 = vmatprep.mubr.bf16.mxu0 0
        %4050 = vmatmul.mubr.bf16.gmra.mrb[0].mxu0 %v3966
        %v4051 = vpop.f32.mrb[0].mxu0
        %v4052 = vadd.f32 %v3835, %v4051
        %v4053 = vpop.f32.mrb[0].mxu0
        %v4054 = vpop.f32.mrb[0].mxu0
        %v4055 = vpop.f32.mrb[0].mxu0
        %4056 = vdwg.mxu0
        %v4057 = vld [vmem:[#allocation3 + $0x40] sm:$0x1f]
        %s4058 = scalar_lea.vmem [#allocation12], 64
        %v4059 = vld [vmem:[%s4058] sm:$0xf]
        %v4060 = vld [vmem:[%s4058 + $0x4] sm:$0xf]
        %v4061 = vld [vmem:[%s4058 + $0x8] sm:$0xf]
        %v4062 = vld [vmem:[%s4058 + $0xc] sm:$0xf]
        %v4063 = vld [vmem:[%s4058 + $0x10] sm:$0xf]
        %v4064 = vld [vmem:[%s4058 + $0x14] sm:$0xf]
        %v4065 = vld [vmem:[%s4058 + $0x18] sm:$0xf]
        %v4066 = vld [vmem:[%s4058 + $0x1c] sm:$0xf]
        %v4068 = vshrl.u32 %v3667, 16
        %v4070 = vrot.slane %v4068, 4
        %v4071 = vshll.u32 %v3667, 16
        %v4073 = vrot.slane %v4071, 5
        %v4074 = vor.u32 %v4070, %v4073
        %v4075 = vrot.slane %v3849, 4
        %v4076 = vrot.slane %v3852, 5
        %v4077 = vor.u32 %v4075, %v4076
        %v4078 = vsel %vm1522, %v4074, %v4077
        %v4079 = vrot.slane %v3858, 4
        %v4080 = vrot.slane %v3861, 5
        %v4081 = vor.u32 %v4079, %v4080
        %v4082 = vsel %vm1522, %v4077, %v4081
        %v4083 = vrot.slane %v3867, 4
        %v4084 = vrot.slane %v3870, 5
        %v4085 = vor.u32 %v4083, %v4084
        %v4086 = vsel %vm1522, %v4081, %v4085
        %v4087 = vrot.slane %v3876, 4
        %v4088 = vrot.slane %v3879, 5
        %v4089 = vor.u32 %v4087, %v4088
        %v4090 = vsel %vm1522, %v4085, %v4089
        %v4091 = vrot.slane %v3885, 4
        %v4092 = vrot.slane %v3888, 5
        %v4093 = vor.u32 %v4091, %v4092
        %v4094 = vsel %vm1522, %v4089, %v4093
        %v4095 = vrot.slane %v3894, 4
        %v4096 = vrot.slane %v3897, 5
        %v4097 = vor.u32 %v4095, %v4096
        %v4098 = vsel %vm1522, %v4093, %v4097
        %v4099 = vrot.slane %v3903, 4
        %v4100 = vrot.slane %v3906, 5
        %v4101 = vor.u32 %v4099, %v4100
        %v4102 = vsel %vm1522, %v4097, %v4101
        %v4104 = vshrl.u32 %v4057, 16
        %v4106 = vrot.slane %v4104, 4
        %v4107 = vshll.u32 %v4057, 16
        %v4109 = vrot.slane %v4107, 5
        %v4110 = vor.u32 %v4106, %v4109
        %v4111 = vsel %vm1522, %v4101, %v4110
        %v4120 = vunpack.c.l.b16 %v4059
        %v4121 = vunpack.c.l.b16 %v4060
        %v4122 = vunpack.c.l.b16 %v4061
        %v4123 = vunpack.c.l.b16 %v4062
        %v4124 = vunpack.c.l.b16 %v4063
        %v4125 = vunpack.c.l.b16 %v4064
        %v4126 = vunpack.c.l.b16 %v4065
        %v4127 = vunpack.c.l.b16 %v4066
        %v4128 = vpack.c.b16 %v4121, %v4120
        %v4129 = vpack.c.b16 %v4123, %v4122
        %v4130 = vpack.c.b16 %v4125, %v4124
        %v4131 = vpack.c.b16 %v4127, %v4126
        %v4137 = vsel %vm3099, %v4078, 0
        %v4140 = vsel %vm3099, %v4082, 0
        %v4143 = vsel %vm3099, %v4086, 0
        %v4146 = vsel %vm3099, %v4090, 0
        %v4149 = vsel %vm3099, %v4094, 0
        %v4152 = vsel %vm3099, %v4098, 0
        %v4155 = vsel %vm3099, %v4102, 0
        %v4158 = vsel %vm3099, %v4111, 0
        %4160 = vmatprep.subr.bf16.mxu0 0
        %4161 = vmatpush1.bf16.msra.mxu0 %v4128
        %4162 = vmatprep.subr.bf16.mxu0 0
        %4163 = vmatpush1.bf16.msra.mxu0 %v4129
        %4164 = vmatprep.subr.bf16.mxu0 0
        %4165 = vmatpush1.bf16.msra.mxu0 %v4130
        %4166 = vmatprep.subr.bf16.mxu0 0
        %4167 = vmatpush1.bf16.msra.mxu0 %v4131
        %4168 = vmatprep.subr.bf16.mxu0 0
        %4169 = vmatpush1.bf16.msra.mxu0 0
        %4170 = vmatprep.subr.bf16.mxu0 0
        %4171 = vmatpush1.bf16.msra.mxu0 0
        %4172 = vmatprep.subr.bf16.mxu0 0
        %4173 = vmatpush1.bf16.msra.mxu0 0
        %4174 = vmatprep.subr.bf16.mxu0 0
        %4175 = vmatpush1.bf16.msra.mxu0 0
        %4176 = vmatprep.subr.bf16.mxu0 0
        %4177 = vmatpush1.bf16.msra.mxu0 0
        %4178 = vmatprep.subr.bf16.mxu0 0
        %4179 = vmatpush1.bf16.msra.mxu0 0
        %4180 = vmatprep.subr.bf16.mxu0 0
        %4181 = vmatpush1.bf16.msra.mxu0 0
        %4182 = vmatprep.subr.bf16.mxu0 0
        %4183 = vmatpush1.bf16.msra.mxu0 0
        %4184 = vmatprep.subr.bf16.mxu0 0
        %4185 = vmatpush1.bf16.msra.mxu0 0
        %4186 = vmatprep.subr.bf16.mxu0 0
        %4187 = vmatpush1.bf16.msra.mxu0 0
        %4188 = vmatprep.subr.bf16.mxu0 0
        %4189 = vmatpush1.bf16.msra.mxu0 0
        %4190 = vmatprep.subr.bf16.mxu0 0
        %4191 = vmatpush1.bf16.msra.mxu0 0
        %4192 = vmatprep.mubr.bf16.mxu0 0
        %4193 = vmatmul.mubr.bf16.gmra.mrb[0].mxu0 %v4137
        %v4194 = vpop.f32.mrb[0].mxu0
        %v4195 = vadd.f32 0.0, %v4194
        %v4196 = vpop.f32.mrb[0].mxu0
        %v4197 = vpop.f32.mrb[0].mxu0
        %v4198 = vpop.f32.mrb[0].mxu0
        %4199 = vmatprep.mubr.bf16.mxu0 0
        %4200 = vmatmul.mubr.bf16.gmra.mrb[0].mxu0 %v4140
        %v4201 = vpop.f32.mrb[0].mxu0
        %v4202 = vadd.f32 0.0, %v4201
        %v4203 = vpop.f32.mrb[0].mxu0
        %v4204 = vpop.f32.mrb[0].mxu0
        %v4205 = vpop.f32.mrb[0].mxu0
        %4206 = vmatprep.mubr.bf16.mxu0 0
        %4207 = vmatmul.mubr.bf16.gmra.mrb[0].mxu0 %v4143
        %v4208 = vpop.f32.mrb[0].mxu0
        %v4209 = vadd.f32 0.0, %v4208
        %v4210 = vpop.f32.mrb[0].mxu0
        %v4211 = vpop.f32.mrb[0].mxu0
        %v4212 = vpop.f32.mrb[0].mxu0
        %4213 = vmatprep.mubr.bf16.mxu0 0
        %4214 = vmatmul.mubr.bf16.gmra.mrb[0].mxu0 %v4146
        %v4215 = vpop.f32.mrb[0].mxu0
        %v4216 = vadd.f32 0.0, %v4215
        %v4217 = vpop.f32.mrb[0].mxu0
        %v4218 = vpop.f32.mrb[0].mxu0
        %v4219 = vpop.f32.mrb[0].mxu0
        %4220 = vmatprep.mubr.bf16.mxu0 0
        %4221 = vmatmul.mubr.bf16.gmra.mrb[0].mxu0 %v4149
        %v4222 = vpop.f32.mrb[0].mxu0
        %v4223 = vadd.f32 0.0, %v4222
        %v4224 = vpop.f32.mrb[0].mxu0
        %v4225 = vpop.f32.mrb[0].mxu0
        %v4226 = vpop.f32.mrb[0].mxu0
        %4227 = vmatprep.mubr.bf16.mxu0 0
        %4228 = vmatmul.mubr.bf16.gmra.mrb[0].mxu0 %v4152
        %v4229 = vpop.f32.mrb[0].mxu0
        %v4230 = vadd.f32 0.0, %v4229
        %v4231 = vpop.f32.mrb[0].mxu0
        %v4232 = vpop.f32.mrb[0].mxu0
        %v4233 = vpop.f32.mrb[0].mxu0
        %4234 = vmatprep.mubr.bf16.mxu0 0
        %4235 = vmatmul.mubr.bf16.gmra.mrb[0].mxu0 %v4155
        %v4236 = vpop.f32.mrb[0].mxu0
        %v4237 = vadd.f32 0.0, %v4236
        %v4238 = vpop.f32.mrb[0].mxu0
        %v4239 = vpop.f32.mrb[0].mxu0
        %v4240 = vpop.f32.mrb[0].mxu0
        %4241 = vmatprep.mubr.bf16.mxu0 0
        %4242 = vmatmul.mubr.bf16.gmra.mrb[0].mxu0 %v4158
        %v4243 = vpop.f32.mrb[0].mxu0
        %v4244 = vadd.f32 0.0, %v4243
        %v4245 = vpop.f32.mrb[0].mxu0
        %v4246 = vpop.f32.mrb[0].mxu0
        %v4247 = vpop.f32.mrb[0].mxu0
        %4248 = vdwg.mxu0
        %v4249 = vadd.f32 %v4003, %v4195
        %v4250 = vadd.f32 %v4010, %v4202
        %v4251 = vadd.f32 %v4017, %v4209
        %v4252 = vadd.f32 %v4024, %v4216
        %v4253 = vadd.f32 %v4031, %v4223
        %v4254 = vadd.f32 %v4038, %v4230
        %v4255 = vadd.f32 %v4045, %v4237
        %v4256 = vadd.f32 %v4052, %v4244
        %v4257 = vld [vmem:[#allocation3 + $0x8] sm:$0xf8]
        %v4258 = vld [vmem:[#allocation3 + $0x10] sm:$0xff]
        %v4259 = vld [vmem:[#allocation3 + $0x18] sm:$0xff]
        %v4260 = vld [vmem:[#allocation3 + $0x20] sm:$0xff]
        %v4261 = vld [vmem:[#allocation3 + $0x28] sm:$0xff]
        %v4262 = vld [vmem:[#allocation3 + $0x30] sm:$0xff]
        %v4263 = vld [vmem:[#allocation3 + $0x38] sm:$0xff]
        %v4264 = vld [vmem:[#allocation3 + $0x40] sm:$0xff]
        %v4265 = vld [vmem:[#allocation3 + $0x48] sm:$0xf]
        %s4266 = scalar_lea.vmem [#allocation12], 96
        %v4267 = vld [vmem:[%s4266] sm:$0xf]
        %v4268 = vld [vmem:[%s4266 + $0x4] sm:$0xf]
        %v4269 = vld [vmem:[%s4266 + $0x8] sm:$0xf]
        %v4270 = vld [vmem:[%s4266 + $0xc] sm:$0xf]
        %v4271 = vld [vmem:[%s4266 + $0x10] sm:$0xf]
        %v4272 = vld [vmem:[%s4266 + $0x14] sm:$0xf]
        %v4273 = vld [vmem:[%s4266 + $0x18] sm:$0xf]
        %v4274 = vld [vmem:[%s4266 + $0x1c] sm:$0xf]
        %v4276 = vshrl.u32 %v4257, 16
        %v4278 = vrot.slane %v4276, 3
        %v4279 = vshll.u32 %v4257, 16
        %v4281 = vrot.slane %v4279, 4
        %v4282 = vor.u32 %v4278, %v4281
        %v4284 = vshrl.u32 %v4258, 16
        %v4286 = vrot.slane %v4284, 3
        %v4287 = vshll.u32 %v4258, 16
        %v4289 = vrot.slane %v4287, 4
        %v4290 = vor.u32 %v4286, %v4289
        %v4291 = vsel %vm1302, %v4282, %v4290
        %v4293 = vshrl.u32 %v4259, 16
        %v4295 = vrot.slane %v4293, 3
        %v4296 = vshll.u32 %v4259, 16
        %v4298 = vrot.slane %v4296, 4
        %v4299 = vor.u32 %v4295, %v4298
        %v4300 = vsel %vm1302, %v4290, %v4299
        %v4302 = vshrl.u32 %v4260, 16
        %v4304 = vrot.slane %v4302, 3
        %v4305 = vshll.u32 %v4260, 16
        %v4307 = vrot.slane %v4305, 4
        %v4308 = vor.u32 %v4304, %v4307
        %v4309 = vsel %vm1302, %v4299, %v4308
        %v4311 = vshrl.u32 %v4261, 16
        %v4313 = vrot.slane %v4311, 3
        %v4314 = vshll.u32 %v4261, 16
        %v4316 = vrot.slane %v4314, 4
        %v4317 = vor.u32 %v4313, %v4316
        %v4318 = vsel %vm1302, %v4308, %v4317
        %v4320 = vshrl.u32 %v4262, 16
        %v4322 = vrot.slane %v4320, 3
        %v4323 = vshll.u32 %v4262, 16
        %v4325 = vrot.slane %v4323, 4
        %v4326 = vor.u32 %v4322, %v4325
        %v4327 = vsel %vm1302, %v4317, %v4326
        %v4329 = vshrl.u32 %v4263, 16
        %v4331 = vrot.slane %v4329, 3
        %v4332 = vshll.u32 %v4263, 16
        %v4334 = vrot.slane %v4332, 4
        %v4335 = vor.u32 %v4331, %v4334
        %v4336 = vsel %vm1302, %v4326, %v4335
        %v4338 = vshrl.u32 %v4264, 16
        %v4340 = vrot.slane %v4338, 3
        %v4341 = vshll.u32 %v4264, 16
        %v4343 = vrot.slane %v4341, 4
        %v4344 = vor.u32 %v4340, %v4343
        %v4345 = vsel %vm1302, %v4335, %v4344
        %v4347 = vshrl.u32 %v4265, 16
        %v4349 = vrot.slane %v4347, 3
        %v4350 = vshll.u32 %v4265, 16
        %v4352 = vrot.slane %v4350, 4
        %v4353 = vor.u32 %v4349, %v4352
        %v4354 = vsel %vm1302, %v4344, %v4353
        %v4363 = vunpack.c.l.b16 %v4267
        %v4364 = vunpack.c.l.b16 %v4268
        %v4365 = vunpack.c.l.b16 %v4269
        %v4366 = vunpack.c.l.b16 %v4270
        %v4367 = vunpack.c.l.b16 %v4271
        %v4368 = vunpack.c.l.b16 %v4272
        %v4369 = vunpack.c.l.b16 %v4273
        %v4370 = vunpack.c.l.b16 %v4274
        %v4371 = vpack.c.b16 %v4364, %v4363
        %v4372 = vpack.c.b16 %v4366, %v4365
        %v4373 = vpack.c.b16 %v4368, %v4367
        %v4374 = vpack.c.b16 %v4370, %v4369
        %v4380 = vsel %vm3099, %v4291, 0
        %v4383 = vsel %vm3099, %v4300, 0
        %v4386 = vsel %vm3099, %v4309, 0
        %v4389 = vsel %vm3099, %v4318, 0
        %v4392 = vsel %vm3099, %v4327, 0
        %v4395 = vsel %vm3099, %v4336, 0
        %v4398 = vsel %vm3099, %v4345, 0
        %v4401 = vsel %vm3099, %v4354, 0
        %4403 = vmatprep.subr.bf16.mxu0 0
        %4404 = vmatpush1.bf16.msra.mxu0 %v4371
        %4405 = vmatprep.subr.bf16.mxu0 0
        %4406 = vmatpush1.bf16.msra.mxu0 %v4372
        %4407 = vmatprep.subr.bf16.mxu0 0
        %4408 = vmatpush1.bf16.msra.mxu0 %v4373
        %4409 = vmatprep.subr.bf16.mxu0 0
        %4410 = vmatpush1.bf16.msra.mxu0 %v4374
        %4411 = vmatprep.subr.bf16.mxu0 0
        %4412 = vmatpush1.bf16.msra.mxu0 0
        %4413 = vmatprep.subr.bf16.mxu0 0
        %4414 = vmatpush1.bf16.msra.mxu0 0
        %4415 = vmatprep.subr.bf16.mxu0 0
        %4416 = vmatpush1.bf16.msra.mxu0 0
        %4417 = vmatprep.subr.bf16.mxu0 0
        %4418 = vmatpush1.bf16.msra.mxu0 0
        %4419 = vmatprep.subr.bf16.mxu0 0
        %4420 = vmatpush1.bf16.msra.mxu0 0
        %4421 = vmatprep.subr.bf16.mxu0 0
        %4422 = vmatpush1.bf16.msra.mxu0 0
        %4423 = vmatprep.subr.bf16.mxu0 0
        %4424 = vmatpush1.bf16.msra.mxu0 0
        %4425 = vmatprep.subr.bf16.mxu0 0
        %4426 = vmatpush1.bf16.msra.mxu0 0
        %4427 = vmatprep.subr.bf16.mxu0 0
        %4428 = vmatpush1.bf16.msra.mxu0 0
        %4429 = vmatprep.subr.bf16.mxu0 0
        %4430 = vmatpush1.bf16.msra.mxu0 0
        %4431 = vmatprep.subr.bf16.mxu0 0
        %4432 = vmatpush1.bf16.msra.mxu0 0
        %4433 = vmatprep.subr.bf16.mxu0 0
        %4434 = vmatpush1.bf16.msra.mxu0 0
        %4435 = vmatprep.mubr.bf16.mxu0 0
        %4436 = vmatmul.mubr.bf16.gmra.mrb[0].mxu0 %v4380
        %v4437 = vpop.f32.mrb[0].mxu0
        %v4438 = vadd.f32 0.0, %v4437
        %v4439 = vpop.f32.mrb[0].mxu0
        %v4440 = vpop.f32.mrb[0].mxu0
        %v4441 = vpop.f32.mrb[0].mxu0
        %4442 = vmatprep.mubr.bf16.mxu0 0
        %4443 = vmatmul.mubr.bf16.gmra.mrb[0].mxu0 %v4383
        %v4444 = vpop.f32.mrb[0].mxu0
        %v4445 = vadd.f32 0.0, %v4444
        %v4446 = vpop.f32.mrb[0].mxu0
        %v4447 = vpop.f32.mrb[0].mxu0
        %v4448 = vpop.f32.mrb[0].mxu0
        %4449 = vmatprep.mubr.bf16.mxu0 0
        %4450 = vmatmul.mubr.bf16.gmra.mrb[0].mxu0 %v4386
        %v4451 = vpop.f32.mrb[0].mxu0
        %v4452 = vadd.f32 0.0, %v4451
        %v4453 = vpop.f32.mrb[0].mxu0
        %v4454 = vpop.f32.mrb[0].mxu0
        %v4455 = vpop.f32.mrb[0].mxu0
        %4456 = vmatprep.mubr.bf16.mxu0 0
        %4457 = vmatmul.mubr.bf16.gmra.mrb[0].mxu0 %v4389
        %v4458 = vpop.f32.mrb[0].mxu0
        %v4459 = vadd.f32 0.0, %v4458
        %v4460 = vpop.f32.mrb[0].mxu0
        %v4461 = vpop.f32.mrb[0].mxu0
        %v4462 = vpop.f32.mrb[0].mxu0
        %4463 = vmatprep.mubr.bf16.mxu0 0
        %4464 = vmatmul.mubr.bf16.gmra.mrb[0].mxu0 %v4392
        %v4465 = vpop.f32.mrb[0].mxu0
        %v4466 = vadd.f32 0.0, %v4465
        %v4467 = vpop.f32.mrb[0].mxu0
        %v4468 = vpop.f32.mrb[0].mxu0
        %v4469 = vpop.f32.mrb[0].mxu0
        %4470 = vmatprep.mubr.bf16.mxu0 0
        %4471 = vmatmul.mubr.bf16.gmra.mrb[0].mxu0 %v4395
        %v4472 = vpop.f32.mrb[0].mxu0
        %v4473 = vadd.f32 0.0, %v4472
        %v4474 = vpop.f32.mrb[0].mxu0
        %v4475 = vpop.f32.mrb[0].mxu0
        %v4476 = vpop.f32.mrb[0].mxu0
        %4477 = vmatprep.mubr.bf16.mxu0 0
        %4478 = vmatmul.mubr.bf16.gmra.mrb[0].mxu0 %v4398
        %v4479 = vpop.f32.mrb[0].mxu0
        %v4480 = vadd.f32 0.0, %v4479
        %v4481 = vpop.f32.mrb[0].mxu0
        %v4482 = vpop.f32.mrb[0].mxu0
        %v4483 = vpop.f32.mrb[0].mxu0
        %4484 = vmatprep.mubr.bf16.mxu0 0
        %4485 = vmatmul.mubr.bf16.gmra.mrb[0].mxu0 %v4401
        %v4486 = vpop.f32.mrb[0].mxu0
        %v4487 = vadd.f32 0.0, %v4486
        %v4488 = vpop.f32.mrb[0].mxu0
        %v4489 = vpop.f32.mrb[0].mxu0
        %v4490 = vpop.f32.mrb[0].mxu0
        %4491 = vdwg.mxu0
        %v4492 = vadd.f32 %v4249, %v4438
        %v4493 = vadd.f32 %v4250, %v4445
        %v4494 = vadd.f32 %v4251, %v4452
        %v4495 = vadd.f32 %v4252, %v4459
        %v4496 = vadd.f32 %v4253, %v4466
        %v4497 = vadd.f32 %v4254, %v4473
        %v4498 = vadd.f32 %v4255, %v4480
        %v4499 = vadd.f32 %v4256, %v4487
        %v4500 = vld [vmem:[#allocation3 + $0x8] sm:$0xf0]
        %s4501 = scalar_lea.vmem [#allocation12], 128
        %v4502 = vld [vmem:[%s4501] sm:$0xf]
        %v4503 = vld [vmem:[%s4501 + $0x4] sm:$0xf]
        %v4504 = vld [vmem:[%s4501 + $0x8] sm:$0xf]
        %v4505 = vld [vmem:[%s4501 + $0xc] sm:$0xf]
        %v4506 = vld [vmem:[%s4501 + $0x10] sm:$0xf]
        %v4507 = vld [vmem:[%s4501 + $0x14] sm:$0xf]
        %v4508 = vld [vmem:[%s4501 + $0x18] sm:$0xf]
        %v4509 = vld [vmem:[%s4501 + $0x1c] sm:$0xf]
        %v4519 = vrot.slane %v4500, 4
        %v4520 = vrot.slane %v4258, 4
        %v4521 = vsel %vm1089, %v4519, %v4520
        %v4522 = vrot.slane %v4259, 4
        %v4523 = vsel %vm1089, %v4520, %v4522
        %v4524 = vrot.slane %v4260, 4
        %v4525 = vsel %vm1089, %v4522, %v4524
        %v4526 = vrot.slane %v4261, 4
        %v4527 = vsel %vm1089, %v4524, %v4526
        %v4528 = vrot.slane %v4262, 4
        %v4529 = vsel %vm1089, %v4526, %v4528
        %v4530 = vrot.slane %v4263, 4
        %v4531 = vsel %vm1089, %v4528, %v4530
        %v4532 = vrot.slane %v4264, 4
        %v4533 = vsel %vm1089, %v4530, %v4532
        %v4534 = vrot.slane %v4265, 4
        %v4535 = vsel %vm1089, %v4532, %v4534
        %v4544 = vunpack.c.l.b16 %v4502
        %v4545 = vunpack.c.l.b16 %v4503
        %v4546 = vunpack.c.l.b16 %v4504
        %v4547 = vunpack.c.l.b16 %v4505
        %v4548 = vunpack.c.l.b16 %v4506
        %v4549 = vunpack.c.l.b16 %v4507
        %v4550 = vunpack.c.l.b16 %v4508
        %v4551 = vunpack.c.l.b16 %v4509
        %v4552 = vpack.c.b16 %v4545, %v4544
        %v4553 = vpack.c.b16 %v4547, %v4546
        %v4554 = vpack.c.b16 %v4549, %v4548
        %v4555 = vpack.c.b16 %v4551, %v4550
        %v4561 = vsel %vm3099, %v4521, 0
        %v4564 = vsel %vm3099, %v4523, 0
        %v4567 = vsel %vm3099, %v4525, 0
        %v4570 = vsel %vm3099, %v4527, 0
        %v4573 = vsel %vm3099, %v4529, 0
        %v4576 = vsel %vm3099, %v4531, 0
        %v4579 = vsel %vm3099, %v4533, 0
        %v4582 = vsel %vm3099, %v4535, 0
        %4584 = vmatprep.subr.bf16.mxu0 0
        %4585 = vmatpush1.bf16.msra.mxu0 %v4552
        %4586 = vmatprep.subr.bf16.mxu0 0
        %4587 = vmatpush1.bf16.msra.mxu0 %v4553
        %4588 = vmatprep.subr.bf16.mxu0 0
        %4589 = vmatpush1.bf16.msra.mxu0 %v4554
        %4590 = vmatprep.subr.bf16.mxu0 0
        %4591 = vmatpush1.bf16.msra.mxu0 %v4555
        %4592 = vmatprep.subr.bf16.mxu0 0
        %4593 = vmatpush1.bf16.msra.mxu0 0
        %4594 = vmatprep.subr.bf16.mxu0 0
        %4595 = vmatpush1.bf16.msra.mxu0 0
        %4596 = vmatprep.subr.bf16.mxu0 0
        %4597 = vmatpush1.bf16.msra.mxu0 0
        %4598 = vmatprep.subr.bf16.mxu0 0
        %4599 = vmatpush1.bf16.msra.mxu0 0
        %4600 = vmatprep.subr.bf16.mxu0 0
        %4601 = vmatpush1.bf16.msra.mxu0 0
        %4602 = vmatprep.subr.bf16.mxu0 0
        %4603 = vmatpush1.bf16.msra.mxu0 0
        %4604 = vmatprep.subr.bf16.mxu0 0
        %4605 = vmatpush1.bf16.msra.mxu0 0
        %4606 = vmatprep.subr.bf16.mxu0 0
        %4607 = vmatpush1.bf16.msra.mxu0 0
        %4608 = vmatprep.subr.bf16.mxu0 0
        %4609 = vmatpush1.bf16.msra.mxu0 0
        %4610 = vmatprep.subr.bf16.mxu0 0
        %4611 = vmatpush1.bf16.msra.mxu0 0
        %4612 = vmatprep.subr.bf16.mxu0 0
        %4613 = vmatpush1.bf16.msra.mxu0 0
        %4614 = vmatprep.subr.bf16.mxu0 0
        %4615 = vmatpush1.bf16.msra.mxu0 0
        %4616 = vmatprep.mubr.bf16.mxu0 0
        %4617 = vmatmul.mubr.bf16.gmra.mrb[0].mxu0 %v4561
        %v4618 = vpop.f32.mrb[0].mxu0
        %v4619 = vadd.f32 0.0, %v4618
        %v4620 = vpop.f32.mrb[0].mxu0
        %v4621 = vpop.f32.mrb[0].mxu0
        %v4622 = vpop.f32.mrb[0].mxu0
        %4623 = vmatprep.mubr.bf16.mxu0 0
        %4624 = vmatmul.mubr.bf16.gmra.mrb[0].mxu0 %v4564
        %v4625 = vpop.f32.mrb[0].mxu0
        %v4626 = vadd.f32 0.0, %v4625
        %v4627 = vpop.f32.mrb[0].mxu0
        %v4628 = vpop.f32.mrb[0].mxu0
        %v4629 = vpop.f32.mrb[0].mxu0
        %4630 = vmatprep.mubr.bf16.mxu0 0
        %4631 = vmatmul.mubr.bf16.gmra.mrb[0].mxu0 %v4567
        %v4632 = vpop.f32.mrb[0].mxu0
        %v4633 = vadd.f32 0.0, %v4632
        %v4634 = vpop.f32.mrb[0].mxu0
        %v4635 = vpop.f32.mrb[0].mxu0
        %v4636 = vpop.f32.mrb[0].mxu0
        %4637 = vmatprep.mubr.bf16.mxu0 0
        %4638 = vmatmul.mubr.bf16.gmra.mrb[0].mxu0 %v4570
        %v4639 = vpop.f32.mrb[0].mxu0
        %v4640 = vadd.f32 0.0, %v4639
        %v4641 = vpop.f32.mrb[0].mxu0
        %v4642 = vpop.f32.mrb[0].mxu0
        %v4643 = vpop.f32.mrb[0].mxu0
        %4644 = vmatprep.mubr.bf16.mxu0 0
        %4645 = vmatmul.mubr.bf16.gmra.mrb[0].mxu0 %v4573
        %v4646 = vpop.f32.mrb[0].mxu0
        %v4647 = vadd.f32 0.0, %v4646
        %v4648 = vpop.f32.mrb[0].mxu0
        %v4649 = vpop.f32.mrb[0].mxu0
        %v4650 = vpop.f32.mrb[0].mxu0
        %4651 = vmatprep.mubr.bf16.mxu0 0
        %4652 = vmatmul.mubr.bf16.gmra.mrb[0].mxu0 %v4576
        %v4653 = vpop.f32.mrb[0].mxu0
        %v4654 = vadd.f32 0.0, %v4653
        %v4655 = vpop.f32.mrb[0].mxu0
        %v4656 = vpop.f32.mrb[0].mxu0
        %v4657 = vpop.f32.mrb[0].mxu0
        %4658 = vmatprep.mubr.bf16.mxu0 0
        %4659 = vmatmul.mubr.bf16.gmra.mrb[0].mxu0 %v4579
        %v4660 = vpop.f32.mrb[0].mxu0
        %v4661 = vadd.f32 0.0, %v4660
        %v4662 = vpop.f32.mrb[0].mxu0
        %v4663 = vpop.f32.mrb[0].mxu0
        %v4664 = vpop.f32.mrb[0].mxu0
        %4665 = vmatprep.mubr.bf16.mxu0 0
        %4666 = vmatmul.mubr.bf16.gmra.mrb[0].mxu0 %v4582
        %v4667 = vpop.f32.mrb[0].mxu0
        %v4668 = vadd.f32 0.0, %v4667
        %v4669 = vpop.f32.mrb[0].mxu0
        %v4670 = vpop.f32.mrb[0].mxu0
        %v4671 = vpop.f32.mrb[0].mxu0
        %4672 = vdwg.mxu0
        %v4673 = vadd.f32 %v4492, %v4619
        %v4674 = vadd.f32 %v4493, %v4626
        %v4675 = vadd.f32 %v4494, %v4633
        %v4676 = vadd.f32 %v4495, %v4640
        %v4677 = vadd.f32 %v4496, %v4647
        %v4678 = vadd.f32 %v4497, %v4654
        %v4679 = vadd.f32 %v4498, %v4661
        %v4680 = vadd.f32 %v4499, %v4668
        %v4681 = vld [vmem:[#allocation3 + $0x48] sm:$0x1f]
        %s4682 = scalar_lea.vmem [#allocation12], 160
        %v4683 = vld [vmem:[%s4682] sm:$0xf]
        %v4684 = vld [vmem:[%s4682 + $0x4] sm:$0xf]
        %v4685 = vld [vmem:[%s4682 + $0x8] sm:$0xf]
        %v4686 = vld [vmem:[%s4682 + $0xc] sm:$0xf]
        %v4687 = vld [vmem:[%s4682 + $0x10] sm:$0xf]
        %v4688 = vld [vmem:[%s4682 + $0x14] sm:$0xf]
        %v4689 = vld [vmem:[%s4682 + $0x18] sm:$0xf]
        %v4690 = vld [vmem:[%s4682 + $0x1c] sm:$0xf]
        %v4692 = vshrl.u32 %v4500, 16
        %v4694 = vrot.slane %v4692, 4
        %v4695 = vshll.u32 %v4500, 16
        %v4697 = vrot.slane %v4695, 5
        %v4698 = vor.u32 %v4694, %v4697
        %v4699 = vrot.slane %v4284, 4
        %v4700 = vrot.slane %v4287, 5
        %v4701 = vor.u32 %v4699, %v4700
        %v4702 = vsel %vm1522, %v4698, %v4701
        %v4703 = vrot.slane %v4293, 4
        %v4704 = vrot.slane %v4296, 5
        %v4705 = vor.u32 %v4703, %v4704
        %v4706 = vsel %vm1522, %v4701, %v4705
        %v4707 = vrot.slane %v4302, 4
        %v4708 = vrot.slane %v4305, 5
        %v4709 = vor.u32 %v4707, %v4708
        %v4710 = vsel %vm1522, %v4705, %v4709
        %v4711 = vrot.slane %v4311, 4
        %v4712 = vrot.slane %v4314, 5
        %v4713 = vor.u32 %v4711, %v4712
        %v4714 = vsel %vm1522, %v4709, %v4713
        %v4715 = vrot.slane %v4320, 4
        %v4716 = vrot.slane %v4323, 5
        %v4717 = vor.u32 %v4715, %v4716
        %v4718 = vsel %vm1522, %v4713, %v4717
        %v4719 = vrot.slane %v4329, 4
        %v4720 = vrot.slane %v4332, 5
        %v4721 = vor.u32 %v4719, %v4720
        %v4722 = vsel %vm1522, %v4717, %v4721
        %v4723 = vrot.slane %v4338, 4
        %v4724 = vrot.slane %v4341, 5
        %v4725 = vor.u32 %v4723, %v4724
        %v4726 = vsel %vm1522, %v4721, %v4725
        %v4728 = vshrl.u32 %v4681, 16
        %v4730 = vrot.slane %v4728, 4
        %v4731 = vshll.u32 %v4681, 16
        %v4733 = vrot.slane %v4731, 5
        %v4734 = vor.u32 %v4730, %v4733
        %v4735 = vsel %vm1522, %v4725, %v4734
        %v4744 = vunpack.c.l.b16 %v4683
        %v4745 = vunpack.c.l.b16 %v4684
        %v4746 = vunpack.c.l.b16 %v4685
        %v4747 = vunpack.c.l.b16 %v4686
        %v4748 = vunpack.c.l.b16 %v4687
        %v4749 = vunpack.c.l.b16 %v4688
        %v4750 = vunpack.c.l.b16 %v4689
        %v4751 = vunpack.c.l.b16 %v4690
        %v4752 = vpack.c.b16 %v4745, %v4744
        %v4753 = vpack.c.b16 %v4747, %v4746
        %v4754 = vpack.c.b16 %v4749, %v4748
        %v4755 = vpack.c.b16 %v4751, %v4750
        %v4761 = vsel %vm3099, %v4702, 0
        %v4764 = vsel %vm3099, %v4706, 0
        %v4767 = vsel %vm3099, %v4710, 0
        %v4770 = vsel %vm3099, %v4714, 0
        %v4773 = vsel %vm3099, %v4718, 0
        %v4776 = vsel %vm3099, %v4722, 0
        %v4779 = vsel %vm3099, %v4726, 0
        %v4782 = vsel %vm3099, %v4735, 0
        %4784 = vmatprep.subr.bf16.mxu0 0
        %4785 = vmatpush1.bf16.msra.mxu0 %v4752
        %4786 = vmatprep.subr.bf16.mxu0 0
        %4787 = vmatpush1.bf16.msra.mxu0 %v4753
        %4788 = vmatprep.subr.bf16.mxu0 0
        %4789 = vmatpush1.bf16.msra.mxu0 %v4754
        %4790 = vmatprep.subr.bf16.mxu0 0
        %4791 = vmatpush1.bf16.msra.mxu0 %v4755
        %4792 = vmatprep.subr.bf16.mxu0 0
        %4793 = vmatpush1.bf16.msra.mxu0 0
        %4794 = vmatprep.subr.bf16.mxu0 0
        %4795 = vmatpush1.bf16.msra.mxu0 0
        %4796 = vmatprep.subr.bf16.mxu0 0
        %4797 = vmatpush1.bf16.msra.mxu0 0
        %4798 = vmatprep.subr.bf16.mxu0 0
        %4799 = vmatpush1.bf16.msra.mxu0 0
        %4800 = vmatprep.subr.bf16.mxu0 0
        %4801 = vmatpush1.bf16.msra.mxu0 0
        %4802 = vmatprep.subr.bf16.mxu0 0
        %4803 = vmatpush1.bf16.msra.mxu0 0
        %4804 = vmatprep.subr.bf16.mxu0 0
        %4805 = vmatpush1.bf16.msra.mxu0 0
        %4806 = vmatprep.subr.bf16.mxu0 0
        %4807 = vmatpush1.bf16.msra.mxu0 0
        %4808 = vmatprep.subr.bf16.mxu0 0
        %4809 = vmatpush1.bf16.msra.mxu0 0
        %4810 = vmatprep.subr.bf16.mxu0 0
        %4811 = vmatpush1.bf16.msra.mxu0 0
        %4812 = vmatprep.subr.bf16.mxu0 0
        %4813 = vmatpush1.bf16.msra.mxu0 0
        %4814 = vmatprep.subr.bf16.mxu0 0
        %4815 = vmatpush1.bf16.msra.mxu0 0
        %4816 = vmatprep.mubr.bf16.mxu0 0
        %4817 = vmatmul.mubr.bf16.gmra.mrb[0].mxu0 %v4761
        %v4818 = vpop.f32.mrb[0].mxu0
        %v4819 = vadd.f32 0.0, %v4818
        %v4820 = vpop.f32.mrb[0].mxu0
        %v4821 = vpop.f32.mrb[0].mxu0
        %v4822 = vpop.f32.mrb[0].mxu0
        %4823 = vmatprep.mubr.bf16.mxu0 0
        %4824 = vmatmul.mubr.bf16.gmra.mrb[0].mxu0 %v4764
        %v4825 = vpop.f32.mrb[0].mxu0
        %v4826 = vadd.f32 0.0, %v4825
        %v4827 = vpop.f32.mrb[0].mxu0
        %v4828 = vpop.f32.mrb[0].mxu0
        %v4829 = vpop.f32.mrb[0].mxu0
        %4830 = vmatprep.mubr.bf16.mxu0 0
        %4831 = vmatmul.mubr.bf16.gmra.mrb[0].mxu0 %v4767
        %v4832 = vpop.f32.mrb[0].mxu0
        %v4833 = vadd.f32 0.0, %v4832
        %v4834 = vpop.f32.mrb[0].mxu0
        %v4835 = vpop.f32.mrb[0].mxu0
        %v4836 = vpop.f32.mrb[0].mxu0
        %4837 = vmatprep.mubr.bf16.mxu0 0
        %4838 = vmatmul.mubr.bf16.gmra.mrb[0].mxu0 %v4770
        %v4839 = vpop.f32.mrb[0].mxu0
        %v4840 = vadd.f32 0.0, %v4839
        %v4841 = vpop.f32.mrb[0].mxu0
        %v4842 = vpop.f32.mrb[0].mxu0
        %v4843 = vpop.f32.mrb[0].mxu0
        %4844 = vmatprep.mubr.bf16.mxu0 0
        %4845 = vmatmul.mubr.bf16.gmra.mrb[0].mxu0 %v4773
        %v4846 = vpop.f32.mrb[0].mxu0
        %v4847 = vadd.f32 0.0, %v4846
        %v4848 = vpop.f32.mrb[0].mxu0
        %v4849 = vpop.f32.mrb[0].mxu0
        %v4850 = vpop.f32.mrb[0].mxu0
        %4851 = vmatprep.mubr.bf16.mxu0 0
        %4852 = vmatmul.mubr.bf16.gmra.mrb[0].mxu0 %v4776
        %v4853 = vpop.f32.mrb[0].mxu0
        %v4854 = vadd.f32 0.0, %v4853
        %v4855 = vpop.f32.mrb[0].mxu0
        %v4856 = vpop.f32.mrb[0].mxu0
        %v4857 = vpop.f32.mrb[0].mxu0
        %4858 = vmatprep.mubr.bf16.mxu0 0
        %4859 = vmatmul.mubr.bf16.gmra.mrb[0].mxu0 %v4779
        %v4860 = vpop.f32.mrb[0].mxu0
        %v4861 = vadd.f32 0.0, %v4860
        %v4862 = vpop.f32.mrb[0].mxu0
        %v4863 = vpop.f32.mrb[0].mxu0
        %v4864 = vpop.f32.mrb[0].mxu0
        %4865 = vmatprep.mubr.bf16.mxu0 0
        %4866 = vmatmul.mubr.bf16.gmra.mrb[0].mxu0 %v4782
        %v4867 = vpop.f32.mrb[0].mxu0
        %v4868 = vadd.f32 0.0, %v4867
        %v4869 = vpop.f32.mrb[0].mxu0
        %v4870 = vpop.f32.mrb[0].mxu0
        %v4871 = vpop.f32.mrb[0].mxu0
        %4872 = vdwg.mxu0
        %v4873 = vadd.f32 %v4673, %v4819
        %v4874 = vadd.f32 %v4674, %v4826
        %v4875 = vadd.f32 %v4675, %v4833
        %v4876 = vadd.f32 %v4676, %v4840
        %v4877 = vadd.f32 %v4677, %v4847
        %v4878 = vadd.f32 %v4678, %v4854
        %v4879 = vadd.f32 %v4679, %v4861
        %v4880 = vadd.f32 %v4680, %v4868
        %v4881 = vld [vmem:[#allocation3 + $0x10] sm:$0xf8]
        %v4882 = vld [vmem:[#allocation3 + $0x18] sm:$0xff]
        %v4883 = vld [vmem:[#allocation3 + $0x20] sm:$0xff]
        %v4884 = vld [vmem:[#allocation3 + $0x28] sm:$0xff]
        %v4885 = vld [vmem:[#allocation3 + $0x30] sm:$0xff]
        %v4886 = vld [vmem:[#allocation3 + $0x38] sm:$0xff]
        %v4887 = vld [vmem:[#allocation3 + $0x40] sm:$0xff]
        %v4888 = vld [vmem:[#allocation3 + $0x48] sm:$0xff]
        %v4889 = vld [vmem:[#allocation3 + $0x50] sm:$0xf]
        %s4890 = scalar_lea.vmem [#allocation12], 192
        %v4891 = vld [vmem:[%s4890] sm:$0xf]
        %v4892 = vld [vmem:[%s4890 + $0x4] sm:$0xf]
        %v4893 = vld [vmem:[%s4890 + $0x8] sm:$0xf]
        %v4894 = vld [vmem:[%s4890 + $0xc] sm:$0xf]
        %v4895 = vld [vmem:[%s4890 + $0x10] sm:$0xf]
        %v4896 = vld [vmem:[%s4890 + $0x14] sm:$0xf]
        %v4897 = vld [vmem:[%s4890 + $0x18] sm:$0xf]
        %v4898 = vld [vmem:[%s4890 + $0x1c] sm:$0xf]
        %v4900 = vshrl.u32 %v4881, 16
        %v4902 = vrot.slane %v4900, 3
        %v4903 = vshll.u32 %v4881, 16
        %v4905 = vrot.slane %v4903, 4
        %v4906 = vor.u32 %v4902, %v4905
        %v4908 = vshrl.u32 %v4882, 16
        %v4910 = vrot.slane %v4908, 3
        %v4911 = vshll.u32 %v4882, 16
        %v4913 = vrot.slane %v4911, 4
        %v4914 = vor.u32 %v4910, %v4913
        %v4915 = vsel %vm1302, %v4906, %v4914
        %v4917 = vshrl.u32 %v4883, 16
        %v4919 = vrot.slane %v4917, 3
        %v4920 = vshll.u32 %v4883, 16
        %v4922 = vrot.slane %v4920, 4
        %v4923 = vor.u32 %v4919, %v4922
        %v4924 = vsel %vm1302, %v4914, %v4923
        %v4926 = vshrl.u32 %v4884, 16
        %v4928 = vrot.slane %v4926, 3
        %v4929 = vshll.u32 %v4884, 16
        %v4931 = vrot.slane %v4929, 4
        %v4932 = vor.u32 %v4928, %v4931
        %v4933 = vsel %vm1302, %v4923, %v4932
        %v4935 = vshrl.u32 %v4885, 16
        %v4937 = vrot.slane %v4935, 3
        %v4938 = vshll.u32 %v4885, 16
        %v4940 = vrot.slane %v4938, 4
        %v4941 = vor.u32 %v4937, %v4940
        %v4942 = vsel %vm1302, %v4932, %v4941
        %v4944 = vshrl.u32 %v4886, 16
        %v4946 = vrot.slane %v4944, 3
        %v4947 = vshll.u32 %v4886, 16
        %v4949 = vrot.slane %v4947, 4
        %v4950 = vor.u32 %v4946, %v4949
        %v4951 = vsel %vm1302, %v4941, %v4950
        %v4953 = vshrl.u32 %v4887, 16
        %v4955 = vrot.slane %v4953, 3
        %v4956 = vshll.u32 %v4887, 16
        %v4958 = vrot.slane %v4956, 4
        %v4959 = vor.u32 %v4955, %v4958
        %v4960 = vsel %vm1302, %v4950, %v4959
        %v4962 = vshrl.u32 %v4888, 16
        %v4964 = vrot.slane %v4962, 3
        %v4965 = vshll.u32 %v4888, 16
        %v4967 = vrot.slane %v4965, 4
        %v4968 = vor.u32 %v4964, %v4967
        %v4969 = vsel %vm1302, %v4959, %v4968
        %v4971 = vshrl.u32 %v4889, 16
        %v4973 = vrot.slane %v4971, 3
        %v4974 = vshll.u32 %v4889, 16
        %v4976 = vrot.slane %v4974, 4
        %v4977 = vor.u32 %v4973, %v4976
        %v4978 = vsel %vm1302, %v4968, %v4977
        %v4987 = vunpack.c.l.b16 %v4891
        %v4988 = vunpack.c.l.b16 %v4892
        %v4989 = vunpack.c.l.b16 %v4893
        %v4990 = vunpack.c.l.b16 %v4894
        %v4991 = vunpack.c.l.b16 %v4895
        %v4992 = vunpack.c.l.b16 %v4896
        %v4993 = vunpack.c.l.b16 %v4897
        %v4994 = vunpack.c.l.b16 %v4898
        %v4995 = vpack.c.b16 %v4988, %v4987
        %v4996 = vpack.c.b16 %v4990, %v4989
        %v4997 = vpack.c.b16 %v4992, %v4991
        %v4998 = vpack.c.b16 %v4994, %v4993
        %v5004 = vsel %vm3099, %v4915, 0
        %v5007 = vsel %vm3099, %v4924, 0
        %v5010 = vsel %vm3099, %v4933, 0
        %v5013 = vsel %vm3099, %v4942, 0
        %v5016 = vsel %vm3099, %v4951, 0
        %v5019 = vsel %vm3099, %v4960, 0
        %v5022 = vsel %vm3099, %v4969, 0
        %v5025 = vsel %vm3099, %v4978, 0
        %5027 = vmatprep.subr.bf16.mxu0 0
        %5028 = vmatpush1.bf16.msra.mxu0 %v4995
        %5029 = vmatprep.subr.bf16.mxu0 0
        %5030 = vmatpush1.bf16.msra.mxu0 %v4996
        %5031 = vmatprep.subr.bf16.mxu0 0
        %5032 = vmatpush1.bf16.msra.mxu0 %v4997
        %5033 = vmatprep.subr.bf16.mxu0 0
        %5034 = vmatpush1.bf16.msra.mxu0 %v4998
        %5035 = vmatprep.subr.bf16.mxu0 0
        %5036 = vmatpush1.bf16.msra.mxu0 0
        %5037 = vmatprep.subr.bf16.mxu0 0
        %5038 = vmatpush1.bf16.msra.mxu0 0
        %5039 = vmatprep.subr.bf16.mxu0 0
        %5040 = vmatpush1.bf16.msra.mxu0 0
        %5041 = vmatprep.subr.bf16.mxu0 0
        %5042 = vmatpush1.bf16.msra.mxu0 0
        %5043 = vmatprep.subr.bf16.mxu0 0
        %5044 = vmatpush1.bf16.msra.mxu0 0
        %5045 = vmatprep.subr.bf16.mxu0 0
        %5046 = vmatpush1.bf16.msra.mxu0 0
        %5047 = vmatprep.subr.bf16.mxu0 0
        %5048 = vmatpush1.bf16.msra.mxu0 0
        %5049 = vmatprep.subr.bf16.mxu0 0
        %5050 = vmatpush1.bf16.msra.mxu0 0
        %5051 = vmatprep.subr.bf16.mxu0 0
        %5052 = vmatpush1.bf16.msra.mxu0 0
        %5053 = vmatprep.subr.bf16.mxu0 0
        %5054 = vmatpush1.bf16.msra.mxu0 0
        %5055 = vmatprep.subr.bf16.mxu0 0
        %5056 = vmatpush1.bf16.msra.mxu0 0
        %5057 = vmatprep.subr.bf16.mxu0 0
        %5058 = vmatpush1.bf16.msra.mxu0 0
        %5059 = vmatprep.mubr.bf16.mxu0 0
        %5060 = vmatmul.mubr.bf16.gmra.mrb[0].mxu0 %v5004
        %v5061 = vpop.f32.mrb[0].mxu0
        %v5062 = vadd.f32 0.0, %v5061
        %v5063 = vpop.f32.mrb[0].mxu0
        %v5064 = vpop.f32.mrb[0].mxu0
        %v5065 = vpop.f32.mrb[0].mxu0
        %5066 = vmatprep.mubr.bf16.mxu0 0
        %5067 = vmatmul.mubr.bf16.gmra.mrb[0].mxu0 %v5007
        %v5068 = vpop.f32.mrb[0].mxu0
        %v5069 = vadd.f32 0.0, %v5068
        %v5070 = vpop.f32.mrb[0].mxu0
        %v5071 = vpop.f32.mrb[0].mxu0
        %v5072 = vpop.f32.mrb[0].mxu0
        %5073 = vmatprep.mubr.bf16.mxu0 0
        %5074 = vmatmul.mubr.bf16.gmra.mrb[0].mxu0 %v5010
        %v5075 = vpop.f32.mrb[0].mxu0
        %v5076 = vadd.f32 0.0, %v5075
        %v5077 = vpop.f32.mrb[0].mxu0
        %v5078 = vpop.f32.mrb[0].mxu0
        %v5079 = vpop.f32.mrb[0].mxu0
        %5080 = vmatprep.mubr.bf16.mxu0 0
        %5081 = vmatmul.mubr.bf16.gmra.mrb[0].mxu0 %v5013
        %v5082 = vpop.f32.mrb[0].mxu0
        %v5083 = vadd.f32 0.0, %v5082
        %v5084 = vpop.f32.mrb[0].mxu0
        %v5085 = vpop.f32.mrb[0].mxu0
        %v5086 = vpop.f32.mrb[0].mxu0
        %5087 = vmatprep.mubr.bf16.mxu0 0
        %5088 = vmatmul.mubr.bf16.gmra.mrb[0].mxu0 %v5016
        %v5089 = vpop.f32.mrb[0].mxu0
        %v5090 = vadd.f32 0.0, %v5089
        %v5091 = vpop.f32.mrb[0].mxu0
        %v5092 = vpop.f32.mrb[0].mxu0
        %v5093 = vpop.f32.mrb[0].mxu0
        %5094 = vmatprep.mubr.bf16.mxu0 0
        %5095 = vmatmul.mubr.bf16.gmra.mrb[0].mxu0 %v5019
        %v5096 = vpop.f32.mrb[0].mxu0
        %v5097 = vadd.f32 0.0, %v5096
        %v5098 = vpop.f32.mrb[0].mxu0
        %v5099 = vpop.f32.mrb[0].mxu0
        %v5100 = vpop.f32.mrb[0].mxu0
        %5101 = vmatprep.mubr.bf16.mxu0 0
        %5102 = vmatmul.mubr.bf16.gmra.mrb[0].mxu0 %v5022
        %v5103 = vpop.f32.mrb[0].mxu0
        %v5104 = vadd.f32 0.0, %v5103
        %v5105 = vpop.f32.mrb[0].mxu0
        %v5106 = vpop.f32.mrb[0].mxu0
        %v5107 = vpop.f32.mrb[0].mxu0
        %5108 = vmatprep.mubr.bf16.mxu0 0
        %5109 = vmatmul.mubr.bf16.gmra.mrb[0].mxu0 %v5025
        %v5110 = vpop.f32.mrb[0].mxu0
        %v5111 = vadd.f32 0.0, %v5110
        %v5112 = vpop.f32.mrb[0].mxu0
        %v5113 = vpop.f32.mrb[0].mxu0
        %v5114 = vpop.f32.mrb[0].mxu0
        %5115 = vdwg.mxu0
        %v5116 = vadd.f32 %v4873, %v5062
        %v5117 = vadd.f32 %v4874, %v5069
        %v5118 = vadd.f32 %v4875, %v5076
        %v5119 = vadd.f32 %v4876, %v5083
        %v5120 = vadd.f32 %v4877, %v5090
        %v5121 = vadd.f32 %v4878, %v5097
        %v5122 = vadd.f32 %v4879, %v5104
        %v5123 = vadd.f32 %v4880, %v5111
        %v5124 = vld [vmem:[#allocation3 + $0x10] sm:$0xf0]
        %s5125 = scalar_lea.vmem [#allocation12], 224
        %v5126 = vld [vmem:[%s5125] sm:$0xf]
        %v5127 = vld [vmem:[%s5125 + $0x4] sm:$0xf]
        %v5128 = vld [vmem:[%s5125 + $0x8] sm:$0xf]
        %v5129 = vld [vmem:[%s5125 + $0xc] sm:$0xf]
        %v5130 = vld [vmem:[%s5125 + $0x10] sm:$0xf]
        %v5131 = vld [vmem:[%s5125 + $0x14] sm:$0xf]
        %v5132 = vld [vmem:[%s5125 + $0x18] sm:$0xf]
        %v5133 = vld [vmem:[%s5125 + $0x1c] sm:$0xf]
        %v5143 = vrot.slane %v5124, 4
        %v5144 = vrot.slane %v4882, 4
        %v5145 = vsel %vm1089, %v5143, %v5144
        %v5146 = vrot.slane %v4883, 4
        %v5147 = vsel %vm1089, %v5144, %v5146
        %v5148 = vrot.slane %v4884, 4
        %v5149 = vsel %vm1089, %v5146, %v5148
        %v5150 = vrot.slane %v4885, 4
        %v5151 = vsel %vm1089, %v5148, %v5150
        %v5152 = vrot.slane %v4886, 4
        %v5153 = vsel %vm1089, %v5150, %v5152
        %v5154 = vrot.slane %v4887, 4
        %v5155 = vsel %vm1089, %v5152, %v5154
        %v5156 = vrot.slane %v4888, 4
        %v5157 = vsel %vm1089, %v5154, %v5156
        %v5158 = vrot.slane %v4889, 4
        %v5159 = vsel %vm1089, %v5156, %v5158
        %v5168 = vunpack.c.l.b16 %v5126
        %v5169 = vunpack.c.l.b16 %v5127
        %v5170 = vunpack.c.l.b16 %v5128
        %v5171 = vunpack.c.l.b16 %v5129
        %v5172 = vunpack.c.l.b16 %v5130
        %v5173 = vunpack.c.l.b16 %v5131
        %v5174 = vunpack.c.l.b16 %v5132
        %v5175 = vunpack.c.l.b16 %v5133
        %v5176 = vpack.c.b16 %v5169, %v5168
        %v5177 = vpack.c.b16 %v5171, %v5170
        %v5178 = vpack.c.b16 %v5173, %v5172
        %v5179 = vpack.c.b16 %v5175, %v5174
        %v5185 = vsel %vm3099, %v5145, 0
        %v5188 = vsel %vm3099, %v5147, 0
        %v5191 = vsel %vm3099, %v5149, 0
        %v5194 = vsel %vm3099, %v5151, 0
        %v5197 = vsel %vm3099, %v5153, 0
        %v5200 = vsel %vm3099, %v5155, 0
        %v5203 = vsel %vm3099, %v5157, 0
        %v5206 = vsel %vm3099, %v5159, 0
        %5208 = vmatprep.subr.bf16.mxu0 0
        %5209 = vmatpush1.bf16.msra.mxu0 %v5176
        %5210 = vmatprep.subr.bf16.mxu0 0
        %5211 = vmatpush1.bf16.msra.mxu0 %v5177
        %5212 = vmatprep.subr.bf16.mxu0 0
        %5213 = vmatpush1.bf16.msra.mxu0 %v5178
        %5214 = vmatprep.subr.bf16.mxu0 0
        %5215 = vmatpush1.bf16.msra.mxu0 %v5179
        %5216 = vmatprep.subr.bf16.mxu0 0
        %5217 = vmatpush1.bf16.msra.mxu0 0
        %5218 = vmatprep.subr.bf16.mxu0 0
        %5219 = vmatpush1.bf16.msra.mxu0 0
        %5220 = vmatprep.subr.bf16.mxu0 0
        %5221 = vmatpush1.bf16.msra.mxu0 0
        %5222 = vmatprep.subr.bf16.mxu0 0
        %5223 = vmatpush1.bf16.msra.mxu0 0
        %5224 = vmatprep.subr.bf16.mxu0 0
        %5225 = vmatpush1.bf16.msra.mxu0 0
        %5226 = vmatprep.subr.bf16.mxu0 0
        %5227 = vmatpush1.bf16.msra.mxu0 0
        %5228 = vmatprep.subr.bf16.mxu0 0
        %5229 = vmatpush1.bf16.msra.mxu0 0
        %5230 = vmatprep.subr.bf16.mxu0 0
        %5231 = vmatpush1.bf16.msra.mxu0 0
        %5232 = vmatprep.subr.bf16.mxu0 0
        %5233 = vmatpush1.bf16.msra.mxu0 0
        %5234 = vmatprep.subr.bf16.mxu0 0
        %5235 = vmatpush1.bf16.msra.mxu0 0
        %5236 = vmatprep.subr.bf16.mxu0 0
        %5237 = vmatpush1.bf16.msra.mxu0 0
        %5238 = vmatprep.subr.bf16.mxu0 0
        %5239 = vmatpush1.bf16.msra.mxu0 0
        %5240 = vmatprep.mubr.bf16.mxu0 0
        %5241 = vmatmul.mubr.bf16.gmra.mrb[0].mxu0 %v5185
        %v5242 = vpop.f32.mrb[0].mxu0
        %v5243 = vadd.f32 0.0, %v5242
        %v5244 = vpop.f32.mrb[0].mxu0
        %v5245 = vpop.f32.mrb[0].mxu0
        %v5246 = vpop.f32.mrb[0].mxu0
        %5247 = vmatprep.mubr.bf16.mxu0 0
        %5248 = vmatmul.mubr.bf16.gmra.mrb[0].mxu0 %v5188
        %v5249 = vpop.f32.mrb[0].mxu0
        %v5250 = vadd.f32 0.0, %v5249
        %v5251 = vpop.f32.mrb[0].mxu0
        %v5252 = vpop.f32.mrb[0].mxu0
        %v5253 = vpop.f32.mrb[0].mxu0
        %5254 = vmatprep.mubr.bf16.mxu0 0
        %5255 = vmatmul.mubr.bf16.gmra.mrb[0].mxu0 %v5191
        %v5256 = vpop.f32.mrb[0].mxu0
        %v5257 = vadd.f32 0.0, %v5256
        %v5258 = vpop.f32.mrb[0].mxu0
        %v5259 = vpop.f32.mrb[0].mxu0
        %v5260 = vpop.f32.mrb[0].mxu0
        %5261 = vmatprep.mubr.bf16.mxu0 0
        %5262 = vmatmul.mubr.bf16.gmra.mrb[0].mxu0 %v5194
        %v5263 = vpop.f32.mrb[0].mxu0
        %v5264 = vadd.f32 0.0, %v5263
        %v5265 = vpop.f32.mrb[0].mxu0
        %v5266 = vpop.f32.mrb[0].mxu0
        %v5267 = vpop.f32.mrb[0].mxu0
        %5268 = vmatprep.mubr.bf16.mxu0 0
        %5269 = vmatmul.mubr.bf16.gmra.mrb[0].mxu0 %v5197
        %v5270 = vpop.f32.mrb[0].mxu0
        %v5271 = vadd.f32 0.0, %v5270
        %v5272 = vpop.f32.mrb[0].mxu0
        %v5273 = vpop.f32.mrb[0].mxu0
        %v5274 = vpop.f32.mrb[0].mxu0
        %5275 = vmatprep.mubr.bf16.mxu0 0
        %5276 = vmatmul.mubr.bf16.gmra.mrb[0].mxu0 %v5200
        %v5277 = vpop.f32.mrb[0].mxu0
        %v5278 = vadd.f32 0.0, %v5277
        %v5279 = vpop.f32.mrb[0].mxu0
        %v5280 = vpop.f32.mrb[0].mxu0
        %v5281 = vpop.f32.mrb[0].mxu0
        %5282 = vmatprep.mubr.bf16.mxu0 0
        %5283 = vmatmul.mubr.bf16.gmra.mrb[0].mxu0 %v5203
        %v5284 = vpop.f32.mrb[0].mxu0
        %v5285 = vadd.f32 0.0, %v5284
        %v5286 = vpop.f32.mrb[0].mxu0
        %v5287 = vpop.f32.mrb[0].mxu0
        %v5288 = vpop.f32.mrb[0].mxu0
        %5289 = vmatprep.mubr.bf16.mxu0 0
        %5290 = vmatmul.mubr.bf16.gmra.mrb[0].mxu0 %v5206
        %v5291 = vpop.f32.mrb[0].mxu0
        %v5292 = vadd.f32 0.0, %v5291
        %v5293 = vpop.f32.mrb[0].mxu0
        %v5294 = vpop.f32.mrb[0].mxu0
        %v5295 = vpop.f32.mrb[0].mxu0
        %5296 = vdwg.mxu0
        %v5297 = vadd.f32 %v5116, %v5243
        %v5298 = vadd.f32 %v5117, %v5250
        %v5299 = vadd.f32 %v5118, %v5257
        %v5300 = vadd.f32 %v5119, %v5264
        %v5301 = vadd.f32 %v5120, %v5271
        %v5302 = vadd.f32 %v5121, %v5278
        %v5303 = vadd.f32 %v5122, %v5285
        %v5304 = vadd.f32 %v5123, %v5292
        %v5305 = vld [vmem:[#allocation3 + $0x50] sm:$0x1f]
        %s5306 = scalar_lea.vmem [#allocation12], 256
        %v5307 = vld [vmem:[%s5306] sm:$0xf]
        %v5308 = vld [vmem:[%s5306 + $0x4] sm:$0xf]
        %v5309 = vld [vmem:[%s5306 + $0x8] sm:$0xf]
        %v5310 = vld [vmem:[%s5306 + $0xc] sm:$0xf]
        %v5311 = vld [vmem:[%s5306 + $0x10] sm:$0xf]
        %v5312 = vld [vmem:[%s5306 + $0x14] sm:$0xf]
        %v5313 = vld [vmem:[%s5306 + $0x18] sm:$0xf]
        %v5314 = vld [vmem:[%s5306 + $0x1c] sm:$0xf]
        %v5316 = vshrl.u32 %v5124, 16
        %v5318 = vrot.slane %v5316, 4
        %v5319 = vshll.u32 %v5124, 16
        %v5321 = vrot.slane %v5319, 5
        %v5322 = vor.u32 %v5318, %v5321
        %v5323 = vrot.slane %v4908, 4
        %v5324 = vrot.slane %v4911, 5
        %v5325 = vor.u32 %v5323, %v5324
        %v5326 = vsel %vm1522, %v5322, %v5325
        %v5327 = vrot.slane %v4917, 4
        %v5328 = vrot.slane %v4920, 5
        %v5329 = vor.u32 %v5327, %v5328
        %v5330 = vsel %vm1522, %v5325, %v5329
        %v5331 = vrot.slane %v4926, 4
        %v5332 = vrot.slane %v4929, 5
        %v5333 = vor.u32 %v5331, %v5332
        %v5334 = vsel %vm1522, %v5329, %v5333
        %v5335 = vrot.slane %v4935, 4
        %v5336 = vrot.slane %v4938, 5
        %v5337 = vor.u32 %v5335, %v5336
        %v5338 = vsel %vm1522, %v5333, %v5337
        %v5339 = vrot.slane %v4944, 4
        %v5340 = vrot.slane %v4947, 5
        %v5341 = vor.u32 %v5339, %v5340
        %v5342 = vsel %vm1522, %v5337, %v5341
        %v5343 = vrot.slane %v4953, 4
        %v5344 = vrot.slane %v4956, 5
        %v5345 = vor.u32 %v5343, %v5344
        %v5346 = vsel %vm1522, %v5341, %v5345
        %v5347 = vrot.slane %v4962, 4
        %v5348 = vrot.slane %v4965, 5
        %v5349 = vor.u32 %v5347, %v5348
        %v5350 = vsel %vm1522, %v5345, %v5349
        %v5352 = vshrl.u32 %v5305, 16
        %v5354 = vrot.slane %v5352, 4
        %v5355 = vshll.u32 %v5305, 16
        %v5357 = vrot.slane %v5355, 5
        %v5358 = vor.u32 %v5354, %v5357
        %v5359 = vsel %vm1522, %v5349, %v5358
        %v5368 = vunpack.c.l.b16 %v5307
        %v5369 = vunpack.c.l.b16 %v5308
        %v5370 = vunpack.c.l.b16 %v5309
        %v5371 = vunpack.c.l.b16 %v5310
        %v5372 = vunpack.c.l.b16 %v5311
        %v5373 = vunpack.c.l.b16 %v5312
        %v5374 = vunpack.c.l.b16 %v5313
        %v5375 = vunpack.c.l.b16 %v5314
        %v5376 = vpack.c.b16 %v5369, %v5368
        %v5377 = vpack.c.b16 %v5371, %v5370
        %v5378 = vpack.c.b16 %v5373, %v5372
        %v5379 = vpack.c.b16 %v5375, %v5374
        %v5385 = vsel %vm3099, %v5326, 0
        %v5388 = vsel %vm3099, %v5330, 0
        %v5391 = vsel %vm3099, %v5334, 0
        %v5394 = vsel %vm3099, %v5338, 0
        %v5397 = vsel %vm3099, %v5342, 0
        %v5400 = vsel %vm3099, %v5346, 0
        %v5403 = vsel %vm3099, %v5350, 0
        %v5406 = vsel %vm3099, %v5359, 0
        %5408 = vmatprep.subr.bf16.mxu0 0
        %5409 = vmatpush1.bf16.msra.mxu0 %v5376
        %5410 = vmatprep.subr.bf16.mxu0 0
        %5411 = vmatpush1.bf16.msra.mxu0 %v5377
        %5412 = vmatprep.subr.bf16.mxu0 0
        %5413 = vmatpush1.bf16.msra.mxu0 %v5378
        %5414 = vmatprep.subr.bf16.mxu0 0
        %5415 = vmatpush1.bf16.msra.mxu0 %v5379
        %5416 = vmatprep.subr.bf16.mxu0 0
        %5417 = vmatpush1.bf16.msra.mxu0 0
        %5418 = vmatprep.subr.bf16.mxu0 0
        %5419 = vmatpush1.bf16.msra.mxu0 0
        %5420 = vmatprep.subr.bf16.mxu0 0
        %5421 = vmatpush1.bf16.msra.mxu0 0
        %5422 = vmatprep.subr.bf16.mxu0 0
        %5423 = vmatpush1.bf16.msra.mxu0 0
        %5424 = vmatprep.subr.bf16.mxu0 0
        %5425 = vmatpush1.bf16.msra.mxu0 0
        %5426 = vmatprep.subr.bf16.mxu0 0
        %5427 = vmatpush1.bf16.msra.mxu0 0
        %5428 = vmatprep.subr.bf16.mxu0 0
        %5429 = vmatpush1.bf16.msra.mxu0 0
        %5430 = vmatprep.subr.bf16.mxu0 0
        %5431 = vmatpush1.bf16.msra.mxu0 0
        %5432 = vmatprep.subr.bf16.mxu0 0
        %5433 = vmatpush1.bf16.msra.mxu0 0
        %5434 = vmatprep.subr.bf16.mxu0 0
        %5435 = vmatpush1.bf16.msra.mxu0 0
        %5436 = vmatprep.subr.bf16.mxu0 0
        %5437 = vmatpush1.bf16.msra.mxu0 0
        %5438 = vmatprep.subr.bf16.mxu0 0
        %5439 = vmatpush1.bf16.msra.mxu0 0
        %5440 = vmatprep.mubr.bf16.mxu0 0
        %5441 = vmatmul.mubr.bf16.gmra.mrb[0].mxu0 %v5385
        %v5442 = vpop.f32.mrb[0].mxu0
        %v5443 = vadd.f32 0.0, %v5442
        %v5444 = vpop.f32.mrb[0].mxu0
        %v5445 = vpop.f32.mrb[0].mxu0
        %v5446 = vpop.f32.mrb[0].mxu0
        %5447 = vmatprep.mubr.bf16.mxu0 0
        %5448 = vmatmul.mubr.bf16.gmra.mrb[0].mxu0 %v5388
        %v5449 = vpop.f32.mrb[0].mxu0
        %v5450 = vadd.f32 0.0, %v5449
        %v5451 = vpop.f32.mrb[0].mxu0
        %v5452 = vpop.f32.mrb[0].mxu0
        %v5453 = vpop.f32.mrb[0].mxu0
        %5454 = vmatprep.mubr.bf16.mxu0 0
        %5455 = vmatmul.mubr.bf16.gmra.mrb[0].mxu0 %v5391
        %v5456 = vpop.f32.mrb[0].mxu0
        %v5457 = vadd.f32 0.0, %v5456
        %v5458 = vpop.f32.mrb[0].mxu0
        %v5459 = vpop.f32.mrb[0].mxu0
        %v5460 = vpop.f32.mrb[0].mxu0
        %5461 = vmatprep.mubr.bf16.mxu0 0
        %5462 = vmatmul.mubr.bf16.gmra.mrb[0].mxu0 %v5394
        %v5463 = vpop.f32.mrb[0].mxu0
        %v5464 = vadd.f32 0.0, %v5463
        %v5465 = vpop.f32.mrb[0].mxu0
        %v5466 = vpop.f32.mrb[0].mxu0
        %v5467 = vpop.f32.mrb[0].mxu0
        %5468 = vmatprep.mubr.bf16.mxu0 0
        %5469 = vmatmul.mubr.bf16.gmra.mrb[0].mxu0 %v5397
        %v5470 = vpop.f32.mrb[0].mxu0
        %v5471 = vadd.f32 0.0, %v5470
        %v5472 = vpop.f32.mrb[0].mxu0
        %v5473 = vpop.f32.mrb[0].mxu0
        %v5474 = vpop.f32.mrb[0].mxu0
        %5475 = vmatprep.mubr.bf16.mxu0 0
        %5476 = vmatmul.mubr.bf16.gmra.mrb[0].mxu0 %v5400
        %v5477 = vpop.f32.mrb[0].mxu0
        %v5478 = vadd.f32 0.0, %v5477
        %v5479 = vpop.f32.mrb[0].mxu0
        %v5480 = vpop.f32.mrb[0].mxu0
        %v5481 = vpop.f32.mrb[0].mxu0
        %5482 = vmatprep.mubr.bf16.mxu0 0
        %5483 = vmatmul.mubr.bf16.gmra.mrb[0].mxu0 %v5403
        %v5484 = vpop.f32.mrb[0].mxu0
        %v5485 = vadd.f32 0.0, %v5484
        %v5486 = vpop.f32.mrb[0].mxu0
        %v5487 = vpop.f32.mrb[0].mxu0
        %v5488 = vpop.f32.mrb[0].mxu0
        %5489 = vmatprep.mubr.bf16.mxu0 0
        %5490 = vmatmul.mubr.bf16.gmra.mrb[0].mxu0 %v5406
        %v5491 = vpop.f32.mrb[0].mxu0
        %v5492 = vadd.f32 0.0, %v5491
        %v5493 = vpop.f32.mrb[0].mxu0
        %v5494 = vpop.f32.mrb[0].mxu0
        %v5495 = vpop.f32.mrb[0].mxu0
        %5496 = vdwg.mxu0
        %v5497 = vadd.f32 %v5297, %v5443
        %v5498 = vadd.f32 %v5298, %v5450
        %v5499 = vadd.f32 %v5299, %v5457
        %v5500 = vadd.f32 %v5300, %v5464
        %v5501 = vadd.f32 %v5301, %v5471
        %v5502 = vadd.f32 %v5302, %v5478
        %v5503 = vadd.f32 %v5303, %v5485
        %v5504 = vadd.f32 %v5304, %v5492
        %v5506 = vlaneseq
        %v5507 = vshrl.u32 %v5506, 7
        %v5508 = vsub.s32 0, %v5507
        %v5509 = vrot.slane %v3649, %v5508
        %v5511 = vadd.f32 %v5497, %v5509
        %v5512 = vadd.f32 %v5498, %v5509
        %v5513 = vadd.f32 %v5499, %v5509
        %v5514 = vadd.f32 %v5500, %v5509
        %v5515 = vadd.f32 %v5501, %v5509
        %v5516 = vadd.f32 %v5502, %v5509
        %v5517 = vadd.f32 %v5503, %v5509
        %v5518 = vadd.f32 %v5504, %v5509
        %v5519 = vld [vmem:[%s536] sm:$0xff]
        %v5520 = vld [vmem:[%s536 + $0x8] sm:$0xff]
        %v5521 = vld [vmem:[%s536 + $0x10] sm:$0xff]
        %v5522 = vld [vmem:[%s536 + $0x18] sm:$0xff]
        %v5523 = vld [vmem:[%s536 + $0x20] sm:$0xff]
        %v5524 = vld [vmem:[%s536 + $0x28] sm:$0xff]
        %v5525 = vld [vmem:[%s536 + $0x30] sm:$0xff]
        %v5526 = vld [vmem:[%s536 + $0x38] sm:$0xff]
        %v5527 = vld [vmem:[%s14] sm:$0xff]
        %v5528 = vld [vmem:[%s14 + $0x8] sm:$0xff]
        %v5529 = vld [vmem:[%s14 + $0x10] sm:$0xff]
        %v5530 = vld [vmem:[%s14 + $0x18] sm:$0xff]
        %v5531 = vld [vmem:[%s15] sm:$0x1]
        %v5533 = vlaneseq
        %v5534 = vshrl.u32 %v5533, 7
        %v5535 = vsub.s32 0, %v5534
        %v5536 = vrot.slane %v5531, %v5535
        %v5539 = vsel %vm614, %v5519, 0
        %v5542 = vsel %vm614, 0.0, 0
        %v5545 = vsel %vm614, %v5520, 0
        %v5548 = vsel %vm614, %v5521, 0
        %v5551 = vsel %vm614, %v5522, 0
        %v5554 = vsel %vm614, %v5523, 0
        %v5557 = vsel %vm614, %v5524, 0
        %v5560 = vsel %vm614, %v5525, 0
        %v5563 = vsel %vm614, %v5526, 0
        %5565 = vmatprep.subr.mxu0 0.0
        %5566 = vmatpush1.msra.mxu0 %v5527
        %5567 = vmatprep.subr.mxu0 0.0
        %5568 = vmatpush1.msra.mxu0 %v5528
        %5569 = vmatprep.subr.mxu0 0.0
        %5570 = vmatpush1.msra.mxu0 %v5529
        %5571 = vmatprep.subr.mxu0 0.0
        %5572 = vmatpush1.msra.mxu0 %v5530
        %5573 = vmatprep.subr.mxu0 0.0
        %5574 = vmatpush1.msra.mxu0 0.0
        %5575 = vmatprep.subr.mxu0 0.0
        %5576 = vmatpush1.msra.mxu0 0.0
        %5577 = vmatprep.subr.mxu0 0.0
        %5578 = vmatpush1.msra.mxu0 0.0
        %5579 = vmatprep.subr.mxu0 0.0
        %5580 = vmatpush1.msra.mxu0 0.0
        %5581 = vmatprep.subr.mxu0 0.0
        %5582 = vmatpush1.msra.mxu0 0.0
        %5583 = vmatprep.subr.mxu0 0.0
        %5584 = vmatpush1.msra.mxu0 0.0
        %5585 = vmatprep.subr.mxu0 0.0
        %5586 = vmatpush1.msra.mxu0 0.0
        %5587 = vmatprep.subr.mxu0 0.0
        %5588 = vmatpush1.msra.mxu0 0.0
        %5589 = vmatprep.subr.mxu0 0.0
        %5590 = vmatpush1.msra.mxu0 0.0
        %5591 = vmatprep.subr.mxu0 0.0
        %5592 = vmatpush1.msra.mxu0 0.0
        %5593 = vmatprep.subr.mxu0 0.0
        %5594 = vmatpush1.msra.mxu0 0.0
        %5595 = vmatprep.subr.mxu0 0.0
        %5596 = vmatpush1.msra.mxu0 0.0
        %5597 = vmatprep.subr.mxu0 0.0
        %5598 = vmatpush1.msra.mxu0 0.0
        %5599 = vmatprep.subr.mxu0 0.0
        %5600 = vmatpush1.msra.mxu0 0.0
        %5601 = vmatprep.subr.mxu0 0.0
        %5602 = vmatpush1.msra.mxu0 0.0
        %5603 = vmatprep.subr.mxu0 0.0
        %5604 = vmatpush1.msra.mxu0 0.0
        %5605 = vmatprep.subr.mxu0 0.0
        %5606 = vmatpush1.msra.mxu0 0.0
        %5607 = vmatprep.subr.mxu0 0.0
        %5608 = vmatpush1.msra.mxu0 0.0
        %5609 = vmatprep.subr.mxu0 0.0
        %5610 = vmatpush1.msra.mxu0 0.0
        %5611 = vmatprep.subr.mxu0 0.0
        %5612 = vmatpush1.msra.mxu0 0.0
        %5613 = vmatprep.subr.mxu0 0.0
        %5614 = vmatpush1.msra.mxu0 0.0
        %5615 = vmatprep.subr.mxu0 0.0
        %5616 = vmatpush1.msra.mxu0 0.0
        %5617 = vmatprep.subr.mxu0 0.0
        %5618 = vmatpush1.msra.mxu0 0.0
        %5619 = vmatprep.subr.mxu0 0.0
        %5620 = vmatpush1.msra.mxu0 0.0
        %5621 = vmatprep.subr.mxu0 0.0
        %5622 = vmatpush1.msra.mxu0 0.0
        %5623 = vmatprep.subr.mxu0 0.0
        %5624 = vmatpush1.msra.mxu0 0.0
        %5625 = vmatprep.subr.mxu0 0.0
        %5626 = vmatpush1.msra.mxu0 0.0
        %5627 = vmatprep.subr.mxu0 0.0
        %5628 = vmatpush1.msra.mxu0 0.0
        %5629 = vmatprep.mubr.f32.mxu0 0.0
        %5630 = vmatmul.mubr.f32.gmra.mrb[0].mxu0 %v5539
        %v5631 = vpop.f32.mrb[0].mxu0
        %v5632 = vadd.f32 %v5536, %v5631
        %v5633 = vpop.f32.mrb[0].mxu0
        %5634 = vmatprep.mubr.f32.mxu0 0.0
        %5635 = vmatmul.mubr.f32.gmra.mrb[0].mxu0 %v5542
        %v5636 = vpop.f32.mrb[0].mxu0
        %v5637 = vpop.f32.mrb[0].mxu0
        %5638 = vmatprep.mubr.f32.mxu0 0.0
        %5639 = vmatmul.mubr.f32.gmra.mrb[0].mxu0 %v5545
        %v5640 = vpop.f32.mrb[0].mxu0
        %v5641 = vadd.f32 %v5536, %v5640
        %v5642 = vpop.f32.mrb[0].mxu0
        %5643 = vmatprep.mubr.f32.mxu0 0.0
        %5644 = vmatmul.mubr.f32.gmra.mrb[0].mxu0 %v5542
        %v5645 = vpop.f32.mrb[0].mxu0
        %v5646 = vpop.f32.mrb[0].mxu0
        %5647 = vmatprep.mubr.f32.mxu0 0.0
        %5648 = vmatmul.mubr.f32.gmra.mrb[0].mxu0 %v5548
        %v5649 = vpop.f32.mrb[0].mxu0
        %v5650 = vadd.f32 %v5536, %v5649
        %v5651 = vpop.f32.mrb[0].mxu0
        %5652 = vmatprep.mubr.f32.mxu0 0.0
        %5653 = vmatmul.mubr.f32.gmra.mrb[0].mxu0 %v5542
        %v5654 = vpop.f32.mrb[0].mxu0
        %v5655 = vpop.f32.mrb[0].mxu0
        %5656 = vmatprep.mubr.f32.mxu0 0.0
        %5657 = vmatmul.mubr.f32.gmra.mrb[0].mxu0 %v5551
        %v5658 = vpop.f32.mrb[0].mxu0
        %v5659 = vadd.f32 %v5536, %v5658
        %v5660 = vpop.f32.mrb[0].mxu0
        %5661 = vmatprep.mubr.f32.mxu0 0.0
        %5662 = vmatmul.mubr.f32.gmra.mrb[0].mxu0 %v5542
        %v5663 = vpop.f32.mrb[0].mxu0
        %v5664 = vpop.f32.mrb[0].mxu0
        %5665 = vmatprep.mubr.f32.mxu0 0.0
        %5666 = vmatmul.mubr.f32.gmra.mrb[0].mxu0 %v5554
        %v5667 = vpop.f32.mrb[0].mxu0
        %v5668 = vadd.f32 %v5536, %v5667
        %v5669 = vpop.f32.mrb[0].mxu0
        %5670 = vmatprep.mubr.f32.mxu0 0.0
        %5671 = vmatmul.mubr.f32.gmra.mrb[0].mxu0 %v5542
        %v5672 = vpop.f32.mrb[0].mxu0
        %v5673 = vpop.f32.mrb[0].mxu0
        %5674 = vmatprep.mubr.f32.mxu0 0.0
        %5675 = vmatmul.mubr.f32.gmra.mrb[0].mxu0 %v5557
        %v5676 = vpop.f32.mrb[0].mxu0
        %v5677 = vadd.f32 %v5536, %v5676
        %v5678 = vpop.f32.mrb[0].mxu0
        %5679 = vmatprep.mubr.f32.mxu0 0.0
        %5680 = vmatmul.mubr.f32.gmra.mrb[0].mxu0 %v5542
        %v5681 = vpop.f32.mrb[0].mxu0
        %v5682 = vpop.f32.mrb[0].mxu0
        %5683 = vmatprep.mubr.f32.mxu0 0.0
        %5684 = vmatmul.mubr.f32.gmra.mrb[0].mxu0 %v5560
        %v5685 = vpop.f32.mrb[0].mxu0
        %v5686 = vadd.f32 %v5536, %v5685
        %v5687 = vpop.f32.mrb[0].mxu0
        %5688 = vmatprep.mubr.f32.mxu0 0.0
        %5689 = vmatmul.mubr.f32.gmra.mrb[0].mxu0 %v5542
        %v5690 = vpop.f32.mrb[0].mxu0
        %v5691 = vpop.f32.mrb[0].mxu0
        %5692 = vmatprep.mubr.f32.mxu0 0.0
        %5693 = vmatmul.mubr.f32.gmra.mrb[0].mxu0 %v5563
        %v5694 = vpop.f32.mrb[0].mxu0
        %v5695 = vadd.f32 %v5536, %v5694
        %v5696 = vpop.f32.mrb[0].mxu0
        %5697 = vmatprep.mubr.f32.mxu0 0.0
        %5698 = vmatmul.mubr.f32.gmra.mrb[0].mxu0 %v5542
        %v5699 = vpop.f32.mrb[0].mxu0
        %v5700 = vpop.f32.mrb[0].mxu0
        %5701 = vdwg.mxu0
        %v5702 = vadd.f32 %v5511, %v5632
        %v5703 = vadd.f32 %v5512, %v5641
        %v5704 = vadd.f32 %v5513, %v5650
        %v5705 = vadd.f32 %v5514, %v5659
        %v5706 = vadd.f32 %v5515, %v5668
        %v5707 = vadd.f32 %v5516, %v5677
        %v5708 = vadd.f32 %v5517, %v5686
        %v5709 = vadd.f32 %v5518, %v5695
        %5710 = vst.msk [vmem:[%s604] sm:$0xff] %vm3099, %v5702
        %5711 = vst.msk [vmem:[%s604 + $0x8] sm:$0xff] %vm3099, %v5703
        %5712 = vst.msk [vmem:[%s604 + $0x10] sm:$0xff] %vm3099, %v5704
        %5713 = vst.msk [vmem:[%s604 + $0x18] sm:$0xff] %vm3099, %v5705
        %5714 = vst.msk [vmem:[%s604 + $0x20] sm:$0xff] %vm3099, %v5706
        %5715 = vst.msk [vmem:[%s604 + $0x28] sm:$0xff] %vm3099, %v5707
        %5716 = vst.msk [vmem:[%s604 + $0x30] sm:$0xff] %vm3099, %v5708
        %5717 = vst.msk [vmem:[%s604 + $0x38] sm:$0xff] %vm3099, %v5709
        %s5718 = sand.u32 %s385, 1
        %s5719 = scalar_lea.sflag [#allocation6], %s5718
        %s5720 = sand.u32 %s385, 1
        %s5721 = smul.addr %s5720, 64
        %s5722 = scalar_lea.vmem [#allocation15], %s5721
        // Predicated region
        $region109: #{tpu_custom_call.1} parent=83 // pred_check
          %p5723 = pneg %p395
        $region110: #{tpu_custom_call.1} parent=83 // pred_check_branch
          %5725 = sbr.rel (%p5723) target = $region112
        $region111: #{tpu_custom_call.1} parent=83 // pred_region
          %s5727 = ssub.s32 1024, 1024
          %5728 = vsyncadd %s5719, %s5727
          %s5729 = smul.addr %s36, 8
          %s5730 = smul.addr %s5729, 128
          %s5731 = scalar_lea.hbm %s16, %s5730
          %s5732 = sshll.u32 %s5722, 4
          %s5733 = int_to_ptr.vmem [resolvable:$true] %s5732
          %5738 = dma.vmem_to_hbm [thread:$0]  %s5733, 1024, %s5731, %s5719, 128, 128, 8
        $region112: #{tpu_custom_call.1} parent=83 // pred_fallthru
          _
      $region84: #{tpu_custom_call.1} parent=5 // pred_fallthru
        _
      %p5739 = scmp.le.s32.totalorder 2, %s31
      // Predicated region
      $region113: #{tpu_custom_call.1} parent=5 // pred_check
        %p5740 = pneg %p5739
      $region114: #{tpu_custom_call.1} parent=5 // pred_check_branch
        %5742 = sbr.rel (%p5740) target = $region116
      $region115: #{tpu_custom_call.1} parent=5 // pred_region
        %s5743 = ssub.s32 %s31, 2
        // Predicated region
        $region117: #{tpu_custom_call.1} parent=115 // pred_check
          %p5744 = pneg %p401
        $region118: #{tpu_custom_call.1} parent=115 // pred_check_branch
          %5746 = sbr.rel (%p5744) target = $region120
        $region119: #{tpu_custom_call.1} parent=115 // pred_region
          %s5747 = sand.u32 %s386, 1
          %s5748 = scalar_lea.sflag [#allocation6], %s5747
          %s5749 = sand.u32 %s386, 1
          %s5750 = smul.addr %s5749, 64
          %s5751 = scalar_lea.vmem [#allocation15], %s5750
          %5752 = dma.done %s5748, 1024
        $region120: #{tpu_custom_call.1} parent=115 // pred_fallthru
          _
      $region116: #{tpu_custom_call.1} parent=5 // pred_fallthru
        _
    $region6: #{tpu_custom_call.1} parent=1 // loop_footer
      %s35 = sadd.s32 1, %s31
    $region7: #{tpu_custom_call.1} parent=1 // loop_footer_branch
      %30 = sbr.rel target = $region3
    $region8: #{tpu_custom_call.1} parent=1 // loop_exit
      _
    %5753 = vsyncpa [#allocation5], 1
    %s5754 = scalar_lea.sflag [#allocation5], 1
    %5755 = vsyncpa %s5754, 1
    %5756 = vsyncpa [#allocation8], 1
    %5757 = vsyncpa [#allocation11], 1
    %5758 = vsyncpa [#allocation14], 1
    %5759 = vsyncpa [#allocation6], 1
    %s5760 = scalar_lea.sflag [#allocation6], 1
    %5761 = vsyncpa %s5760, 1

</llo_original>
